<compile_context>
chip_gen: v7x
topology: tpu7x:2x2x1
jax: 0.10.0
libtpu: 0.0.40
codegen_flags: <defaults>
</compile_context>

<pallas_src>
import functools
import math

import jax
import jax.numpy as jnp
from jax.experimental import pallas as pl
from jax.experimental.pallas import tpu as pltpu


def _round_up(x: int, m: int) -> int:
    return ((x + m - 1) // m) * m


def _softplus(x):
    # numerically stable softplus (== jax.nn.softplus)
    return jnp.log1p(jnp.exp(-jnp.abs(x))) + jnp.maximum(x, 0.0)


def transition_kernel(
    # batch-tiled inputs
    x_ref, act_ref, mu_ref, sigma_ref,
    # VMEM-resident parameters (constant index maps)
    w1_ref, b1_ref, w2_ref, b2_ref, wh_ref, bh_ref,
    # constant selector matrices
    e_ref, g_ref,
    # outputs
    mean_ref, c_ref, a_ref, bflat_ref, o_ref,
    *, min_var: float,
):
    f32 = jnp.float32
    bf16 = jnp.bfloat16

    S = mu_ref.shape[-1]
    A_dim = act_ref.shape[-1]
    SA = S * A_dim

    x = x_ref[...]
    act = act_ref[...]
    mu = mu_ref[...]
    sigma = sigma_ref[...]

    # ---- MLP trunk: Linear -> ReLU -> (Dropout=id) -> Linear -> ReLU -> (Dropout=id)
    # bf16 operands, f32 accumulation on the MXU.
    h1 = jnp.maximum(
        jnp.dot(x.astype(bf16), w1_ref[...], preferred_element_type=f32) + b1_ref[...],
        0.0)
    h = jnp.maximum(
        jnp.dot(h1.astype(bf16), w2_ref[...], preferred_element_type=f32) + b2_ref[...],
        0.0)

    # ---- all five heads fused into ONE GEMM: columns = [B_flat(S*A) | v | r | o | w]
    heads = jnp.dot(h.astype(bf16), wh_ref[...], preferred_element_type=f32) + bh_ref[...]
    bflat = heads[:, :SA]                                 # (TB, S*A), lane dense
    v = jnp.tanh(heads[:, SA:SA + S])
    r = jnp.tanh(heads[:, SA + S:SA + 2 * S])
    o = heads[:, SA + 2 * S:SA + 3 * S]
    w = _softplus(heads[:, SA + 3 * S:SA + 4 * S]) + min_var

    # ---- B @ action without any in-kernel reshape:
    #   act_rep[b, s*A+a] = act[b, a]                       (act @ E, E is 0/1)
    #   Bact[b, s]        = sum_a bflat[b, s*A+a] act[b, a] ((bflat*act_rep) @ G)
    act_rep = jnp.dot(act, e_ref[...], preferred_element_type=f32)            # (TB, S*A)
    bact = jnp.dot(bflat * act_rep, g_ref[...], preferred_element_type=f32)   # (TB, S)

    # ---- rank-1 structure of A = I + v r^T
    # mean = A @ mu + B @ act + o = mu + v (r.mu) + Bact + o
    rmu = jnp.sum(r * mu, axis=-1, keepdims=True)                             # (TB, 1)
    mean = mu + v * rmu + bact + o

    # A Sigma A^T = Sigma + v (r^T Sigma) + (Sigma r) v^T + (r^T Sigma r) v v^T
    u = jnp.sum(sigma * r[:, None, :], axis=-1)        # Sigma r      (TB, S)
    ut = jnp.sum(sigma * r[:, :, None], axis=1)        # Sigma^T r    (TB, S) (== u for symmetric Sigma)
    s_rr = jnp.sum(r * u, axis=-1, keepdims=True)      # r^T Sigma r  (TB, 1)

    eye = (jax.lax.broadcasted_iota(jnp.int32, (S, S), 0)
           == jax.lax.broadcasted_iota(jnp.int32, (S, S), 1)).astype(f32)

    v_col = v[:, :, None]                              # (TB, S, 1)
    v_row = v[:, None, :]                              # (TB, 1, S)
    cov = (sigma
           + v_col * ut[:, None, :]
           + u[:, :, None] * v_row
           + (s_rr[:, :, None] * v_col) * v_row
           + w[:, :, None] * eye[None, :, :])          # += diag_embed(w)

    a_mat = eye[None, :, :] + v_col * r[:, None, :]

    mean_ref[...] = mean
    c_ref[...] = cov
    a_ref[...] = a_mat
    bflat_ref[...] = bflat
    o_ref[...] = o


def init_raw_params(key, state_dim, action_dim, hidden_dim):
    """PyTorch-style uniform init; weights stored (in_features, out_features)."""
    def linear(k, fan_in, fan_out):
        kw, kb = jax.random.split(k)
        bound = 1.0 / math.sqrt(fan_in)
        W = jax.random.uniform(kw, (fan_in, fan_out), jnp.float32, -bound, bound)
        b = jax.random.uniform(kb, (1, fan_out), jnp.float32, -bound, bound)
        return W, b

    keys = jax.random.split(key, 7)
    W1, b1 = linear(keys[0], state_dim, hidden_dim)
    W2, b2 = linear(keys[1], hidden_dim, hidden_dim)
    Wv, bv = linear(keys[2], hidden_dim, state_dim)
    Wr, br = linear(keys[3], hidden_dim, state_dim)
    WB, bB = linear(keys[4], hidden_dim, state_dim * action_dim)
    Wo, bo = linear(keys[5], hidden_dim, state_dim)
    Ww, bw = linear(keys[6], hidden_dim, state_dim)
    return dict(W1=W1, b1=b1, W2=W2, b2=b2, Wv=Wv, bv=bv, Wr=Wr, br=br,
                WB=WB, bB=bB, Wo=Wo, bo=bo, Ww=Ww, bw=bw)


def pack_params(raw, state_dim, action_dim):
    """Pack the per-head weights into the fused kernel layout."""
    SA = state_dim * action_dim
    # Fused head weight: [B_flat | v | r | o | w].  B-head first so its
    # (S*A)-wide slice in the kernel is lane-tile aligned.
    W_heads = jnp.concatenate(
        [raw["WB"], raw["Wv"], raw["Wr"], raw["Wo"], raw["Ww"]], axis=1)
    b_heads = jnp.concatenate(
        [raw["bB"], raw["bv"], raw["br"], raw["bo"], raw["bw"]], axis=1)

    # Constant 0/1 selector matrices (so the kernel never reshapes (TB, S*A)):
    #   E[a, s*A + a'] = (a == a')   -> act @ E broadcasts the action along lanes
    #   G[s*A + a, s'] = (s == s')   -> segment-sums groups of A lanes
    k = jnp.arange(SA)
    E = (k[None, :] % action_dim == jnp.arange(action_dim)[:, None]).astype(jnp.float32)
    G = (k[:, None] // action_dim == jnp.arange(state_dim)[None, :]).astype(jnp.float32)

    bf16 = jnp.bfloat16
    return dict(
        W1=raw["W1"].astype(bf16), b1=raw["b1"],
        W2=raw["W2"].astype(bf16), b2=raw["b2"],
        W_heads=W_heads.astype(bf16), b_heads=b_heads,
        E=E, G=G)


def transition_forward(state_sample, action, mu, sigma, params, *,
                       min_var=1e-3, block_b=256):
    """Returns (next_state_mean, C, A, B, o); (mean, C) parameterize the
    next-state MultivariateNormal of the original module."""
    B, S = state_sample.shape
    A_dim = action.shape[-1]
    SA = S * A_dim
    H = params["W1"].shape[-1]
    HW = params["W_heads"].shape[-1]

    # batch tile: multiple of 8 sublanes, capped by block_b (keep small enough
    # for v7x's 64 MiB VMEM; per-row footprint here is only a few KB).
    tb = min(block_b, _round_up(B, 8))
    tb = max(8, (tb // 8) * 8)
    Bp = _round_up(B, tb)
    pad = Bp - B
    if pad:
        state_sample = jnp.pad(state_sample, ((0, pad), (0, 0)))
        action = jnp.pad(action, ((0, pad), (0, 0)))
        mu = jnp.pad(mu, ((0, pad), (0, 0)))
        sigma = jnp.pad(sigma, ((0, pad), (0, 0), (0, 0)))

    grid = (Bp // tb,)
    row2 = lambda i: (i, 0)
    row3 = lambda i: (i, 0, 0)
    const2 = lambda i: (0, 0)

    in_specs = [
        pl.BlockSpec((tb, S), row2),          # state_sample
        pl.BlockSpec((tb, A_dim), row2),      # action
        pl.BlockSpec((tb, S), row2),          # mu
        pl.BlockSpec((tb, S, S), row3),       # sigma
        pl.BlockSpec((S, H), const2),         # W1 (bf16)
        pl.BlockSpec((1, H), const2),         # b1
        pl.BlockSpec((H, H), const2),         # W2 (bf16)
        pl.BlockSpec((1, H), const2),         # b2
        pl.BlockSpec((H, HW), const2),        # fused head weight (bf16)
        pl.BlockSpec((1, HW), const2),        # fused head bias
        pl.BlockSpec((A_dim, SA), const2),    # E selector
        pl.BlockSpec((SA, S), const2),        # G selector
    ]
    out_specs = (
        pl.BlockSpec((tb, S), row2),          # mean
        pl.BlockSpec((tb, S, S), row3),       # C
        pl.BlockSpec((tb, S, S), row3),       # A
        pl.BlockSpec((tb, SA), row2),         # B (flat, lane dense)
        pl.BlockSpec((tb, S), row2),          # o
    )
    out_shape = (
        jax.ShapeDtypeStruct((Bp, S), jnp.float32),
        jax.ShapeDtypeStruct((Bp, S, S), jnp.float32),
        jax.ShapeDtypeStruct((Bp, S, S), jnp.float32),
        jax.ShapeDtypeStruct((Bp, SA), jnp.float32),
        jax.ShapeDtypeStruct((Bp, S), jnp.float32),
    )

    kernel = functools.partial(transition_kernel, min_var=min_var)
    mean, C, A, Bflat, o = pl.pallas_call(
        kernel,
        grid=grid,
        in_specs=in_specs,
        out_specs=out_specs,
        out_shape=out_shape,
        compiler_params=pltpu.CompilerParams(dimension_semantics=("parallel",)),
    )(state_sample, action, mu, sigma,
      params["W1"], params["b1"], params["W2"], params["b2"],
      params["W_heads"], params["b_heads"], params["E"], params["G"])

    Bmat = Bflat.reshape(Bp, S, A_dim)        # lane-dense in kernel, reshaped here
    if pad:
        mean, C, A, Bmat, o = (t[:B] for t in (mean, C, A, Bmat, o))
    return mean, C, A, Bmat, o


def reference_forward(x, act, mu, sigma, params, *, min_var=1e-3):
    """Pure-JAX reference mirroring the module math (and the kernel's bf16 GEMM
    operand precision) with full batched matrices — used only for validation."""
    f32, bf16 = jnp.float32, jnp.bfloat16
    S = mu.shape[-1]
    A_dim = act.shape[-1]
    SA = S * A_dim
    hp = jax.lax.Precision.HIGHEST

    def mm(a, b):
        return jnp.dot(a.astype(bf16).astype(f32), b.astype(f32), precision=hp)

    h1 = jax.nn.relu(mm(x, params["W1"]) + params["b1"])
    h = jax.nn.relu(mm(h1, params["W2"]) + params["b2"])
    heads = mm(h, params["W_heads"]) + params["b_heads"]
    Bflat = heads[:, :SA]
    v = jnp.tanh(heads[:, SA:SA + S])
    r = jnp.tanh(heads[:, SA + S:SA + 2 * S])
    o = heads[:, SA + 2 * S:SA + 3 * S]
    w = jax.nn.softplus(heads[:, SA + 3 * S:SA + 4 * S]) + min_var

    Bmat = Bflat.reshape(-1, S, A_dim)
    eye = jnp.eye(S, dtype=f32)
    A = eye[None] + v[:, :, None] * r[:, None, :]
    mean = (jnp.einsum('bij,bj->bi', A, mu, precision=hp)
            + jnp.einsum('bia,ba->bi', Bmat, act, precision=hp) + o)
    C = (w[:, :, None] * eye[None]
         + jnp.einsum('bij,bjk,blk->bil', A, sigma, A, precision=hp))
    return mean, C, A, Bmat, o


if __name__ == "__main__":
    batch = 64
    state_dim = 16
    action_dim = 8
    hidden_dim = 2 * state_dim    # module default

    key = jax.random.PRNGKey(0)
    k_par, k_x, k_a, k_mu, k_L = jax.random.split(key, 5)

    raw = init_raw_params(k_par, state_dim, action_dim, hidden_dim)
    params = pack_params(raw, state_dim, action_dim)

    state_sample = jax.random.normal(k_x, (batch, state_dim), jnp.float32)
    action = jax.random.normal(k_a, (batch, action_dim), jnp.float32)
    mu = jax.random.normal(k_mu, (batch, state_dim), jnp.float32)
    # positive-definite (symmetric) covariance for the input state distribution
    L = 0.1 * jax.random.normal(k_L, (batch, state_dim, state_dim), jnp.float32)
    sigma = jnp.einsum('bij,bkj->bik', L, L) + 0.5 * jnp.eye(state_dim)[None]

    outs = transition_forward(state_sample, action, mu, sigma, params,
                              min_var=1e-3, block_b=32)   # grid = (2,)
    jax.block_until_ready(outs)

    # validate the rank-1 / fused-head / selector algebra against full-matrix math
    refs = reference_forward(state_sample, action, mu, sigma, params, min_var=1e-3)
    for got, want in zip(outs, refs):
        assert bool(jnp.allclose(got, want, atol=1e-3, rtol=1e-3)), \
            float(jnp.max(jnp.abs(got - want)))

    print("KERNEL_OK")
</pallas_src>

<mosaic_0001>
module attributes {stable_mosaic.version = 11 : i64} {
  func.func @transition_kernel(%arg0: i32, %arg1: memref<32x16xf32, #tpu.memory_space<vmem>>, %arg2: memref<32x8xf32, #tpu.memory_space<vmem>>, %arg3: memref<32x16xf32, #tpu.memory_space<vmem>>, %arg4: memref<32x16x16xf32, #tpu.memory_space<vmem>>, %arg5: memref<16x32xbf16, #tpu.memory_space<vmem>>, %arg6: memref<1x32xf32, #tpu.memory_space<vmem>>, %arg7: memref<32x32xbf16, #tpu.memory_space<vmem>>, %arg8: memref<1x32xf32, #tpu.memory_space<vmem>>, %arg9: memref<32x192xbf16, #tpu.memory_space<vmem>>, %arg10: memref<1x192xf32, #tpu.memory_space<vmem>>, %arg11: memref<8x128xf32, #tpu.memory_space<vmem>>, %arg12: memref<128x16xf32, #tpu.memory_space<vmem>>, %arg13: memref<32x16xf32, #tpu.memory_space<vmem>>, %arg14: memref<32x16x16xf32, #tpu.memory_space<vmem>>, %arg15: memref<32x16x16xf32, #tpu.memory_space<vmem>>, %arg16: memref<32x128xf32, #tpu.memory_space<vmem>>, %arg17: memref<32x16xf32, #tpu.memory_space<vmem>>) attributes {dimension_semantics = [#tpu.dimension_semantics<parallel>], iteration_bounds = array<i64: 2>, scalar_prefetch = 0 : i64, scratch_operands = 0 : i64, tpu.core_type = #tpu.core_type<tc>, window_params = [{transform_indices = @transform_0, window_bounds = array<i64: 32, 16>}, {transform_indices = @transform_1, window_bounds = array<i64: 32, 8>}, {transform_indices = @transform_2, window_bounds = array<i64: 32, 16>}, {transform_indices = @transform_3, window_bounds = array<i64: 32, 16, 16>}, {pipeline_mode = #tpu.pipeline_mode<synchronous>, transform_indices = @transform_4, window_bounds = array<i64: 16, 32>}, {pipeline_mode = #tpu.pipeline_mode<synchronous>, transform_indices = @transform_5, window_bounds = array<i64: 1, 32>}, {pipeline_mode = #tpu.pipeline_mode<synchronous>, transform_indices = @transform_6, window_bounds = array<i64: 32, 32>}, {pipeline_mode = #tpu.pipeline_mode<synchronous>, transform_indices = @transform_7, window_bounds = array<i64: 1, 32>}, {pipeline_mode = #tpu.pipeline_mode<synchronous>, transform_indices = @transform_8, window_bounds = array<i64: 32, 192>}, {pipeline_mode = #tpu.pipeline_mode<synchronous>, transform_indices = @transform_9, window_bounds = array<i64: 1, 192>}, {pipeline_mode = #tpu.pipeline_mode<synchronous>, transform_indices = @transform_10, window_bounds = array<i64: 8, 128>}, {pipeline_mode = #tpu.pipeline_mode<synchronous>, transform_indices = @transform_11, window_bounds = array<i64: 128, 16>}, {transform_indices = @transform_12, window_bounds = array<i64: 32, 16>}, {transform_indices = @transform_13, window_bounds = array<i64: 32, 16, 16>}, {transform_indices = @transform_14, window_bounds = array<i64: 32, 16, 16>}, {transform_indices = @transform_15, window_bounds = array<i64: 32, 128>}, {transform_indices = @transform_16, window_bounds = array<i64: 32, 16>}]} {
    %c0 = arith.constant 0 : index
    %c0_0 = arith.constant 0 : index
    %0 = vector.load %arg1[%c0, %c0_0] : memref<32x16xf32, #tpu.memory_space<vmem>>, vector<32x16xf32>
    %c0_1 = arith.constant 0 : index
    %c0_2 = arith.constant 0 : index
    %1 = vector.load %arg2[%c0_1, %c0_2] : memref<32x8xf32, #tpu.memory_space<vmem>>, vector<32x8xf32>
    %c0_3 = arith.constant 0 : index
    %c0_4 = arith.constant 0 : index
    %2 = vector.load %arg3[%c0_3, %c0_4] : memref<32x16xf32, #tpu.memory_space<vmem>>, vector<32x16xf32>
    %c0_5 = arith.constant 0 : index
    %c0_6 = arith.constant 0 : index
    %c0_7 = arith.constant 0 : index
    %3 = vector.load %arg4[%c0_5, %c0_6, %c0_7] : memref<32x16x16xf32, #tpu.memory_space<vmem>>, vector<32x16x16xf32>
    %4 = arith.truncf %0 : vector<32x16xf32> to vector<32x16xbf16>
    %c0_8 = arith.constant 0 : index
    %c0_9 = arith.constant 0 : index
    %5 = vector.load %arg5[%c0_8, %c0_9] : memref<16x32xbf16, #tpu.memory_space<vmem>>, vector<16x32xbf16>
    %cst = arith.constant dense<0.000000e+00> : vector<32x32xf32>
    %6 = tpu.matmul %4, %5, %cst {dimension_numbers = #tpu.dot_dimension_numbers<[1], [0], [0], [1], [0, 0, 1, 1], [], []>} : vector<32x16xbf16>, vector<16x32xbf16>, vector<32x32xf32> -> vector<32x32xf32>
    %c0_10 = arith.constant 0 : index
    %c0_11 = arith.constant 0 : index
    %7 = vector.load %arg6[%c0_10, %c0_11] : memref<1x32xf32, #tpu.memory_space<vmem>>, vector<1x32xf32>
    %8 = vector.broadcast %7 : vector<1x32xf32> to vector<32x32xf32>
    %9 = arith.addf %6, %8 : vector<32x32xf32>
    %cst_12 = arith.constant 0.000000e+00 : f32
    %10 = vector.broadcast %cst_12 : f32 to vector<32x32xf32>
    %11 = arith.maximumf %9, %10 : vector<32x32xf32>
    %12 = arith.truncf %11 : vector<32x32xf32> to vector<32x32xbf16>
    %c0_13 = arith.constant 0 : index
    %c0_14 = arith.constant 0 : index
    %13 = vector.load %arg7[%c0_13, %c0_14] : memref<32x32xbf16, #tpu.memory_space<vmem>>, vector<32x32xbf16>
    %cst_15 = arith.constant dense<0.000000e+00> : vector<32x32xf32>
    %14 = tpu.matmul %12, %13, %cst_15 {dimension_numbers = #tpu.dot_dimension_numbers<[1], [0], [0], [1], [0, 0, 1, 1], [], []>} : vector<32x32xbf16>, vector<32x32xbf16>, vector<32x32xf32> -> vector<32x32xf32>
    %c0_16 = arith.constant 0 : index
    %c0_17 = arith.constant 0 : index
    %15 = vector.load %arg8[%c0_16, %c0_17] : memref<1x32xf32, #tpu.memory_space<vmem>>, vector<1x32xf32>
    %16 = vector.broadcast %15 : vector<1x32xf32> to vector<32x32xf32>
    %17 = arith.addf %14, %16 : vector<32x32xf32>
    %cst_18 = arith.constant 0.000000e+00 : f32
    %18 = vector.broadcast %cst_18 : f32 to vector<32x32xf32>
    %19 = arith.maximumf %17, %18 : vector<32x32xf32>
    %20 = arith.truncf %19 : vector<32x32xf32> to vector<32x32xbf16>
    %c0_19 = arith.constant 0 : index
    %c0_20 = arith.constant 0 : index
    %21 = vector.load %arg9[%c0_19, %c0_20] : memref<32x192xbf16, #tpu.memory_space<vmem>>, vector<32x192xbf16>
    %cst_21 = arith.constant dense<0.000000e+00> : vector<32x192xf32>
    %22 = tpu.matmul %20, %21, %cst_21 {dimension_numbers = #tpu.dot_dimension_numbers<[1], [0], [0], [1], [0, 0, 1, 1], [], []>} : vector<32x32xbf16>, vector<32x192xbf16>, vector<32x192xf32> -> vector<32x192xf32>
    %c0_22 = arith.constant 0 : index
    %c0_23 = arith.constant 0 : index
    %23 = vector.load %arg10[%c0_22, %c0_23] : memref<1x192xf32, #tpu.memory_space<vmem>>, vector<1x192xf32>
    %24 = vector.broadcast %23 : vector<1x192xf32> to vector<32x192xf32>
    %25 = arith.addf %22, %24 : vector<32x192xf32>
    %26 = vector.extract_strided_slice %25 {offsets = [0, 0], sizes = [32, 128], strides = [1, 1]} : vector<32x192xf32> to vector<32x128xf32>
    %27 = vector.extract_strided_slice %25 {offsets = [0, 128], sizes = [32, 16], strides = [1, 1]} : vector<32x192xf32> to vector<32x16xf32>
    %28 = math.tanh %27 : vector<32x16xf32>
    %29 = vector.extract_strided_slice %25 {offsets = [0, 144], sizes = [32, 16], strides = [1, 1]} : vector<32x192xf32> to vector<32x16xf32>
    %30 = math.tanh %29 : vector<32x16xf32>
    %31 = vector.extract_strided_slice %25 {offsets = [0, 160], sizes = [32, 16], strides = [1, 1]} : vector<32x192xf32> to vector<32x16xf32>
    %32 = vector.extract_strided_slice %25 {offsets = [0, 176], sizes = [32, 16], strides = [1, 1]} : vector<32x192xf32> to vector<32x16xf32>
    %33 = math.absf %32 : vector<32x16xf32>
    %cst_24 = arith.constant 0.000000e+00 : f32
    %34 = vector.broadcast %cst_24 : f32 to vector<32x16xf32>
    %35 = arith.subf %34, %33 : vector<32x16xf32>
    %36 = math.exp %35 : vector<32x16xf32>
    %37 = math.log1p %36 : vector<32x16xf32>
    %cst_25 = arith.constant 0.000000e+00 : f32
    %38 = vector.broadcast %cst_25 : f32 to vector<32x16xf32>
    %39 = arith.maximumf %32, %38 : vector<32x16xf32>
    %40 = arith.addf %37, %39 : vector<32x16xf32>
    %cst_26 = arith.constant 1.000000e-03 : f32
    %41 = vector.broadcast %cst_26 : f32 to vector<32x16xf32>
    %42 = arith.addf %40, %41 : vector<32x16xf32>
    %c0_27 = arith.constant 0 : index
    %c0_28 = arith.constant 0 : index
    %43 = vector.load %arg11[%c0_27, %c0_28] : memref<8x128xf32, #tpu.memory_space<vmem>>, vector<8x128xf32>
    %cst_29 = arith.constant dense<0.000000e+00> : vector<32x128xf32>
    %44 = tpu.matmul %1, %43, %cst_29 {dimension_numbers = #tpu.dot_dimension_numbers<[1], [0], [0], [1], [0, 0, 1, 1], [], []>} : vector<32x8xf32>, vector<8x128xf32>, vector<32x128xf32> -> vector<32x128xf32>
    %45 = arith.mulf %26, %44 : vector<32x128xf32>
    %c0_30 = arith.constant 0 : index
    %c0_31 = arith.constant 0 : index
    %46 = vector.load %arg12[%c0_30, %c0_31] : memref<128x16xf32, #tpu.memory_space<vmem>>, vector<128x16xf32>
    %cst_32 = arith.constant dense<0.000000e+00> : vector<32x16xf32>
    %47 = tpu.matmul %45, %46, %cst_32 {dimension_numbers = #tpu.dot_dimension_numbers<[1], [0], [0], [1], [0, 0, 1, 1], [], []>} : vector<32x128xf32>, vector<128x16xf32>, vector<32x16xf32> -> vector<32x16xf32>
    %48 = arith.mulf %30, %2 : vector<32x16xf32>
    %cst_33 = arith.constant dense<0.000000e+00> : vector<32xf32>
    %49 = vector.multi_reduction <add>, %48, %cst_33 [1] : vector<32x16xf32> to vector<32xf32>
    %50 = vector.shape_cast %49 : vector<32xf32> to vector<32x1xf32>
    %51 = vector.broadcast %50 : vector<32x1xf32> to vector<32x16xf32>
    %52 = arith.mulf %28, %51 : vector<32x16xf32>
    %53 = arith.addf %2, %52 : vector<32x16xf32>
    %54 = arith.addf %53, %47 : vector<32x16xf32>
    %55 = arith.addf %54, %31 : vector<32x16xf32>
    %56 = vector.shape_cast %30 : vector<32x16xf32> to vector<32x1x16xf32>
    %57 = vector.broadcast %56 : vector<32x1x16xf32> to vector<32x16x16xf32>
    %58 = arith.mulf %3, %57 : vector<32x16x16xf32>
    %cst_34 = arith.constant dense<0.000000e+00> : vector<32x16xf32>
    %59 = vector.multi_reduction <add>, %58, %cst_34 [2] : vector<32x16x16xf32> to vector<32x16xf32>
    %60 = vector.shape_cast %30 : vector<32x16xf32> to vector<32x16x1xf32>
    %61 = vector.broadcast %60 : vector<32x16x1xf32> to vector<32x16x16xf32>
    %62 = arith.mulf %3, %61 : vector<32x16x16xf32>
    %cst_35 = arith.constant dense<0.000000e+00> : vector<32x16xf32>
    %63 = vector.multi_reduction <add>, %62, %cst_35 [1] : vector<32x16x16xf32> to vector<32x16xf32>
    %64 = arith.mulf %30, %59 : vector<32x16xf32>
    %cst_36 = arith.constant dense<0.000000e+00> : vector<32xf32>
    %65 = vector.multi_reduction <add>, %64, %cst_36 [1] : vector<32x16xf32> to vector<32xf32>
    %66 = vector.shape_cast %65 : vector<32xf32> to vector<32x1xf32>
    %67 = tpu.iota {dimensions = array<i32: 0>} : vector<16x16xi32>
    %68 = tpu.iota {dimensions = array<i32: 1>} : vector<16x16xi32>
    %69 = arith.cmpi eq, %67, %68 : vector<16x16xi32>
    %70 = arith.extui %69 : vector<16x16xi1> to vector<16x16xi32>
    %71 = arith.sitofp %70 : vector<16x16xi32> to vector<16x16xf32>
    %72 = vector.shape_cast %28 : vector<32x16xf32> to vector<32x16x1xf32>
    %73 = vector.shape_cast %28 : vector<32x16xf32> to vector<32x1x16xf32>
    %74 = vector.shape_cast %63 : vector<32x16xf32> to vector<32x1x16xf32>
    %75 = vector.broadcast %72 : vector<32x16x1xf32> to vector<32x16x16xf32>
    %76 = vector.broadcast %74 : vector<32x1x16xf32> to vector<32x16x16xf32>
    %77 = arith.mulf %75, %76 : vector<32x16x16xf32>
    %78 = arith.addf %3, %77 : vector<32x16x16xf32>
    %79 = vector.shape_cast %59 : vector<32x16xf32> to vector<32x16x1xf32>
    %80 = vector.broadcast %79 : vector<32x16x1xf32> to vector<32x16x16xf32>
    %81 = vector.broadcast %73 : vector<32x1x16xf32> to vector<32x16x16xf32>
    %82 = arith.mulf %80, %81 : vector<32x16x16xf32>
    %83 = arith.addf %78, %82 : vector<32x16x16xf32>
    %84 = vector.shape_cast %66 : vector<32x1xf32> to vector<32x1x1xf32>
    %85 = vector.broadcast %84 : vector<32x1x1xf32> to vector<32x16x1xf32>
    %86 = arith.mulf %85, %72 : vector<32x16x1xf32>
    %87 = vector.broadcast %86 : vector<32x16x1xf32> to vector<32x16x16xf32>
    %88 = vector.broadcast %73 : vector<32x1x16xf32> to vector<32x16x16xf32>
    %89 = arith.mulf %87, %88 : vector<32x16x16xf32>
    %90 = arith.addf %83, %89 : vector<32x16x16xf32>
    %91 = vector.shape_cast %42 : vector<32x16xf32> to vector<32x16x1xf32>
    %92 = vector.shape_cast %71 : vector<16x16xf32> to vector<1x16x16xf32>
    %93 = vector.broadcast %91 : vector<32x16x1xf32> to vector<32x16x16xf32>
    %94 = vector.broadcast %92 : vector<1x16x16xf32> to vector<32x16x16xf32>
    %95 = arith.mulf %93, %94 : vector<32x16x16xf32>
    %96 = arith.addf %90, %95 : vector<32x16x16xf32>
    %97 = vector.shape_cast %71 : vector<16x16xf32> to vector<1x16x16xf32>
    %98 = vector.shape_cast %30 : vector<32x16xf32> to vector<32x1x16xf32>
    %99 = vector.broadcast %72 : vector<32x16x1xf32> to vector<32x16x16xf32>
    %100 = vector.broadcast %98 : vector<32x1x16xf32> to vector<32x16x16xf32>
    %101 = arith.mulf %99, %100 : vector<32x16x16xf32>
    %102 = vector.broadcast %97 : vector<1x16x16xf32> to vector<32x16x16xf32>
    %103 = arith.addf %102, %101 : vector<32x16x16xf32>
    %c0_37 = arith.constant 0 : index
    %c0_38 = arith.constant 0 : index
    %104 = vector.load %arg13[%c0_37, %c0_38] : memref<32x16xf32, #tpu.memory_space<vmem>>, vector<32x16xf32>
    tpu.vector_store %arg13[%c0_37, %c0_38], %55 {strides = array<i32>} : memref<32x16xf32, #tpu.memory_space<vmem>>, vector<32x16xf32>,
    %c0_39 = arith.constant 0 : index
    %c0_40 = arith.constant 0 : index
    %c0_41 = arith.constant 0 : index
    %105 = vector.load %arg14[%c0_39, %c0_40, %c0_41] : memref<32x16x16xf32, #tpu.memory_space<vmem>>, vector<32x16x16xf32>
    tpu.vector_store %arg14[%c0_39, %c0_40, %c0_41], %96 {strides = array<i32>} : memref<32x16x16xf32, #tpu.memory_space<vmem>>, vector<32x16x16xf32>,
    %c0_42 = arith.constant 0 : index
    %c0_43 = arith.constant 0 : index
    %c0_44 = arith.constant 0 : index
    %106 = vector.load %arg15[%c0_42, %c0_43, %c0_44] : memref<32x16x16xf32, #tpu.memory_space<vmem>>, vector<32x16x16xf32>
    tpu.vector_store %arg15[%c0_42, %c0_43, %c0_44], %103 {strides = array<i32>} : memref<32x16x16xf32, #tpu.memory_space<vmem>>, vector<32x16x16xf32>,
    %c0_45 = arith.constant 0 : index
    %c0_46 = arith.constant 0 : index
    %107 = vector.load %arg16[%c0_45, %c0_46] : memref<32x128xf32, #tpu.memory_space<vmem>>, vector<32x128xf32>
    tpu.vector_store %arg16[%c0_45, %c0_46], %26 {strides = array<i32>} : memref<32x128xf32, #tpu.memory_space<vmem>>, vector<32x128xf32>,
    %c0_47 = arith.constant 0 : index
    %c0_48 = arith.constant 0 : index
    %108 = vector.load %arg17[%c0_47, %c0_48] : memref<32x16xf32, #tpu.memory_space<vmem>>, vector<32x16xf32>
    tpu.vector_store %arg17[%c0_47, %c0_48], %31 {strides = array<i32>} : memref<32x16xf32, #tpu.memory_space<vmem>>, vector<32x16xf32>,
    return
  }
  func.func @transform_0(%arg0: i32) -> (i32, i32) {
    %c0_i32 = arith.constant 0 : i32
    %c0_i32_0 = arith.constant 0 : i32
    return %arg0, %c0_i32 : i32, i32
  }
  func.func @transform_1(%arg0: i32) -> (i32, i32) {
    %c0_i32 = arith.constant 0 : i32
    %c0_i32_0 = arith.constant 0 : i32
    return %arg0, %c0_i32 : i32, i32
  }
  func.func @transform_2(%arg0: i32) -> (i32, i32) {
    %c0_i32 = arith.constant 0 : i32
    %c0_i32_0 = arith.constant 0 : i32
    return %arg0, %c0_i32 : i32, i32
  }
  func.func @transform_3(%arg0: i32) -> (i32, i32, i32) {
    %c0_i32 = arith.constant 0 : i32
    %c0_i32_0 = arith.constant 0 : i32
    %c0_i32_1 = arith.constant 0 : i32
    return %arg0, %c0_i32, %c0_i32_0 : i32, i32, i32
  }
  func.func @transform_4(%arg0: i32) -> (i32, i32) {
    %c0_i32 = arith.constant 0 : i32
    %c0_i32_0 = arith.constant 0 : i32
    %c0_i32_1 = arith.constant 0 : i32
    return %c0_i32, %c0_i32_0 : i32, i32
  }
  func.func @transform_5(%arg0: i32) -> (i32, i32) {
    %c0_i32 = arith.constant 0 : i32
    %c0_i32_0 = arith.constant 0 : i32
    %c0_i32_1 = arith.constant 0 : i32
    return %c0_i32, %c0_i32_0 : i32, i32
  }
  func.func @transform_6(%arg0: i32) -> (i32, i32) {
    %c0_i32 = arith.constant 0 : i32
    %c0_i32_0 = arith.constant 0 : i32
    %c0_i32_1 = arith.constant 0 : i32
    return %c0_i32, %c0_i32_0 : i32, i32
  }
  func.func @transform_7(%arg0: i32) -> (i32, i32) {
    %c0_i32 = arith.constant 0 : i32
    %c0_i32_0 = arith.constant 0 : i32
    %c0_i32_1 = arith.constant 0 : i32
    return %c0_i32, %c0_i32_0 : i32, i32
  }
  func.func @transform_8(%arg0: i32) -> (i32, i32) {
    %c0_i32 = arith.constant 0 : i32
    %c0_i32_0 = arith.constant 0 : i32
    %c0_i32_1 = arith.constant 0 : i32
    return %c0_i32, %c0_i32_0 : i32, i32
  }
  func.func @transform_9(%arg0: i32) -> (i32, i32) {
    %c0_i32 = arith.constant 0 : i32
    %c0_i32_0 = arith.constant 0 : i32
    %c0_i32_1 = arith.constant 0 : i32
    return %c0_i32, %c0_i32_0 : i32, i32
  }
  func.func @transform_10(%arg0: i32) -> (i32, i32) {
    %c0_i32 = arith.constant 0 : i32
    %c0_i32_0 = arith.constant 0 : i32
    %c0_i32_1 = arith.constant 0 : i32
    return %c0_i32, %c0_i32_0 : i32, i32
  }
  func.func @transform_11(%arg0: i32) -> (i32, i32) {
    %c0_i32 = arith.constant 0 : i32
    %c0_i32_0 = arith.constant 0 : i32
    %c0_i32_1 = arith.constant 0 : i32
    return %c0_i32, %c0_i32_0 : i32, i32
  }
  func.func @transform_12(%arg0: i32) -> (i32, i32) {
    %c0_i32 = arith.constant 0 : i32
    %c0_i32_0 = arith.constant 0 : i32
    return %arg0, %c0_i32 : i32, i32
  }
  func.func @transform_13(%arg0: i32) -> (i32, i32, i32) {
    %c0_i32 = arith.constant 0 : i32
    %c0_i32_0 = arith.constant 0 : i32
    %c0_i32_1 = arith.constant 0 : i32
    return %arg0, %c0_i32, %c0_i32_0 : i32, i32, i32
  }
  func.func @transform_14(%arg0: i32) -> (i32, i32, i32) {
    %c0_i32 = arith.constant 0 : i32
    %c0_i32_0 = arith.constant 0 : i32
    %c0_i32_1 = arith.constant 0 : i32
    return %arg0, %c0_i32, %c0_i32_0 : i32, i32, i32
  }
  func.func @transform_15(%arg0: i32) -> (i32, i32) {
    %c0_i32 = arith.constant 0 : i32
    %c0_i32_0 = arith.constant 0 : i32
    return %arg0, %c0_i32 : i32, i32
  }
  func.func @transform_16(%arg0: i32) -> (i32, i32) {
    %c0_i32 = arith.constant 0 : i32
    %c0_i32_0 = arith.constant 0 : i32
    return %arg0, %c0_i32 : i32, i32
  }
}

</mosaic_0001>

<llo_original>
// kernel: tpu_custom_call.1
$region0: #{tpu_custom_call.1}
  #allocation0 [shape = 'u32[]', space=smem, size = 0x4, offset = 0x4, fixed_abs, tag = 'smem constant byte address 0x4 - core index']
  #allocation1 [shape = 'u32[144,128]{1,0:T(1,128)}', space=vmem, size = 0x12000, scoped, tag = 'internal scratch']
  %s0 = inlined_call_operand.vmem [shape: f32[64,16], index: 0, kind: input, shape index: {}]
  %s1 = inlined_call_operand.vmem [shape: f32[64,8], index: 1, kind: input, shape index: {}]
  %s2 = inlined_call_operand.vmem [shape: f32[64,16], index: 2, kind: input, shape index: {}]
  %s3 = inlined_call_operand.vmem [shape: f32[64,16,16], index: 3, kind: input, shape index: {}]
  %s4 = inlined_call_operand.vmem [shape: bf16[16,32], index: 4, kind: input, shape index: {}]
  %s5 = inlined_call_operand.vmem [shape: f32[1,32], index: 5, kind: input, shape index: {}]
  %s6 = inlined_call_operand.vmem [shape: bf16[32,32], index: 6, kind: input, shape index: {}]
  %s7 = inlined_call_operand.vmem [shape: f32[1,32], index: 7, kind: input, shape index: {}]
  %s8 = inlined_call_operand.vmem [shape: bf16[32,192], index: 8, kind: input, shape index: {}]
  %s9 = inlined_call_operand.vmem [shape: f32[1,192], index: 9, kind: input, shape index: {}]
  %s10 = inlined_call_operand.vmem [shape: f32[8,128], index: 10, kind: input, shape index: {}]
  %s11 = inlined_call_operand.vmem [shape: f32[128,16], index: 11, kind: input, shape index: {}]
  %s12 = inlined_call_operand.vmem [shape: f32[64,16], index: 12, kind: output, shape index: {0}]
  %s13 = inlined_call_operand.vmem [shape: f32[64,16,16], index: 13, kind: output, shape index: {1}]
  %s14 = inlined_call_operand.vmem [shape: f32[64,16,16], index: 14, kind: output, shape index: {2}]
  %s15 = inlined_call_operand.hbm [shape: f32[64,128], index: 15, kind: output, shape index: {3}]
  %s16 = inlined_call_operand.vmem [shape: f32[64,16], index: 16, kind: output, shape index: {4}]
  %17 = xla_tuple %s12, %s13, %s14, %s15, %s16
  %s18 = sld [smem:[#allocation0]]
  $region113: #{tpu_custom_call.1} parent=0
    _
  %s20 = ssub.s32 1, %s18
  %s21 = scalar_select 0, %s20, %s18
  $region1: #{tpu_custom_call.1} parent=0
    #allocation2 [shape = 'u8[32768]{0}', space=vmem, size = 0x8000, scoped, tag = 'output window, operand 3']
    #allocation3 [shape = 's32[2]{0}', space=sflag, size = 0x8, scoped, tag = 'scoped memory for tpu_custom_call.1']
    %22 = vsyncpa [#allocation3], 0
    %s23 = scalar_lea.sflag [#allocation3], 1
    %24 = vsyncpa %s23, 0
    loop: start=0, step=1, limit=4
    $region2: #{tpu_custom_call.1} parent=1 // loop_pre_header
      _
    $region3: #{tpu_custom_call.1} parent=1 // loop_header
      %s26 = sphi 0, %s30
      %p27 = scmp.ge.s32.totalorder %s26, 4
      %s36 = sphi 0, %s38
      %s39 = sphi 0, %s36
      %s40 = sphi 0, %s39
      %s56 = sphi 0, %s40
      %s62 = sphi 0, %s64
      %s65 = sphi 0, %s62
      %s66 = sphi 0, %s65
      %s82 = sphi 0, %s66
      %s88 = sphi 0, %s90
      %s91 = sphi 0, %s88
      %s92 = sphi 0, %s91
      %s108 = sphi 0, %s92
      %s114 = sphi 0, %s116
      %s117 = sphi 0, %s114
      %s118 = sphi 0, %s117
      %s134 = sphi 0, %s118
      %s138 = sphi 0, %s138
      %s140 = sphi 0, %s138
      %s141 = sphi 0, %s140
      %s155 = sphi 0, %s141
      %s159 = sphi 0, %s159
      %s161 = sphi 0, %s159
      %s162 = sphi 0, %s161
      %s176 = sphi 0, %s162
      %s180 = sphi 0, %s180
      %s182 = sphi 0, %s180
      %s183 = sphi 0, %s182
      %s197 = sphi 0, %s183
      %s201 = sphi 0, %s201
      %s203 = sphi 0, %s201
      %s204 = sphi 0, %s203
      %s218 = sphi 0, %s204
      %s222 = sphi 0, %s222
      %s224 = sphi 0, %s222
      %s225 = sphi 0, %s224
      %s239 = sphi 0, %s225
      %s243 = sphi 0, %s243
      %s245 = sphi 0, %s243
      %s246 = sphi 0, %s245
      %s260 = sphi 0, %s246
      %s264 = sphi 0, %s264
      %s266 = sphi 0, %s264
      %s267 = sphi 0, %s266
      %s281 = sphi 0, %s267
      %s285 = sphi 0, %s285
      %s287 = sphi 0, %s285
      %s288 = sphi 0, %s287
      %s302 = sphi 0, %s288
      %s308 = sphi 0, %s310
      %s311 = sphi 0, %s308
      %s312 = sphi 0, %s311
      %s328 = sphi 0, %s312
      %s334 = sphi 0, %s336
      %s337 = sphi 0, %s334
      %s338 = sphi 0, %s337
      %s354 = sphi 0, %s338
      %s360 = sphi 0, %s362
      %s363 = sphi 0, %s360
      %s364 = sphi 0, %s363
      %s380 = sphi 0, %s364
      %s386 = sphi 0, %s388
      %s389 = sphi 0, %s386
      %s390 = sphi 0, %s389
      %s406 = sphi 0, %s390
      %s412 = sphi 0, %s414
      %s415 = sphi 0, %s412
      %s416 = sphi 0, %s415
      %s432 = sphi 0, %s416
    $region4: #{tpu_custom_call.1} parent=1 // loop_header_branch
      %29 = sbr.rel (%p27) target = $region8
    $region5: #{tpu_custom_call.1} parent=1 // loop_body
      %s31 = ssub.s32 %s26, 1
      %s32 = ssub.s32 %s26, 2
      %s33 = sadd.s32 %s26, 1
      %s34 = ssub.s32 %s26, %s33
      %p35 = scmp.eq.s32.totalorder %s34, 0
      %s37 = sadd.s32 %s36, 1
      %s38 = scalar_select %p35, %s36, %s37
      %p41 = pneg %p35
      %p42 = scmp.eq.s32.totalorder %s26, 1
      %p43 = por %p41, %p42
      %p44 = scmp.ne.s32.totalorder %s36, %s39
      %p45 = scmp.eq.s32.totalorder %s26, 0
      %p46 = por %p44, %p45
      %p47 = scmp.ne.s32.totalorder %s36, %s39
      %p48 = scmp.eq.s32.totalorder %s31, 1
      %p49 = por %p47, %p48
      %p50 = scmp.ne.s32.totalorder %s39, %s40
      %p51 = scmp.eq.s32.totalorder %s31, 0
      %p52 = por %p50, %p51
      %p53 = scmp.ne.s32.totalorder %s39, %s40
      %p54 = scmp.eq.s32.totalorder %s32, 1
      %p55 = por %p53, %p54
      %p57 = scmp.ne.s32.totalorder %s40, %s56
      %p58 = scmp.eq.s32.totalorder %s32, 0
      %p59 = por %p57, %p58
      %s60 = ssub.s32 %s26, %s33
      %p61 = scmp.eq.s32.totalorder %s60, 0
      %s63 = sadd.s32 %s62, 1
      %s64 = scalar_select %p61, %s62, %s63
      %p67 = pneg %p61
      %p68 = scmp.eq.s32.totalorder %s26, 1
      %p69 = por %p67, %p68
      %p70 = scmp.ne.s32.totalorder %s62, %s65
      %p71 = scmp.eq.s32.totalorder %s26, 0
      %p72 = por %p70, %p71
      %p73 = scmp.ne.s32.totalorder %s62, %s65
      %p74 = scmp.eq.s32.totalorder %s31, 1
      %p75 = por %p73, %p74
      %p76 = scmp.ne.s32.totalorder %s65, %s66
      %p77 = scmp.eq.s32.totalorder %s31, 0
      %p78 = por %p76, %p77
      %p79 = scmp.ne.s32.totalorder %s65, %s66
      %p80 = scmp.eq.s32.totalorder %s32, 1
      %p81 = por %p79, %p80
      %p83 = scmp.ne.s32.totalorder %s66, %s82
      %p84 = scmp.eq.s32.totalorder %s32, 0
      %p85 = por %p83, %p84
      %s86 = ssub.s32 %s26, %s33
      %p87 = scmp.eq.s32.totalorder %s86, 0
      %s89 = sadd.s32 %s88, 1
      %s90 = scalar_select %p87, %s88, %s89
      %p93 = pneg %p87
      %p94 = scmp.eq.s32.totalorder %s26, 1
      %p95 = por %p93, %p94
      %p96 = scmp.ne.s32.totalorder %s88, %s91
      %p97 = scmp.eq.s32.totalorder %s26, 0
      %p98 = por %p96, %p97
      %p99 = scmp.ne.s32.totalorder %s88, %s91
      %p100 = scmp.eq.s32.totalorder %s31, 1
      %p101 = por %p99, %p100
      %p102 = scmp.ne.s32.totalorder %s91, %s92
      %p103 = scmp.eq.s32.totalorder %s31, 0
      %p104 = por %p102, %p103
      %p105 = scmp.ne.s32.totalorder %s91, %s92
      %p106 = scmp.eq.s32.totalorder %s32, 1
      %p107 = por %p105, %p106
      %p109 = scmp.ne.s32.totalorder %s92, %s108
      %p110 = scmp.eq.s32.totalorder %s32, 0
      %p111 = por %p109, %p110
      %s112 = ssub.s32 %s26, %s33
      %p113 = scmp.eq.s32.totalorder %s112, 0
      %s115 = sadd.s32 %s114, 1
      %s116 = scalar_select %p113, %s114, %s115
      %p119 = pneg %p113
      %p120 = scmp.eq.s32.totalorder %s26, 1
      %p121 = por %p119, %p120
      %p122 = scmp.ne.s32.totalorder %s114, %s117
      %p123 = scmp.eq.s32.totalorder %s26, 0
      %p124 = por %p122, %p123
      %p125 = scmp.ne.s32.totalorder %s114, %s117
      %p126 = scmp.eq.s32.totalorder %s31, 1
      %p127 = por %p125, %p126
      %p128 = scmp.ne.s32.totalorder %s117, %s118
      %p129 = scmp.eq.s32.totalorder %s31, 0
      %p130 = por %p128, %p129
      %p131 = scmp.ne.s32.totalorder %s117, %s118
      %p132 = scmp.eq.s32.totalorder %s32, 1
      %p133 = por %p131, %p132
      %p135 = scmp.ne.s32.totalorder %s118, %s134
      %p136 = scmp.eq.s32.totalorder %s32, 0
      %p137 = por %p135, %p136
      %s139 = sadd.s32 %s138, 1
      %p142 = scmp.eq.s32.totalorder %s26, 1
      %p143 = scmp.ne.s32.totalorder %s138, %s140
      %p144 = scmp.eq.s32.totalorder %s26, 0
      %p145 = por %p143, %p144
      %p146 = scmp.ne.s32.totalorder %s138, %s140
      %p147 = scmp.eq.s32.totalorder %s31, 1
      %p148 = por %p146, %p147
      %p149 = scmp.ne.s32.totalorder %s140, %s141
      %p150 = scmp.eq.s32.totalorder %s31, 0
      %p151 = por %p149, %p150
      %p152 = scmp.ne.s32.totalorder %s140, %s141
      %p153 = scmp.eq.s32.totalorder %s32, 1
      %p154 = por %p152, %p153
      %p156 = scmp.ne.s32.totalorder %s141, %s155
      %p157 = scmp.eq.s32.totalorder %s32, 0
      %p158 = por %p156, %p157
      %s160 = sadd.s32 %s159, 1
      %p163 = scmp.eq.s32.totalorder %s26, 1
      %p164 = scmp.ne.s32.totalorder %s159, %s161
      %p165 = scmp.eq.s32.totalorder %s26, 0
      %p166 = por %p164, %p165
      %p167 = scmp.ne.s32.totalorder %s159, %s161
      %p168 = scmp.eq.s32.totalorder %s31, 1
      %p169 = por %p167, %p168
      %p170 = scmp.ne.s32.totalorder %s161, %s162
      %p171 = scmp.eq.s32.totalorder %s31, 0
      %p172 = por %p170, %p171
      %p173 = scmp.ne.s32.totalorder %s161, %s162
      %p174 = scmp.eq.s32.totalorder %s32, 1
      %p175 = por %p173, %p174
      %p177 = scmp.ne.s32.totalorder %s162, %s176
      %p178 = scmp.eq.s32.totalorder %s32, 0
      %p179 = por %p177, %p178
      %s181 = sadd.s32 %s180, 1
      %p184 = scmp.eq.s32.totalorder %s26, 1
      %p185 = scmp.ne.s32.totalorder %s180, %s182
      %p186 = scmp.eq.s32.totalorder %s26, 0
      %p187 = por %p185, %p186
      %p188 = scmp.ne.s32.totalorder %s180, %s182
      %p189 = scmp.eq.s32.totalorder %s31, 1
      %p190 = por %p188, %p189
      %p191 = scmp.ne.s32.totalorder %s182, %s183
      %p192 = scmp.eq.s32.totalorder %s31, 0
      %p193 = por %p191, %p192
      %p194 = scmp.ne.s32.totalorder %s182, %s183
      %p195 = scmp.eq.s32.totalorder %s32, 1
      %p196 = por %p194, %p195
      %p198 = scmp.ne.s32.totalorder %s183, %s197
      %p199 = scmp.eq.s32.totalorder %s32, 0
      %p200 = por %p198, %p199
      %s202 = sadd.s32 %s201, 1
      %p205 = scmp.eq.s32.totalorder %s26, 1
      %p206 = scmp.ne.s32.totalorder %s201, %s203
      %p207 = scmp.eq.s32.totalorder %s26, 0
      %p208 = por %p206, %p207
      %p209 = scmp.ne.s32.totalorder %s201, %s203
      %p210 = scmp.eq.s32.totalorder %s31, 1
      %p211 = por %p209, %p210
      %p212 = scmp.ne.s32.totalorder %s203, %s204
      %p213 = scmp.eq.s32.totalorder %s31, 0
      %p214 = por %p212, %p213
      %p215 = scmp.ne.s32.totalorder %s203, %s204
      %p216 = scmp.eq.s32.totalorder %s32, 1
      %p217 = por %p215, %p216
      %p219 = scmp.ne.s32.totalorder %s204, %s218
      %p220 = scmp.eq.s32.totalorder %s32, 0
      %p221 = por %p219, %p220
      %s223 = sadd.s32 %s222, 1
      %p226 = scmp.eq.s32.totalorder %s26, 1
      %p227 = scmp.ne.s32.totalorder %s222, %s224
      %p228 = scmp.eq.s32.totalorder %s26, 0
      %p229 = por %p227, %p228
      %p230 = scmp.ne.s32.totalorder %s222, %s224
      %p231 = scmp.eq.s32.totalorder %s31, 1
      %p232 = por %p230, %p231
      %p233 = scmp.ne.s32.totalorder %s224, %s225
      %p234 = scmp.eq.s32.totalorder %s31, 0
      %p235 = por %p233, %p234
      %p236 = scmp.ne.s32.totalorder %s224, %s225
      %p237 = scmp.eq.s32.totalorder %s32, 1
      %p238 = por %p236, %p237
      %p240 = scmp.ne.s32.totalorder %s225, %s239
      %p241 = scmp.eq.s32.totalorder %s32, 0
      %p242 = por %p240, %p241
      %s244 = sadd.s32 %s243, 1
      %p247 = scmp.eq.s32.totalorder %s26, 1
      %p248 = scmp.ne.s32.totalorder %s243, %s245
      %p249 = scmp.eq.s32.totalorder %s26, 0
      %p250 = por %p248, %p249
      %p251 = scmp.ne.s32.totalorder %s243, %s245
      %p252 = scmp.eq.s32.totalorder %s31, 1
      %p253 = por %p251, %p252
      %p254 = scmp.ne.s32.totalorder %s245, %s246
      %p255 = scmp.eq.s32.totalorder %s31, 0
      %p256 = por %p254, %p255
      %p257 = scmp.ne.s32.totalorder %s245, %s246
      %p258 = scmp.eq.s32.totalorder %s32, 1
      %p259 = por %p257, %p258
      %p261 = scmp.ne.s32.totalorder %s246, %s260
      %p262 = scmp.eq.s32.totalorder %s32, 0
      %p263 = por %p261, %p262
      %s265 = sadd.s32 %s264, 1
      %p268 = scmp.eq.s32.totalorder %s26, 1
      %p269 = scmp.ne.s32.totalorder %s264, %s266
      %p270 = scmp.eq.s32.totalorder %s26, 0
      %p271 = por %p269, %p270
      %p272 = scmp.ne.s32.totalorder %s264, %s266
      %p273 = scmp.eq.s32.totalorder %s31, 1
      %p274 = por %p272, %p273
      %p275 = scmp.ne.s32.totalorder %s266, %s267
      %p276 = scmp.eq.s32.totalorder %s31, 0
      %p277 = por %p275, %p276
      %p278 = scmp.ne.s32.totalorder %s266, %s267
      %p279 = scmp.eq.s32.totalorder %s32, 1
      %p280 = por %p278, %p279
      %p282 = scmp.ne.s32.totalorder %s267, %s281
      %p283 = scmp.eq.s32.totalorder %s32, 0
      %p284 = por %p282, %p283
      %s286 = sadd.s32 %s285, 1
      %p289 = scmp.eq.s32.totalorder %s26, 1
      %p290 = scmp.ne.s32.totalorder %s285, %s287
      %p291 = scmp.eq.s32.totalorder %s26, 0
      %p292 = por %p290, %p291
      %p293 = scmp.ne.s32.totalorder %s285, %s287
      %p294 = scmp.eq.s32.totalorder %s31, 1
      %p295 = por %p293, %p294
      %p296 = scmp.ne.s32.totalorder %s287, %s288
      %p297 = scmp.eq.s32.totalorder %s31, 0
      %p298 = por %p296, %p297
      %p299 = scmp.ne.s32.totalorder %s287, %s288
      %p300 = scmp.eq.s32.totalorder %s32, 1
      %p301 = por %p299, %p300
      %p303 = scmp.ne.s32.totalorder %s288, %s302
      %p304 = scmp.eq.s32.totalorder %s32, 0
      %p305 = por %p303, %p304
      %s306 = ssub.s32 %s26, %s33
      %p307 = scmp.eq.s32.totalorder %s306, 0
      %s309 = sadd.s32 %s308, 1
      %s310 = scalar_select %p307, %s308, %s309
      %p313 = pneg %p307
      %p314 = scmp.eq.s32.totalorder %s26, 1
      %p315 = por %p313, %p314
      %p316 = scmp.ne.s32.totalorder %s308, %s311
      %p317 = scmp.eq.s32.totalorder %s26, 0
      %p318 = por %p316, %p317
      %p319 = scmp.ne.s32.totalorder %s308, %s311
      %p320 = scmp.eq.s32.totalorder %s31, 1
      %p321 = por %p319, %p320
      %p322 = scmp.ne.s32.totalorder %s311, %s312
      %p323 = scmp.eq.s32.totalorder %s31, 0
      %p324 = por %p322, %p323
      %p325 = scmp.ne.s32.totalorder %s311, %s312
      %p326 = scmp.eq.s32.totalorder %s32, 1
      %p327 = por %p325, %p326
      %p329 = scmp.ne.s32.totalorder %s312, %s328
      %p330 = scmp.eq.s32.totalorder %s32, 0
      %p331 = por %p329, %p330
      %s332 = ssub.s32 %s26, %s33
      %p333 = scmp.eq.s32.totalorder %s332, 0
      %s335 = sadd.s32 %s334, 1
      %s336 = scalar_select %p333, %s334, %s335
      %p339 = pneg %p333
      %p340 = scmp.eq.s32.totalorder %s26, 1
      %p341 = por %p339, %p340
      %p342 = scmp.ne.s32.totalorder %s334, %s337
      %p343 = scmp.eq.s32.totalorder %s26, 0
      %p344 = por %p342, %p343
      %p345 = scmp.ne.s32.totalorder %s334, %s337
      %p346 = scmp.eq.s32.totalorder %s31, 1
      %p347 = por %p345, %p346
      %p348 = scmp.ne.s32.totalorder %s337, %s338
      %p349 = scmp.eq.s32.totalorder %s31, 0
      %p350 = por %p348, %p349
      %p351 = scmp.ne.s32.totalorder %s337, %s338
      %p352 = scmp.eq.s32.totalorder %s32, 1
      %p353 = por %p351, %p352
      %p355 = scmp.ne.s32.totalorder %s338, %s354
      %p356 = scmp.eq.s32.totalorder %s32, 0
      %p357 = por %p355, %p356
      %s358 = ssub.s32 %s26, %s33
      %p359 = scmp.eq.s32.totalorder %s358, 0
      %s361 = sadd.s32 %s360, 1
      %s362 = scalar_select %p359, %s360, %s361
      %p365 = pneg %p359
      %p366 = scmp.eq.s32.totalorder %s26, 1
      %p367 = por %p365, %p366
      %p368 = scmp.ne.s32.totalorder %s360, %s363
      %p369 = scmp.eq.s32.totalorder %s26, 0
      %p370 = por %p368, %p369
      %p371 = scmp.ne.s32.totalorder %s360, %s363
      %p372 = scmp.eq.s32.totalorder %s31, 1
      %p373 = por %p371, %p372
      %p374 = scmp.ne.s32.totalorder %s363, %s364
      %p375 = scmp.eq.s32.totalorder %s31, 0
      %p376 = por %p374, %p375
      %p377 = scmp.ne.s32.totalorder %s363, %s364
      %p378 = scmp.eq.s32.totalorder %s32, 1
      %p379 = por %p377, %p378
      %p381 = scmp.ne.s32.totalorder %s364, %s380
      %p382 = scmp.eq.s32.totalorder %s32, 0
      %p383 = por %p381, %p382
      %s384 = ssub.s32 %s26, %s33
      %p385 = scmp.eq.s32.totalorder %s384, 0
      %s387 = sadd.s32 %s386, 1
      %s388 = scalar_select %p385, %s386, %s387
      %p391 = pneg %p385
      %p392 = scmp.eq.s32.totalorder %s26, 1
      %p393 = por %p391, %p392
      %p394 = scmp.ne.s32.totalorder %s386, %s389
      %p395 = scmp.eq.s32.totalorder %s26, 0
      %p396 = por %p394, %p395
      %p397 = scmp.ne.s32.totalorder %s386, %s389
      %p398 = scmp.eq.s32.totalorder %s31, 1
      %p399 = por %p397, %p398
      %p400 = scmp.ne.s32.totalorder %s389, %s390
      %p401 = scmp.eq.s32.totalorder %s31, 0
      %p402 = por %p400, %p401
      %p403 = scmp.ne.s32.totalorder %s389, %s390
      %p404 = scmp.eq.s32.totalorder %s32, 1
      %p405 = por %p403, %p404
      %p407 = scmp.ne.s32.totalorder %s390, %s406
      %p408 = scmp.eq.s32.totalorder %s32, 0
      %p409 = por %p407, %p408
      %s410 = ssub.s32 %s26, %s33
      %p411 = scmp.eq.s32.totalorder %s410, 0
      %s413 = sadd.s32 %s412, 1
      %s414 = scalar_select %p411, %s412, %s413
      %p417 = pneg %p411
      %p418 = scmp.eq.s32.totalorder %s26, 1
      %p419 = por %p417, %p418
      %p420 = scmp.ne.s32.totalorder %s412, %s415
      %p421 = scmp.eq.s32.totalorder %s26, 0
      %p422 = por %p420, %p421
      %p423 = scmp.ne.s32.totalorder %s412, %s415
      %p424 = scmp.eq.s32.totalorder %s31, 1
      %p425 = por %p423, %p424
      %p426 = scmp.ne.s32.totalorder %s415, %s416
      %p427 = scmp.eq.s32.totalorder %s31, 0
      %p428 = por %p426, %p427
      %p429 = scmp.ne.s32.totalorder %s415, %s416
      %p430 = scmp.eq.s32.totalorder %s32, 1
      %p431 = por %p429, %p430
      %p433 = scmp.ne.s32.totalorder %s416, %s432
      %p434 = scmp.eq.s32.totalorder %s32, 0
      %p435 = por %p433, %p434
      %p436 = scmp.le.s32.totalorder 1, %s26
      %p437 = scmp.lt.s32.totalorder %s26, 3
      %p438 = pnand %p436, %p437
      %p439 = pneg %p438
      // Predicated region
      $region9: #{tpu_custom_call.1} parent=5 // pred_check
        _
      $region10: #{tpu_custom_call.1} parent=5 // pred_check_branch
        %441 = sbr.rel (%p438) target = $region12
      $region11: #{tpu_custom_call.1} parent=5 // pred_region
        %s442 = ssub.s32 %s26, 1
        // Predicated region
        $region13: #{tpu_custom_call.1} parent=11 // pred_check
          %p443 = pneg %p151
        $region14: #{tpu_custom_call.1} parent=11 // pred_check_branch
          %445 = sbr.rel (%p443) target = $region16
        $region15: #{tpu_custom_call.1} parent=11 // pred_region
          _
        $region16: #{tpu_custom_call.1} parent=11 // pred_fallthru
          _
        // Predicated region
        $region17: #{tpu_custom_call.1} parent=11 // pred_check
          %p446 = pneg %p172
        $region18: #{tpu_custom_call.1} parent=11 // pred_check_branch
          %448 = sbr.rel (%p446) target = $region20
        $region19: #{tpu_custom_call.1} parent=11 // pred_region
          _
        $region20: #{tpu_custom_call.1} parent=11 // pred_fallthru
          _
        // Predicated region
        $region21: #{tpu_custom_call.1} parent=11 // pred_check
          %p449 = pneg %p193
        $region22: #{tpu_custom_call.1} parent=11 // pred_check_branch
          %451 = sbr.rel (%p449) target = $region24
        $region23: #{tpu_custom_call.1} parent=11 // pred_region
          _
        $region24: #{tpu_custom_call.1} parent=11 // pred_fallthru
          _
        // Predicated region
        $region25: #{tpu_custom_call.1} parent=11 // pred_check
          %p452 = pneg %p214
        $region26: #{tpu_custom_call.1} parent=11 // pred_check_branch
          %454 = sbr.rel (%p452) target = $region28
        $region27: #{tpu_custom_call.1} parent=11 // pred_region
          _
        $region28: #{tpu_custom_call.1} parent=11 // pred_fallthru
          _
        // Predicated region
        $region29: #{tpu_custom_call.1} parent=11 // pred_check
          %p455 = pneg %p235
        $region30: #{tpu_custom_call.1} parent=11 // pred_check_branch
          %457 = sbr.rel (%p455) target = $region32
        $region31: #{tpu_custom_call.1} parent=11 // pred_region
          _
        $region32: #{tpu_custom_call.1} parent=11 // pred_fallthru
          _
        // Predicated region
        $region33: #{tpu_custom_call.1} parent=11 // pred_check
          %p458 = pneg %p256
        $region34: #{tpu_custom_call.1} parent=11 // pred_check_branch
          %460 = sbr.rel (%p458) target = $region36
        $region35: #{tpu_custom_call.1} parent=11 // pred_region
          _
        $region36: #{tpu_custom_call.1} parent=11 // pred_fallthru
          _
        // Predicated region
        $region37: #{tpu_custom_call.1} parent=11 // pred_check
          %p461 = pneg %p277
        $region38: #{tpu_custom_call.1} parent=11 // pred_check_branch
          %463 = sbr.rel (%p461) target = $region40
        $region39: #{tpu_custom_call.1} parent=11 // pred_region
          _
        $region40: #{tpu_custom_call.1} parent=11 // pred_fallthru
          _
        // Predicated region
        $region41: #{tpu_custom_call.1} parent=11 // pred_check
          %p464 = pneg %p298
        $region42: #{tpu_custom_call.1} parent=11 // pred_check_branch
          %466 = sbr.rel (%p464) target = $region44
        $region43: #{tpu_custom_call.1} parent=11 // pred_region
          _
        $region44: #{tpu_custom_call.1} parent=11 // pred_fallthru
          _
      $region12: #{tpu_custom_call.1} parent=5 // pred_fallthru
        _
      %p467 = scmp.lt.s32.totalorder %s26, 2
      // Predicated region
      $region45: #{tpu_custom_call.1} parent=5 // pred_check
        %p468 = pneg %p467
      $region46: #{tpu_custom_call.1} parent=5 // pred_check_branch
        %470 = sbr.rel (%p468) target = $region48
      $region47: #{tpu_custom_call.1} parent=5 // pred_region
        // Predicated region
        $region49: #{tpu_custom_call.1} parent=47 // pred_check
          %p471 = pneg %p46
        $region50: #{tpu_custom_call.1} parent=47 // pred_check_branch
          %473 = sbr.rel (%p471) target = $region52
        $region51: #{tpu_custom_call.1} parent=47 // pred_region
          %s474 = smul.u32 4, %s26
          %p475 = scmp.lt.s32.totalorder %s474, 7
          %s476 = scalar_select %p475, %s474, 7
          %s477 = smul.addr %s476, 8
          %s478 = scalar_lea.vmem %s0, %s477
          %s479 = smul.u32 4, %s26
        $region52: #{tpu_custom_call.1} parent=47 // pred_fallthru
          _
        // Predicated region
        $region53: #{tpu_custom_call.1} parent=47 // pred_check
          %p480 = pneg %p72
        $region54: #{tpu_custom_call.1} parent=47 // pred_check_branch
          %482 = sbr.rel (%p480) target = $region56
        $region55: #{tpu_custom_call.1} parent=47 // pred_region
          %s483 = smul.u32 4, %s26
          %p484 = scmp.lt.s32.totalorder %s483, 7
          %s485 = scalar_select %p484, %s483, 7
          %s486 = smul.addr %s485, 8
          %s487 = scalar_lea.vmem %s1, %s486
          %s488 = smul.u32 4, %s26
        $region56: #{tpu_custom_call.1} parent=47 // pred_fallthru
          _
        // Predicated region
        $region57: #{tpu_custom_call.1} parent=47 // pred_check
          %p489 = pneg %p98
        $region58: #{tpu_custom_call.1} parent=47 // pred_check_branch
          %491 = sbr.rel (%p489) target = $region60
        $region59: #{tpu_custom_call.1} parent=47 // pred_region
          %s492 = smul.u32 4, %s26
          %p493 = scmp.lt.s32.totalorder %s492, 7
          %s494 = scalar_select %p493, %s492, 7
          %s495 = smul.addr %s494, 8
          %s496 = scalar_lea.vmem %s2, %s495
          %s497 = smul.u32 4, %s26
        $region60: #{tpu_custom_call.1} parent=47 // pred_fallthru
          _
        // Predicated region
        $region61: #{tpu_custom_call.1} parent=47 // pred_check
          %p498 = pneg %p124
        $region62: #{tpu_custom_call.1} parent=47 // pred_check_branch
          %500 = sbr.rel (%p498) target = $region64
        $region63: #{tpu_custom_call.1} parent=47 // pred_region
          %s501 = smul.u32 32, %s26
          %p502 = scmp.lt.s32.totalorder %s501, 63
          %s503 = scalar_select %p502, %s501, 63
          %s504 = smul.addr %s503, 2
          %s505 = smul.addr %s504, 8
          %s506 = scalar_lea.vmem %s3, %s505
          %s507 = smul.u32 32, %s26
        $region64: #{tpu_custom_call.1} parent=47 // pred_fallthru
          _
      $region48: #{tpu_custom_call.1} parent=5 // pred_fallthru
        _
      %p508 = scmp.le.s32.totalorder 1, %s26
      %p509 = scmp.lt.s32.totalorder %s26, 3
      %p510 = pnand %p508, %p509
      %p511 = pneg %p510
      // Predicated region
      $region65: #{tpu_custom_call.1} parent=5 // pred_check
        _
      $region66: #{tpu_custom_call.1} parent=5 // pred_check_branch
        %513 = sbr.rel (%p510) target = $region68
      $region67: #{tpu_custom_call.1} parent=5 // pred_region
        %s514 = ssub.s32 %s26, 1
        %s515 = smul.u32 4, %s31
        %p516 = scmp.lt.s32.totalorder %s515, 7
        %s517 = scalar_select %p516, %s515, 7
        %s518 = smul.addr %s517, 8
        %s519 = scalar_lea.vmem %s0, %s518
        %p520 = pneg %p52
        %p521 = pneg %p49
        %s522 = smul.u32 4, %s31
        %p523 = scmp.lt.s32.totalorder %s522, 7
        %s524 = scalar_select %p523, %s522, 7
        %s525 = smul.addr %s524, 8
        %s526 = scalar_lea.vmem %s1, %s525
        %p527 = pneg %p78
        %p528 = pneg %p75
        %s529 = smul.u32 4, %s31
        %p530 = scmp.lt.s32.totalorder %s529, 7
        %s531 = scalar_select %p530, %s529, 7
        %s532 = smul.addr %s531, 8
        %s533 = scalar_lea.vmem %s2, %s532
        %p534 = pneg %p104
        %p535 = pneg %p101
        %s536 = smul.u32 32, %s31
        %p537 = scmp.lt.s32.totalorder %s536, 63
        %s538 = scalar_select %p537, %s536, 63
        %s539 = smul.addr %s538, 2
        %s540 = smul.addr %s539, 8
        %s541 = scalar_lea.vmem %s3, %s540
        %p542 = pneg %p130
        %p543 = pneg %p127
        %p544 = pneg %p151
        %p545 = pneg %p148
        %p546 = pneg %p172
        %p547 = pneg %p169
        %p548 = pneg %p193
        %p549 = pneg %p190
        %p550 = pneg %p214
        %p551 = pneg %p211
        %p552 = pneg %p235
        %p553 = pneg %p232
        %p554 = pneg %p256
        %p555 = pneg %p253
        %p556 = pneg %p277
        %p557 = pneg %p274
        %p558 = pneg %p298
        %p559 = pneg %p295
        %p560 = pneg %p324
        %p561 = pneg %p321
        %s562 = smul.u32 4, %s31
        %p563 = scmp.lt.s32.totalorder %s562, 7
        %s564 = scalar_select %p563, %s562, 7
        %s565 = smul.addr %s564, 8
        %s566 = scalar_lea.vmem %s12, %s565
        %p567 = pneg %p350
        %p568 = pneg %p347
        %s569 = smul.u32 32, %s31
        %p570 = scmp.lt.s32.totalorder %s569, 63
        %s571 = scalar_select %p570, %s569, 63
        %s572 = smul.addr %s571, 2
        %s573 = smul.addr %s572, 8
        %s574 = scalar_lea.vmem %s13, %s573
        %p575 = pneg %p376
        %p576 = pneg %p373
        %s577 = smul.u32 32, %s31
        %p578 = scmp.lt.s32.totalorder %s577, 63
        %s579 = scalar_select %p578, %s577, 63
        %s580 = smul.addr %s579, 2
        %s581 = smul.addr %s580, 8
        %s582 = scalar_lea.vmem %s14, %s581
        %p583 = pneg %p402
        %p584 = pneg %p399
        %s585 = sand.u32 %s389, 1
        %s586 = scalar_lea.sflag [#allocation3], %s585
        %s587 = sand.u32 %s389, 1
        %s588 = smul.addr %s587, 32
        %s589 = scalar_lea.vmem [#allocation2], %s588
        %p590 = pneg %p428
        %p591 = pneg %p425
        %s592 = smul.u32 4, %s31
        %p593 = scmp.lt.s32.totalorder %s592, 7
        %s594 = scalar_select %p593, %s592, 7
        %s595 = smul.addr %s594, 8
        %s596 = scalar_lea.vmem %s16, %s595
        %s597 = smul.u32 4, %s31
        %p598 = scmp.lt.s32.totalorder %s597, 7
        %s599 = scalar_select %p598, %s597, 7
        %s600 = smul.addr %s599, 8
        %s601 = scalar_lea.vmem %s0, %s600
        %s602 = smul.u32 4, %s31
        %s603 = smul.u32 4, %s31
        %p604 = scmp.lt.s32.totalorder %s603, 7
        %s605 = scalar_select %p604, %s603, 7
        %s606 = smul.addr %s605, 8
        %s607 = scalar_lea.vmem %s1, %s606
        %s608 = smul.u32 4, %s31
        %s609 = smul.u32 4, %s31
        %p610 = scmp.lt.s32.totalorder %s609, 7
        %s611 = scalar_select %p610, %s609, 7
        %s612 = smul.addr %s611, 8
        %s613 = scalar_lea.vmem %s2, %s612
        %s614 = smul.u32 4, %s31
        %s615 = smul.u32 32, %s31
        %p616 = scmp.lt.s32.totalorder %s615, 63
        %s617 = scalar_select %p616, %s615, 63
        %s618 = smul.addr %s617, 2
        %s619 = smul.addr %s618, 8
        %s620 = scalar_lea.vmem %s3, %s619
        %s621 = smul.u32 32, %s31
        %s622 = smul.u32 4, %s31
        %p623 = scmp.lt.s32.totalorder %s622, 7
        %s624 = scalar_select %p623, %s622, 7
        %s625 = smul.addr %s624, 8
        %s626 = scalar_lea.vmem %s12, %s625
        %s627 = smul.u32 4, %s31
        %s628 = smul.u32 32, %s31
        %p629 = scmp.lt.s32.totalorder %s628, 63
        %s630 = scalar_select %p629, %s628, 63
        %s631 = smul.addr %s630, 2
        %s632 = smul.addr %s631, 8
        %s633 = scalar_lea.vmem %s13, %s632
        %s634 = smul.u32 32, %s31
        %s635 = smul.u32 32, %s31
        %p636 = scmp.lt.s32.totalorder %s635, 63
        %s637 = scalar_select %p636, %s635, 63
        %s638 = smul.addr %s637, 2
        %s639 = smul.addr %s638, 8
        %s640 = scalar_lea.vmem %s14, %s639
        %s641 = smul.u32 32, %s31
        %s642 = smul.u32 4, %s31
        %s643 = smul.u32 4, %s31
        %p644 = scmp.lt.s32.totalorder %s643, 7
        %s645 = scalar_select %p644, %s643, 7
        %s646 = smul.addr %s645, 8
        %s647 = scalar_lea.vmem %s16, %s646
        %s648 = smul.u32 4, %s31
        %v650 = vld [vmem:[%s601] sm:$0xff]
        %v651 = vld [vmem:[%s601 + $0x8] sm:$0xff]
        %v652 = vld [vmem:[%s601 + $0x10] sm:$0xff]
        %v653 = vld [vmem:[%s601 + $0x18] sm:$0xff]
        %v654 = vld [vmem:[%s607] sm:$0xff]
        %v655 = vld [vmem:[%s607 + $0x8] sm:$0xff]
        %v656 = vld [vmem:[%s607 + $0x10] sm:$0xff]
        %v657 = vld [vmem:[%s607 + $0x18] sm:$0xff]
        %v658 = vld [vmem:[%s613] sm:$0xff]
        %v659 = vld [vmem:[%s613 + $0x8] sm:$0xff]
        %v660 = vld [vmem:[%s613 + $0x10] sm:$0xff]
        %v661 = vld [vmem:[%s613 + $0x18] sm:$0xff]
        %v662 = vld [vmem:[%s620] sm:$0xff]
        %v663 = vld [vmem:[%s620 + $0x8] sm:$0xff]
        %v664 = vld [vmem:[%s620 + $0x10] sm:$0xff]
        %v665 = vld [vmem:[%s620 + $0x18] sm:$0xff]
        %v666 = vld [vmem:[%s620 + $0x20] sm:$0xff]
        %v667 = vld [vmem:[%s620 + $0x28] sm:$0xff]
        %v668 = vld [vmem:[%s620 + $0x30] sm:$0xff]
        %v669 = vld [vmem:[%s620 + $0x38] sm:$0xff]
        %v670 = vld [vmem:[%s620 + $0x40] sm:$0xff]
        %v671 = vld [vmem:[%s620 + $0x48] sm:$0xff]
        %v672 = vld [vmem:[%s620 + $0x50] sm:$0xff]
        %v673 = vld [vmem:[%s620 + $0x58] sm:$0xff]
        %v674 = vld [vmem:[%s620 + $0x60] sm:$0xff]
        %v675 = vld [vmem:[%s620 + $0x68] sm:$0xff]
        %v676 = vld [vmem:[%s620 + $0x70] sm:$0xff]
        %v677 = vld [vmem:[%s620 + $0x78] sm:$0xff]
        %v678 = vld [vmem:[%s620 + $0x80] sm:$0xff]
        %v679 = vld [vmem:[%s620 + $0x88] sm:$0xff]
        %v680 = vld [vmem:[%s620 + $0x90] sm:$0xff]
        %v681 = vld [vmem:[%s620 + $0x98] sm:$0xff]
        %v682 = vld [vmem:[%s620 + $0xa0] sm:$0xff]
        %v683 = vld [vmem:[%s620 + $0xa8] sm:$0xff]
        %v684 = vld [vmem:[%s620 + $0xb0] sm:$0xff]
        %v685 = vld [vmem:[%s620 + $0xb8] sm:$0xff]
        %v686 = vld [vmem:[%s620 + $0xc0] sm:$0xff]
        %v687 = vld [vmem:[%s620 + $0xc8] sm:$0xff]
        %v688 = vld [vmem:[%s620 + $0xd0] sm:$0xff]
        %v689 = vld [vmem:[%s620 + $0xd8] sm:$0xff]
        %v690 = vld [vmem:[%s620 + $0xe0] sm:$0xff]
        %v691 = vld [vmem:[%s620 + $0xe8] sm:$0xff]
        %v692 = vld [vmem:[%s620 + $0xf0] sm:$0xff]
        %v693 = vld [vmem:[%s620 + $0xf8] sm:$0xff]
        %v694 = vld [vmem:[%s620 + $0x100] sm:$0xff]
        %v695 = vld [vmem:[%s620 + $0x108] sm:$0xff]
        %v696 = vld [vmem:[%s620 + $0x110] sm:$0xff]
        %v697 = vld [vmem:[%s620 + $0x118] sm:$0xff]
        %v698 = vld [vmem:[%s620 + $0x120] sm:$0xff]
        %v699 = vld [vmem:[%s620 + $0x128] sm:$0xff]
        %v700 = vld [vmem:[%s620 + $0x130] sm:$0xff]
        %v701 = vld [vmem:[%s620 + $0x138] sm:$0xff]
        %v702 = vld [vmem:[%s620 + $0x140] sm:$0xff]
        %v703 = vld [vmem:[%s620 + $0x148] sm:$0xff]
        %v704 = vld [vmem:[%s620 + $0x150] sm:$0xff]
        %v705 = vld [vmem:[%s620 + $0x158] sm:$0xff]
        %v706 = vld [vmem:[%s620 + $0x160] sm:$0xff]
        %v707 = vld [vmem:[%s620 + $0x168] sm:$0xff]
        %v708 = vld [vmem:[%s620 + $0x170] sm:$0xff]
        %v709 = vld [vmem:[%s620 + $0x178] sm:$0xff]
        %v710 = vld [vmem:[%s620 + $0x180] sm:$0xff]
        %v711 = vld [vmem:[%s620 + $0x188] sm:$0xff]
        %v712 = vld [vmem:[%s620 + $0x190] sm:$0xff]
        %v713 = vld [vmem:[%s620 + $0x198] sm:$0xff]
        %v714 = vld [vmem:[%s620 + $0x1a0] sm:$0xff]
        %v715 = vld [vmem:[%s620 + $0x1a8] sm:$0xff]
        %v716 = vld [vmem:[%s620 + $0x1b0] sm:$0xff]
        %v717 = vld [vmem:[%s620 + $0x1b8] sm:$0xff]
        %v718 = vld [vmem:[%s620 + $0x1c0] sm:$0xff]
        %v719 = vld [vmem:[%s620 + $0x1c8] sm:$0xff]
        %v720 = vld [vmem:[%s620 + $0x1d0] sm:$0xff]
        %v721 = vld [vmem:[%s620 + $0x1d8] sm:$0xff]
        %v722 = vld [vmem:[%s620 + $0x1e0] sm:$0xff]
        %v723 = vld [vmem:[%s620 + $0x1e8] sm:$0xff]
        %v724 = vld [vmem:[%s620 + $0x1f0] sm:$0xff]
        %v725 = vld [vmem:[%s620 + $0x1f8] sm:$0xff]
        %v726 = vpack.c.bf16 %v651, %v650
        %v727 = vpack.c.bf16 %v653, %v652
        %v728 = vld [vmem:[%s4] sm:$0xf]
        %v729 = vld [vmem:[%s4 + $0x4] sm:$0xf]
        %v730 = vld [vmem:[%s5] sm:$0x1]
        %v732 = vlaneseq
        %v733 = vshrl.u32 %v732, 7
        %v734 = vsub.s32 0, %v733
        %v735 = vrot.slane %v730, %v734
        %v739 = vunpack.c.l.b16 %v728
        %v740 = vunpack.c.l.b16 %v729
        %v741 = vpack.c.b16 %v740, %v739
        %vm743 = vcmask 130048
        %v745 = vsel %vm743, %v726, 0
        %v748 = vsel %vm743, %v727, 0
        %750 = vmatprep.subr.bf16.mxu0 0
        %751 = vmatpush1.bf16.msra.mxu0 %v741
        %752 = vmatprep.subr.bf16.mxu0 0
        %753 = vmatpush1.bf16.msra.mxu0 0
        %754 = vmatprep.subr.bf16.mxu0 0
        %755 = vmatpush1.bf16.msra.mxu0 0
        %756 = vmatprep.subr.bf16.mxu0 0
        %757 = vmatpush1.bf16.msra.mxu0 0
        %758 = vmatprep.subr.bf16.mxu0 0
        %759 = vmatpush1.bf16.msra.mxu0 0
        %760 = vmatprep.subr.bf16.mxu0 0
        %761 = vmatpush1.bf16.msra.mxu0 0
        %762 = vmatprep.subr.bf16.mxu0 0
        %763 = vmatpush1.bf16.msra.mxu0 0
        %764 = vmatprep.subr.bf16.mxu0 0
        %765 = vmatpush1.bf16.msra.mxu0 0
        %766 = vmatprep.subr.bf16.mxu0 0
        %767 = vmatpush1.bf16.msra.mxu0 0
        %768 = vmatprep.subr.bf16.mxu0 0
        %769 = vmatpush1.bf16.msra.mxu0 0
        %770 = vmatprep.subr.bf16.mxu0 0
        %771 = vmatpush1.bf16.msra.mxu0 0
        %772 = vmatprep.subr.bf16.mxu0 0
        %773 = vmatpush1.bf16.msra.mxu0 0
        %774 = vmatprep.subr.bf16.mxu0 0
        %775 = vmatpush1.bf16.msra.mxu0 0
        %776 = vmatprep.subr.bf16.mxu0 0
        %777 = vmatpush1.bf16.msra.mxu0 0
        %778 = vmatprep.subr.bf16.mxu0 0
        %779 = vmatpush1.bf16.msra.mxu0 0
        %780 = vmatprep.subr.bf16.mxu0 0
        %781 = vmatpush1.bf16.msra.mxu0 0
        %782 = vmatprep.mubr.bf16.mxu0 0
        %783 = vmatmul.mubr.bf16.gmra.mrb[0].mxu0 %v745
        %v784 = vpop.f32.mrb[0].mxu0
        %v785 = vadd.f32 %v735, %v784
        %v786 = vpop.f32.mrb[0].mxu0
        %v787 = vpop.f32.mrb[0].mxu0
        %v788 = vadd.f32 %v735, %v787
        %v789 = vpop.f32.mrb[0].mxu0
        %790 = vmatprep.mubr.bf16.mxu0 0
        %791 = vmatmul.mubr.bf16.gmra.mrb[0].mxu0 %v748
        %v792 = vpop.f32.mrb[0].mxu0
        %v793 = vadd.f32 %v735, %v792
        %v794 = vpop.f32.mrb[0].mxu0
        %v795 = vpop.f32.mrb[0].mxu0
        %v796 = vadd.f32 %v735, %v795
        %v797 = vpop.f32.mrb[0].mxu0
        %798 = vdwg.mxu0
        %v799 = vmax.f32 %v785, 0.0
        %v800 = vmax.f32 %v788, 0.0
        %v801 = vmax.f32 %v793, 0.0
        %v802 = vmax.f32 %v796, 0.0
        %v803 = vpack.c.bf16 %v800, %v799
        %v804 = vpack.c.bf16 %v802, %v801
        %v805 = vld [vmem:[%s6] sm:$0xf]
        %v806 = vld [vmem:[%s6 + $0x4] sm:$0xf]
        %v807 = vld [vmem:[%s6 + $0x8] sm:$0xf]
        %v808 = vld [vmem:[%s6 + $0xc] sm:$0xf]
        %v809 = vld [vmem:[%s7] sm:$0x1]
        %v811 = vlaneseq
        %v812 = vshrl.u32 %v811, 7
        %v813 = vsub.s32 0, %v812
        %v814 = vrot.slane %v809, %v813
        %v820 = vunpack.c.l.b16 %v805
        %v821 = vunpack.c.l.b16 %v806
        %v822 = vunpack.c.l.b16 %v807
        %v823 = vunpack.c.l.b16 %v808
        %v824 = vpack.c.b16 %v821, %v820
        %v825 = vpack.c.b16 %v823, %v822
        %vm828 = vcmask 261120
        %v830 = vsel %vm828, %v803, 0
        %v833 = vsel %vm828, %v804, 0
        %835 = vmatprep.subr.bf16.mxu0 0
        %836 = vmatpush1.bf16.msra.mxu0 %v824
        %837 = vmatprep.subr.bf16.mxu0 0
        %838 = vmatpush1.bf16.msra.mxu0 %v825
        %839 = vmatprep.subr.bf16.mxu0 0
        %840 = vmatpush1.bf16.msra.mxu0 0
        %841 = vmatprep.subr.bf16.mxu0 0
        %842 = vmatpush1.bf16.msra.mxu0 0
        %843 = vmatprep.subr.bf16.mxu0 0
        %844 = vmatpush1.bf16.msra.mxu0 0
        %845 = vmatprep.subr.bf16.mxu0 0
        %846 = vmatpush1.bf16.msra.mxu0 0
        %847 = vmatprep.subr.bf16.mxu0 0
        %848 = vmatpush1.bf16.msra.mxu0 0
        %849 = vmatprep.subr.bf16.mxu0 0
        %850 = vmatpush1.bf16.msra.mxu0 0
        %851 = vmatprep.subr.bf16.mxu0 0
        %852 = vmatpush1.bf16.msra.mxu0 0
        %853 = vmatprep.subr.bf16.mxu0 0
        %854 = vmatpush1.bf16.msra.mxu0 0
        %855 = vmatprep.subr.bf16.mxu0 0
        %856 = vmatpush1.bf16.msra.mxu0 0
        %857 = vmatprep.subr.bf16.mxu0 0
        %858 = vmatpush1.bf16.msra.mxu0 0
        %859 = vmatprep.subr.bf16.mxu0 0
        %860 = vmatpush1.bf16.msra.mxu0 0
        %861 = vmatprep.subr.bf16.mxu0 0
        %862 = vmatpush1.bf16.msra.mxu0 0
        %863 = vmatprep.subr.bf16.mxu0 0
        %864 = vmatpush1.bf16.msra.mxu0 0
        %865 = vmatprep.subr.bf16.mxu0 0
        %866 = vmatpush1.bf16.msra.mxu0 0
        %867 = vmatprep.mubr.bf16.mxu0 0
        %868 = vmatmul.mubr.bf16.gmra.mrb[0].mxu0 %v830
        %v869 = vpop.f32.mrb[0].mxu0
        %v870 = vadd.f32 %v814, %v869
        %v871 = vpop.f32.mrb[0].mxu0
        %v872 = vpop.f32.mrb[0].mxu0
        %v873 = vadd.f32 %v814, %v872
        %v874 = vpop.f32.mrb[0].mxu0
        %875 = vmatprep.mubr.bf16.mxu0 0
        %876 = vmatmul.mubr.bf16.gmra.mrb[0].mxu0 %v833
        %v877 = vpop.f32.mrb[0].mxu0
        %v878 = vadd.f32 %v814, %v877
        %v879 = vpop.f32.mrb[0].mxu0
        %v880 = vpop.f32.mrb[0].mxu0
        %v881 = vadd.f32 %v814, %v880
        %v882 = vpop.f32.mrb[0].mxu0
        %883 = vdwg.mxu0
        %v884 = vmax.f32 %v870, 0.0
        %v885 = vmax.f32 %v873, 0.0
        %v886 = vmax.f32 %v878, 0.0
        %v887 = vmax.f32 %v881, 0.0
        %v888 = vpack.c.bf16 %v885, %v884
        %v889 = vpack.c.bf16 %v887, %v886
        %v890 = vld [vmem:[%s8] sm:$0xff]
        %v891 = vld [vmem:[%s8 + $0x8] sm:$0xff]
        %v892 = vld [vmem:[%s8 + $0x10] sm:$0xff]
        %v893 = vld [vmem:[%s8 + $0x18] sm:$0xff]
        %v894 = vld [vmem:[%s9] sm:$0x3]
        %v896 = vlaneseq
        %v897 = vshrl.u32 %v896, 7
        %v898 = vsub.s32 0, %v897
        %v899 = vrot.slane %v894, %v898
        %v900 = vlaneseq
        %v901 = vshrl.u32 %v900, 7
        %v902 = vsub.s32 1, %v901
        %v903 = vrot.slane %v894, %v902
        %v910 = vunpack.c.l.b16 %v890
        %v911 = vunpack.c.h.b16 %v890
        %v912 = vunpack.c.l.b16 %v891
        %v913 = vunpack.c.h.b16 %v891
        %v914 = vunpack.c.l.b16 %v892
        %v915 = vunpack.c.h.b16 %v892
        %v916 = vunpack.c.l.b16 %v893
        %v917 = vunpack.c.h.b16 %v893
        %v918 = vpack.c.b16 %v912, %v910
        %v919 = vpack.c.b16 %v913, %v911
        %v920 = vpack.c.b16 %v916, %v914
        %v921 = vpack.c.b16 %v917, %v915
        %v927 = vsel %vm828, %v888, 0
        %v930 = vsel %vm828, %v889, 0
        %932 = vmatprep.subr.bf16.mxu0 %v919
        %933 = vmatpush1.bf16.msra.mxu0 %v918
        %934 = vmatprep.subr.bf16.mxu0 %v921
        %935 = vmatpush1.bf16.msra.mxu0 %v920
        %936 = vmatprep.subr.bf16.mxu0 0
        %937 = vmatpush1.bf16.msra.mxu0 0
        %938 = vmatprep.subr.bf16.mxu0 0
        %939 = vmatpush1.bf16.msra.mxu0 0
        %940 = vmatprep.subr.bf16.mxu0 0
        %941 = vmatpush1.bf16.msra.mxu0 0
        %942 = vmatprep.subr.bf16.mxu0 0
        %943 = vmatpush1.bf16.msra.mxu0 0
        %944 = vmatprep.subr.bf16.mxu0 0
        %945 = vmatpush1.bf16.msra.mxu0 0
        %946 = vmatprep.subr.bf16.mxu0 0
        %947 = vmatpush1.bf16.msra.mxu0 0
        %948 = vmatprep.subr.bf16.mxu0 0
        %949 = vmatpush1.bf16.msra.mxu0 0
        %950 = vmatprep.subr.bf16.mxu0 0
        %951 = vmatpush1.bf16.msra.mxu0 0
        %952 = vmatprep.subr.bf16.mxu0 0
        %953 = vmatpush1.bf16.msra.mxu0 0
        %954 = vmatprep.subr.bf16.mxu0 0
        %955 = vmatpush1.bf16.msra.mxu0 0
        %956 = vmatprep.subr.bf16.mxu0 0
        %957 = vmatpush1.bf16.msra.mxu0 0
        %958 = vmatprep.subr.bf16.mxu0 0
        %959 = vmatpush1.bf16.msra.mxu0 0
        %960 = vmatprep.subr.bf16.mxu0 0
        %961 = vmatpush1.bf16.msra.mxu0 0
        %962 = vmatprep.subr.bf16.mxu0 0
        %963 = vmatpush1.bf16.msra.mxu0 0
        %964 = vmatprep.mubr.bf16.mxu0 0
        %965 = vmatmul.mubr.bf16.gmra.mrb[0].mxu0 %v927
        %v966 = vpop.f32.mrb[0].mxu0
        %v967 = vadd.f32 %v899, %v966
        %v968 = vpop.f32.mrb[0].mxu0
        %v969 = vadd.f32 %v903, %v968
        %v970 = vpop.f32.mrb[0].mxu0
        %v971 = vadd.f32 %v899, %v970
        %v972 = vpop.f32.mrb[0].mxu0
        %v973 = vadd.f32 %v903, %v972
        %974 = vmatprep.mubr.bf16.mxu0 0
        %975 = vmatmul.mubr.bf16.gmra.mrb[0].mxu0 %v930
        %v976 = vpop.f32.mrb[0].mxu0
        %v977 = vadd.f32 %v899, %v976
        %v978 = vpop.f32.mrb[0].mxu0
        %v979 = vadd.f32 %v903, %v978
        %v980 = vpop.f32.mrb[0].mxu0
        %v981 = vadd.f32 %v899, %v980
        %v982 = vpop.f32.mrb[0].mxu0
        %v983 = vadd.f32 %v903, %v982
        %984 = vdwg.mxu0
        %v985 = vtanh.pop %v969
        %v986 = vtanh.pop %v973
        %v987 = vtanh.pop %v979
        %v988 = vtanh.pop %v983
        %v989 = vand.u32 2147483647, %v969
        %v990 = vand.u32 2147483647, %v973
        %v991 = vand.u32 2147483647, %v979
        %v992 = vand.u32 2147483647, %v983
        %v993 = vsub.f32 0.0, %v989
        %v994 = vsub.f32 0.0, %v990
        %v995 = vsub.f32 0.0, %v991
        %v996 = vsub.f32 0.0, %v992
        %v997 = vmul.f32 %v993, 1.442695
        %v998 = vpow.pop %v997
        %v999 = vmul.f32 %v994, 1.442695
        %v1000 = vpow.pop %v999
        %v1001 = vmul.f32 %v995, 1.442695
        %v1002 = vpow.pop %v1001
        %v1003 = vmul.f32 %v996, 1.442695
        %v1004 = vpow.pop %v1003
        %v1005 = vadd.f32 %v998, 1.0
        %v1006 = vlog2.pop %v1005
        %v1007 = vmul.f32 %v1006, 0.6931472
        %v1008 = vmul.f32 -0.5, %v998
        %v1009 = vadd.f32 %v1008, 1.0
        %v1010 = vmul.f32 %v1009, %v998
        %v1011 = vand.u32 2147483647, %v998
        %vm1012 = vcmp.lt.f32.partialorder %v1011, 0.0004427343
        %v1013 = vsel %vm1012, %v1010, %v1007
        %v1014 = vadd.f32 %v1000, 1.0
        %v1015 = vlog2.pop %v1014
        %v1016 = vmul.f32 %v1015, 0.6931472
        %v1017 = vmul.f32 -0.5, %v1000
        %v1018 = vadd.f32 %v1017, 1.0
        %v1019 = vmul.f32 %v1018, %v1000
        %v1020 = vand.u32 2147483647, %v1000
        %vm1021 = vcmp.lt.f32.partialorder %v1020, 0.0004427343
        %v1022 = vsel %vm1021, %v1019, %v1016
        %v1023 = vadd.f32 %v1002, 1.0
        %v1024 = vlog2.pop %v1023
        %v1025 = vmul.f32 %v1024, 0.6931472
        %v1026 = vmul.f32 -0.5, %v1002
        %v1027 = vadd.f32 %v1026, 1.0
        %v1028 = vmul.f32 %v1027, %v1002
        %v1029 = vand.u32 2147483647, %v1002
        %vm1030 = vcmp.lt.f32.partialorder %v1029, 0.0004427343
        %v1031 = vsel %vm1030, %v1028, %v1025
        %v1032 = vadd.f32 %v1004, 1.0
        %v1033 = vlog2.pop %v1032
        %v1034 = vmul.f32 %v1033, 0.6931472
        %v1035 = vmul.f32 -0.5, %v1004
        %v1036 = vadd.f32 %v1035, 1.0
        %v1037 = vmul.f32 %v1036, %v1004
        %v1038 = vand.u32 2147483647, %v1004
        %vm1039 = vcmp.lt.f32.partialorder %v1038, 0.0004427343
        %v1040 = vsel %vm1039, %v1037, %v1034
        %v1041 = vmax.f32 %v969, 0.0
        %v1042 = vmax.f32 %v973, 0.0
        %v1043 = vmax.f32 %v979, 0.0
        %v1044 = vmax.f32 %v983, 0.0
        %v1045 = vadd.f32 %v1013, %v1041
        %v1046 = vadd.f32 %v1022, %v1042
        %v1047 = vadd.f32 %v1031, %v1043
        %v1048 = vadd.f32 %v1040, %v1044
        %v1049 = vadd.f32 %v1045, 0.001
        %v1050 = vadd.f32 %v1046, 0.001
        %v1051 = vadd.f32 %v1047, 0.001
        %v1052 = vadd.f32 %v1048, 0.001
        %v1053 = vld [vmem:[%s10] sm:$0xff]
        %vm1054 = vcmask 64512
        %v1056 = vsel %vm1054, %v654, 0
        %v1059 = vsel %vm1054, %v655, 0
        %v1062 = vsel %vm1054, %v656, 0
        %v1065 = vsel %vm1054, %v657, 0
        %1067 = vmatprep.subr.mxu0 0.0
        %1068 = vmatpush1.msra.mxu0 %v1053
        %1069 = vmatprep.subr.mxu0 0.0
        %1070 = vmatpush1.msra.mxu0 0.0
        %1071 = vmatprep.subr.mxu0 0.0
        %1072 = vmatpush1.msra.mxu0 0.0
        %1073 = vmatprep.subr.mxu0 0.0
        %1074 = vmatpush1.msra.mxu0 0.0
        %1075 = vmatprep.subr.mxu0 0.0
        %1076 = vmatpush1.msra.mxu0 0.0
        %1077 = vmatprep.subr.mxu0 0.0
        %1078 = vmatpush1.msra.mxu0 0.0
        %1079 = vmatprep.subr.mxu0 0.0
        %1080 = vmatpush1.msra.mxu0 0.0
        %1081 = vmatprep.subr.mxu0 0.0
        %1082 = vmatpush1.msra.mxu0 0.0
        %1083 = vmatprep.subr.mxu0 0.0
        %1084 = vmatpush1.msra.mxu0 0.0
        %1085 = vmatprep.subr.mxu0 0.0
        %1086 = vmatpush1.msra.mxu0 0.0
        %1087 = vmatprep.subr.mxu0 0.0
        %1088 = vmatpush1.msra.mxu0 0.0
        %1089 = vmatprep.subr.mxu0 0.0
        %1090 = vmatpush1.msra.mxu0 0.0
        %1091 = vmatprep.subr.mxu0 0.0
        %1092 = vmatpush1.msra.mxu0 0.0
        %1093 = vmatprep.subr.mxu0 0.0
        %1094 = vmatpush1.msra.mxu0 0.0
        %1095 = vmatprep.subr.mxu0 0.0
        %1096 = vmatpush1.msra.mxu0 0.0
        %1097 = vmatprep.subr.mxu0 0.0
        %1098 = vmatpush1.msra.mxu0 0.0
        %1099 = vmatprep.subr.mxu0 0.0
        %1100 = vmatpush1.msra.mxu0 0.0
        %1101 = vmatprep.subr.mxu0 0.0
        %1102 = vmatpush1.msra.mxu0 0.0
        %1103 = vmatprep.subr.mxu0 0.0
        %1104 = vmatpush1.msra.mxu0 0.0
        %1105 = vmatprep.subr.mxu0 0.0
        %1106 = vmatpush1.msra.mxu0 0.0
        %1107 = vmatprep.subr.mxu0 0.0
        %1108 = vmatpush1.msra.mxu0 0.0
        %1109 = vmatprep.subr.mxu0 0.0
        %1110 = vmatpush1.msra.mxu0 0.0
        %1111 = vmatprep.subr.mxu0 0.0
        %1112 = vmatpush1.msra.mxu0 0.0
        %1113 = vmatprep.subr.mxu0 0.0
        %1114 = vmatpush1.msra.mxu0 0.0
        %1115 = vmatprep.subr.mxu0 0.0
        %1116 = vmatpush1.msra.mxu0 0.0
        %1117 = vmatprep.subr.mxu0 0.0
        %1118 = vmatpush1.msra.mxu0 0.0
        %1119 = vmatprep.subr.mxu0 0.0
        %1120 = vmatpush1.msra.mxu0 0.0
        %1121 = vmatprep.subr.mxu0 0.0
        %1122 = vmatpush1.msra.mxu0 0.0
        %1123 = vmatprep.subr.mxu0 0.0
        %1124 = vmatpush1.msra.mxu0 0.0
        %1125 = vmatprep.subr.mxu0 0.0
        %1126 = vmatpush1.msra.mxu0 0.0
        %1127 = vmatprep.subr.mxu0 0.0
        %1128 = vmatpush1.msra.mxu0 0.0
        %1129 = vmatprep.subr.mxu0 0.0
        %1130 = vmatpush1.msra.mxu0 0.0
        %1131 = vmatprep.mubr.f32.mxu0 0.0
        %1132 = vmatmul.mubr.f32.gmra.mrb[0].mxu0 %v1056
        %v1133 = vpop.f32.mrb[0].mxu0
        %v1134 = vadd.f32 0.0, %v1133
        %v1135 = vpop.f32.mrb[0].mxu0
        %1136 = vmatprep.mubr.f32.mxu0 0.0
        %1137 = vmatmul.mubr.f32.gmra.mrb[0].mxu0 %v1059
        %v1138 = vpop.f32.mrb[0].mxu0
        %v1139 = vadd.f32 0.0, %v1138
        %v1140 = vpop.f32.mrb[0].mxu0
        %1141 = vmatprep.mubr.f32.mxu0 0.0
        %1142 = vmatmul.mubr.f32.gmra.mrb[0].mxu0 %v1062
        %v1143 = vpop.f32.mrb[0].mxu0
        %v1144 = vadd.f32 0.0, %v1143
        %v1145 = vpop.f32.mrb[0].mxu0
        %1146 = vmatprep.mubr.f32.mxu0 0.0
        %1147 = vmatmul.mubr.f32.gmra.mrb[0].mxu0 %v1065
        %v1148 = vpop.f32.mrb[0].mxu0
        %v1149 = vadd.f32 0.0, %v1148
        %v1150 = vpop.f32.mrb[0].mxu0
        %1151 = vdwg.mxu0
        %v1152 = vmul.f32 %v967, %v1134
        %v1153 = vmul.f32 %v971, %v1139
        %v1154 = vmul.f32 %v977, %v1144
        %v1155 = vmul.f32 %v981, %v1149
        %v1156 = vld [vmem:[%s11] sm:$0xff]
        %v1157 = vld [vmem:[%s11 + $0x8] sm:$0xff]
        %v1158 = vld [vmem:[%s11 + $0x10] sm:$0xff]
        %v1159 = vld [vmem:[%s11 + $0x18] sm:$0xff]
        %v1160 = vld [vmem:[%s11 + $0x20] sm:$0xff]
        %v1161 = vld [vmem:[%s11 + $0x28] sm:$0xff]
        %v1162 = vld [vmem:[%s11 + $0x30] sm:$0xff]
        %v1163 = vld [vmem:[%s11 + $0x38] sm:$0xff]
        %v1164 = vld [vmem:[%s11 + $0x40] sm:$0xff]
        %v1165 = vld [vmem:[%s11 + $0x48] sm:$0xff]
        %v1166 = vld [vmem:[%s11 + $0x50] sm:$0xff]
        %v1167 = vld [vmem:[%s11 + $0x58] sm:$0xff]
        %v1168 = vld [vmem:[%s11 + $0x60] sm:$0xff]
        %v1169 = vld [vmem:[%s11 + $0x68] sm:$0xff]
        %v1170 = vld [vmem:[%s11 + $0x70] sm:$0xff]
        %v1171 = vld [vmem:[%s11 + $0x78] sm:$0xff]
        %1172 = vmatprep.subr.mxu0 0.0
        %1173 = vmatpush1.msra.mxu0 %v1156
        %1174 = vmatprep.subr.mxu0 0.0
        %1175 = vmatpush1.msra.mxu0 %v1157
        %1176 = vmatprep.subr.mxu0 0.0
        %1177 = vmatpush1.msra.mxu0 %v1158
        %1178 = vmatprep.subr.mxu0 0.0
        %1179 = vmatpush1.msra.mxu0 %v1159
        %1180 = vmatprep.subr.mxu0 0.0
        %1181 = vmatpush1.msra.mxu0 %v1160
        %1182 = vmatprep.subr.mxu0 0.0
        %1183 = vmatpush1.msra.mxu0 %v1161
        %1184 = vmatprep.subr.mxu0 0.0
        %1185 = vmatpush1.msra.mxu0 %v1162
        %1186 = vmatprep.subr.mxu0 0.0
        %1187 = vmatpush1.msra.mxu0 %v1163
        %1188 = vmatprep.subr.mxu0 0.0
        %1189 = vmatpush1.msra.mxu0 %v1164
        %1190 = vmatprep.subr.mxu0 0.0
        %1191 = vmatpush1.msra.mxu0 %v1165
        %1192 = vmatprep.subr.mxu0 0.0
        %1193 = vmatpush1.msra.mxu0 %v1166
        %1194 = vmatprep.subr.mxu0 0.0
        %1195 = vmatpush1.msra.mxu0 %v1167
        %1196 = vmatprep.subr.mxu0 0.0
        %1197 = vmatpush1.msra.mxu0 %v1168
        %1198 = vmatprep.subr.mxu0 0.0
        %1199 = vmatpush1.msra.mxu0 %v1169
        %1200 = vmatprep.subr.mxu0 0.0
        %1201 = vmatpush1.msra.mxu0 %v1170
        %1202 = vmatprep.subr.mxu0 0.0
        %1203 = vmatpush1.msra.mxu0 %v1171
        %1204 = vmatprep.subr.mxu0 0.0
        %1205 = vmatpush1.msra.mxu0 0.0
        %1206 = vmatprep.subr.mxu0 0.0
        %1207 = vmatpush1.msra.mxu0 0.0
        %1208 = vmatprep.subr.mxu0 0.0
        %1209 = vmatpush1.msra.mxu0 0.0
        %1210 = vmatprep.subr.mxu0 0.0
        %1211 = vmatpush1.msra.mxu0 0.0
        %1212 = vmatprep.subr.mxu0 0.0
        %1213 = vmatpush1.msra.mxu0 0.0
        %1214 = vmatprep.subr.mxu0 0.0
        %1215 = vmatpush1.msra.mxu0 0.0
        %1216 = vmatprep.subr.mxu0 0.0
        %1217 = vmatpush1.msra.mxu0 0.0
        %1218 = vmatprep.subr.mxu0 0.0
        %1219 = vmatpush1.msra.mxu0 0.0
        %1220 = vmatprep.subr.mxu0 0.0
        %1221 = vmatpush1.msra.mxu0 0.0
        %1222 = vmatprep.subr.mxu0 0.0
        %1223 = vmatpush1.msra.mxu0 0.0
        %1224 = vmatprep.subr.mxu0 0.0
        %1225 = vmatpush1.msra.mxu0 0.0
        %1226 = vmatprep.subr.mxu0 0.0
        %1227 = vmatpush1.msra.mxu0 0.0
        %1228 = vmatprep.subr.mxu0 0.0
        %1229 = vmatpush1.msra.mxu0 0.0
        %1230 = vmatprep.subr.mxu0 0.0
        %1231 = vmatpush1.msra.mxu0 0.0
        %1232 = vmatprep.subr.mxu0 0.0
        %1233 = vmatpush1.msra.mxu0 0.0
        %1234 = vmatprep.subr.mxu0 0.0
        %1235 = vmatpush1.msra.mxu0 0.0
        %1236 = vmatprep.mubr.f32.mxu0 0.0
        %1237 = vmatmul.mubr.f32.gmra.mrb[0].mxu0 %v1152
        %v1238 = vpop.f32.mrb[0].mxu0
        %v1239 = vadd.f32 0.0, %v1238
        %v1240 = vpop.f32.mrb[0].mxu0
        %1241 = vmatprep.mubr.f32.mxu0 0.0
        %1242 = vmatmul.mubr.f32.gmra.mrb[0].mxu0 %v1153
        %v1243 = vpop.f32.mrb[0].mxu0
        %v1244 = vadd.f32 0.0, %v1243
        %v1245 = vpop.f32.mrb[0].mxu0
        %1246 = vmatprep.mubr.f32.mxu0 0.0
        %1247 = vmatmul.mubr.f32.gmra.mrb[0].mxu0 %v1154
        %v1248 = vpop.f32.mrb[0].mxu0
        %v1249 = vadd.f32 0.0, %v1248
        %v1250 = vpop.f32.mrb[0].mxu0
        %1251 = vmatprep.mubr.f32.mxu0 0.0
        %1252 = vmatmul.mubr.f32.gmra.mrb[0].mxu0 %v1155
        %v1253 = vpop.f32.mrb[0].mxu0
        %v1254 = vadd.f32 0.0, %v1253
        %v1255 = vpop.f32.mrb[0].mxu0
        %1256 = vdwg.mxu0
        %1261 = vrot.lane.b32.xlu0 %v658, 16
        %v1262 = vpop.permute.xlu0 %1261
        %1263 = vrot.lane.b32.xlu0 %v659, 16
        %v1264 = vpop.permute.xlu0 %1263
        %1265 = vrot.lane.b32.xlu0 %v660, 16
        %v1266 = vpop.permute.xlu0 %1265
        %1267 = vrot.lane.b32.xlu0 %v661, 16
        %v1268 = vpop.permute.xlu0 %1267
        %v1273 = vmul.f32 %v985, %v1262
        %v1274 = vmul.f32 %v986, %v1264
        %v1275 = vmul.f32 %v987, %v1266
        %v1276 = vmul.f32 %v988, %v1268
        %1281 = vrot.lane.b32.xlu0 %v1273, 112
        %v1282 = vpop.permute.xlu0 %1281
        %1283 = vrot.lane.b32.xlu0 %v1274, 112
        %v1284 = vpop.permute.xlu0 %1283
        %1285 = vrot.lane.b32.xlu0 %v1275, 112
        %v1286 = vpop.permute.xlu0 %1285
        %1287 = vrot.lane.b32.xlu0 %v1276, 112
        %v1288 = vpop.permute.xlu0 %1287
        %v1293 = vsel %vm743, %v1282, 0.0
        %1294 = vadd.xlane.f32.xlu0 %v1293
        %v1295 = vpop.xlane.xlu0 %1294
        %v1296 = vsel %vm743, %v1284, 0.0
        %1297 = vadd.xlane.f32.xlu0 %v1296
        %v1298 = vpop.xlane.xlu0 %1297
        %v1299 = vsel %vm743, %v1286, 0.0
        %1300 = vadd.xlane.f32.xlu0 %v1299
        %v1301 = vpop.xlane.xlu0 %1300
        %v1302 = vsel %vm743, %v1288, 0.0
        %1303 = vadd.xlane.f32.xlu0 %v1302
        %v1304 = vpop.xlane.xlu0 %1303
        %v1305 = vmul.f32 %v985, %v1295
        %v1306 = vmul.f32 %v986, %v1298
        %v1307 = vmul.f32 %v987, %v1301
        %v1308 = vmul.f32 %v988, %v1304
        %v1309 = vadd.f32 %v658, %v1305
        %v1310 = vadd.f32 %v659, %v1306
        %v1311 = vadd.f32 %v660, %v1307
        %v1312 = vadd.f32 %v661, %v1308
        %v1313 = vadd.f32 %v1309, %v1239
        %v1314 = vadd.f32 %v1310, %v1244
        %v1315 = vadd.f32 %v1311, %v1249
        %v1316 = vadd.f32 %v1312, %v1254
        %1321 = vrot.lane.b32.xlu0 %v969, 96
        %v1322 = vpop.permute.xlu0 %1321
        %1323 = vrot.lane.b32.xlu0 %v973, 96
        %v1324 = vpop.permute.xlu0 %1323
        %1325 = vrot.lane.b32.xlu0 %v979, 96
        %v1326 = vpop.permute.xlu0 %1325
        %1327 = vrot.lane.b32.xlu0 %v983, 96
        %v1328 = vpop.permute.xlu0 %1327
        %v1333 = vadd.f32 %v1313, %v1322
        %v1334 = vadd.f32 %v1314, %v1324
        %v1335 = vadd.f32 %v1315, %v1326
        %v1336 = vadd.f32 %v1316, %v1328
        %v1341 = vcombine.high %v985, %v985
        %v1343 = vunpack.c.l.s4 1966171168
        %v1344 = vunpack.c.0.s8 %v1343
        %v1345 = vlaneseq
        %v1346 = vshrl.u32 %v1345, 7
        %v1347 = vsub.s32 %v1344, %v1346
        %v1348 = vrot.slane %v985, %v1347
        %v1350 = vunpack.c.l.s4 1966171168
        %v1351 = vunpack.c.0.s8 %v1350
        %v1352 = vlaneseq
        %v1353 = vshrl.u32 %v1352, 7
        %v1354 = vsub.s32 %v1351, %v1353
        %v1355 = vrot.slane %v1341, %v1354
        %v1356 = vcombine.high %v1348, %v1348
        %v1357 = vcombine.high %v1355, %v1355
        %v1359 = vunpack.c.l.s4 1966171168
        %v1360 = vunpack.c.0.s8 %v1359
        %v1361 = vlaneseq
        %v1362 = vshrl.u32 %v1361, 7
        %v1363 = vsub.s32 %v1360, %v1362
        %v1364 = vrot.slane %v1348, %v1363
        %v1366 = vunpack.c.l.s4 1966171168
        %v1367 = vunpack.c.0.s8 %v1366
        %v1368 = vlaneseq
        %v1369 = vshrl.u32 %v1368, 7
        %v1370 = vsub.s32 %v1367, %v1369
        %v1371 = vrot.slane %v1355, %v1370
        %v1373 = vunpack.c.l.s4 1966171168
        %v1374 = vunpack.c.0.s8 %v1373
        %v1375 = vlaneseq
        %v1376 = vshrl.u32 %v1375, 7
        %v1377 = vsub.s32 %v1374, %v1376
        %v1378 = vrot.slane %v1356, %v1377
        %v1380 = vunpack.c.l.s4 1966171168
        %v1381 = vunpack.c.0.s8 %v1380
        %v1382 = vlaneseq
        %v1383 = vshrl.u32 %v1382, 7
        %v1384 = vsub.s32 %v1381, %v1383
        %v1385 = vrot.slane %v1357, %v1384
        %v1386 = vcombine.high %v1364, %v1364
        %v1387 = vcombine.high %v1371, %v1371
        %v1388 = vcombine.high %v1378, %v1378
        %v1389 = vcombine.high %v1385, %v1385
        %v1390 = vcombine.high %v986, %v986
        %v1392 = vunpack.c.l.s4 1966171168
        %v1393 = vunpack.c.0.s8 %v1392
        %v1394 = vlaneseq
        %v1395 = vshrl.u32 %v1394, 7
        %v1396 = vsub.s32 %v1393, %v1395
        %v1397 = vrot.slane %v986, %v1396
        %v1399 = vunpack.c.l.s4 1966171168
        %v1400 = vunpack.c.0.s8 %v1399
        %v1401 = vlaneseq
        %v1402 = vshrl.u32 %v1401, 7
        %v1403 = vsub.s32 %v1400, %v1402
        %v1404 = vrot.slane %v1390, %v1403
        %v1405 = vcombine.high %v1397, %v1397
        %v1406 = vcombine.high %v1404, %v1404
        %v1408 = vunpack.c.l.s4 1966171168
        %v1409 = vunpack.c.0.s8 %v1408
        %v1410 = vlaneseq
        %v1411 = vshrl.u32 %v1410, 7
        %v1412 = vsub.s32 %v1409, %v1411
        %v1413 = vrot.slane %v1397, %v1412
        %v1415 = vunpack.c.l.s4 1966171168
        %v1416 = vunpack.c.0.s8 %v1415
        %v1417 = vlaneseq
        %v1418 = vshrl.u32 %v1417, 7
        %v1419 = vsub.s32 %v1416, %v1418
        %v1420 = vrot.slane %v1404, %v1419
        %v1422 = vunpack.c.l.s4 1966171168
        %v1423 = vunpack.c.0.s8 %v1422
        %v1424 = vlaneseq
        %v1425 = vshrl.u32 %v1424, 7
        %v1426 = vsub.s32 %v1423, %v1425
        %v1427 = vrot.slane %v1405, %v1426
        %v1429 = vunpack.c.l.s4 1966171168
        %v1430 = vunpack.c.0.s8 %v1429
        %v1431 = vlaneseq
        %v1432 = vshrl.u32 %v1431, 7
        %v1433 = vsub.s32 %v1430, %v1432
        %v1434 = vrot.slane %v1406, %v1433
        %v1435 = vcombine.high %v1413, %v1413
        %v1436 = vcombine.high %v1420, %v1420
        %v1437 = vcombine.high %v1427, %v1427
        %v1438 = vcombine.high %v1434, %v1434
        %v1439 = vcombine.high %v987, %v987
        %v1441 = vunpack.c.l.s4 1966171168
        %v1442 = vunpack.c.0.s8 %v1441
        %v1443 = vlaneseq
        %v1444 = vshrl.u32 %v1443, 7
        %v1445 = vsub.s32 %v1442, %v1444
        %v1446 = vrot.slane %v987, %v1445
        %v1448 = vunpack.c.l.s4 1966171168
        %v1449 = vunpack.c.0.s8 %v1448
        %v1450 = vlaneseq
        %v1451 = vshrl.u32 %v1450, 7
        %v1452 = vsub.s32 %v1449, %v1451
        %v1453 = vrot.slane %v1439, %v1452
        %v1454 = vcombine.high %v1446, %v1446
        %v1455 = vcombine.high %v1453, %v1453
        %v1457 = vunpack.c.l.s4 1966171168
        %v1458 = vunpack.c.0.s8 %v1457
        %v1459 = vlaneseq
        %v1460 = vshrl.u32 %v1459, 7
        %v1461 = vsub.s32 %v1458, %v1460
        %v1462 = vrot.slane %v1446, %v1461
        %v1464 = vunpack.c.l.s4 1966171168
        %v1465 = vunpack.c.0.s8 %v1464
        %v1466 = vlaneseq
        %v1467 = vshrl.u32 %v1466, 7
        %v1468 = vsub.s32 %v1465, %v1467
        %v1469 = vrot.slane %v1453, %v1468
        %v1471 = vunpack.c.l.s4 1966171168
        %v1472 = vunpack.c.0.s8 %v1471
        %v1473 = vlaneseq
        %v1474 = vshrl.u32 %v1473, 7
        %v1475 = vsub.s32 %v1472, %v1474
        %v1476 = vrot.slane %v1454, %v1475
        %v1478 = vunpack.c.l.s4 1966171168
        %v1479 = vunpack.c.0.s8 %v1478
        %v1480 = vlaneseq
        %v1481 = vshrl.u32 %v1480, 7
        %v1482 = vsub.s32 %v1479, %v1481
        %v1483 = vrot.slane %v1455, %v1482
        %v1484 = vcombine.high %v1462, %v1462
        %v1485 = vcombine.high %v1469, %v1469
        %v1486 = vcombine.high %v1476, %v1476
        %v1487 = vcombine.high %v1483, %v1483
        %v1488 = vcombine.high %v988, %v988
        %v1490 = vunpack.c.l.s4 1966171168
        %v1491 = vunpack.c.0.s8 %v1490
        %v1492 = vlaneseq
        %v1493 = vshrl.u32 %v1492, 7
        %v1494 = vsub.s32 %v1491, %v1493
        %v1495 = vrot.slane %v988, %v1494
        %v1497 = vunpack.c.l.s4 1966171168
        %v1498 = vunpack.c.0.s8 %v1497
        %v1499 = vlaneseq
        %v1500 = vshrl.u32 %v1499, 7
        %v1501 = vsub.s32 %v1498, %v1500
        %v1502 = vrot.slane %v1488, %v1501
        %v1503 = vcombine.high %v1495, %v1495
        %v1504 = vcombine.high %v1502, %v1502
        %v1506 = vunpack.c.l.s4 1966171168
        %v1507 = vunpack.c.0.s8 %v1506
        %v1508 = vlaneseq
        %v1509 = vshrl.u32 %v1508, 7
        %v1510 = vsub.s32 %v1507, %v1509
        %v1511 = vrot.slane %v1495, %v1510
        %v1513 = vunpack.c.l.s4 1966171168
        %v1514 = vunpack.c.0.s8 %v1513
        %v1515 = vlaneseq
        %v1516 = vshrl.u32 %v1515, 7
        %v1517 = vsub.s32 %v1514, %v1516
        %v1518 = vrot.slane %v1502, %v1517
        %v1520 = vunpack.c.l.s4 1966171168
        %v1521 = vunpack.c.0.s8 %v1520
        %v1522 = vlaneseq
        %v1523 = vshrl.u32 %v1522, 7
        %v1524 = vsub.s32 %v1521, %v1523
        %v1525 = vrot.slane %v1503, %v1524
        %v1527 = vunpack.c.l.s4 1966171168
        %v1528 = vunpack.c.0.s8 %v1527
        %v1529 = vlaneseq
        %v1530 = vshrl.u32 %v1529, 7
        %v1531 = vsub.s32 %v1528, %v1530
        %v1532 = vrot.slane %v1504, %v1531
        %v1533 = vcombine.high %v1511, %v1511
        %v1534 = vcombine.high %v1518, %v1518
        %v1535 = vcombine.high %v1525, %v1525
        %v1536 = vcombine.high %v1532, %v1532
        %v1537 = vlaneseq
        %v1538 = vshrl.u32 %v1537, 7
        %v1539 = vsub.s32 0, %v1538
        %v1540 = vrot.slane %v1364, %v1539
        %v1541 = vlaneseq
        %v1542 = vshrl.u32 %v1541, 7
        %v1543 = vsub.s32 0, %v1542
        %v1544 = vrot.slane %v1378, %v1543
        %v1545 = vlaneseq
        %v1546 = vshrl.u32 %v1545, 7
        %v1547 = vsub.s32 0, %v1546
        %v1548 = vrot.slane %v1386, %v1547
        %v1549 = vlaneseq
        %v1550 = vshrl.u32 %v1549, 7
        %v1551 = vsub.s32 0, %v1550
        %v1552 = vrot.slane %v1388, %v1551
        %v1553 = vlaneseq
        %v1554 = vshrl.u32 %v1553, 7
        %v1555 = vsub.s32 0, %v1554
        %v1556 = vrot.slane %v1371, %v1555
        %v1557 = vlaneseq
        %v1558 = vshrl.u32 %v1557, 7
        %v1559 = vsub.s32 0, %v1558
        %v1560 = vrot.slane %v1385, %v1559
        %v1561 = vlaneseq
        %v1562 = vshrl.u32 %v1561, 7
        %v1563 = vsub.s32 0, %v1562
        %v1564 = vrot.slane %v1387, %v1563
        %v1565 = vlaneseq
        %v1566 = vshrl.u32 %v1565, 7
        %v1567 = vsub.s32 0, %v1566
        %v1568 = vrot.slane %v1389, %v1567
        %v1569 = vlaneseq
        %v1570 = vshrl.u32 %v1569, 7
        %v1571 = vsub.s32 0, %v1570
        %v1572 = vrot.slane %v1413, %v1571
        %v1573 = vlaneseq
        %v1574 = vshrl.u32 %v1573, 7
        %v1575 = vsub.s32 0, %v1574
        %v1576 = vrot.slane %v1427, %v1575
        %v1577 = vlaneseq
        %v1578 = vshrl.u32 %v1577, 7
        %v1579 = vsub.s32 0, %v1578
        %v1580 = vrot.slane %v1435, %v1579
        %v1581 = vlaneseq
        %v1582 = vshrl.u32 %v1581, 7
        %v1583 = vsub.s32 0, %v1582
        %v1584 = vrot.slane %v1437, %v1583
        %v1585 = vlaneseq
        %v1586 = vshrl.u32 %v1585, 7
        %v1587 = vsub.s32 0, %v1586
        %v1588 = vrot.slane %v1420, %v1587
        %v1589 = vlaneseq
        %v1590 = vshrl.u32 %v1589, 7
        %v1591 = vsub.s32 0, %v1590
        %v1592 = vrot.slane %v1434, %v1591
        %v1593 = vlaneseq
        %v1594 = vshrl.u32 %v1593, 7
        %v1595 = vsub.s32 0, %v1594
        %v1596 = vrot.slane %v1436, %v1595
        %v1597 = vlaneseq
        %v1598 = vshrl.u32 %v1597, 7
        %v1599 = vsub.s32 0, %v1598
        %v1600 = vrot.slane %v1438, %v1599
        %v1601 = vlaneseq
        %v1602 = vshrl.u32 %v1601, 7
        %v1603 = vsub.s32 0, %v1602
        %v1604 = vrot.slane %v1462, %v1603
        %v1605 = vlaneseq
        %v1606 = vshrl.u32 %v1605, 7
        %v1607 = vsub.s32 0, %v1606
        %v1608 = vrot.slane %v1476, %v1607
        %v1609 = vlaneseq
        %v1610 = vshrl.u32 %v1609, 7
        %v1611 = vsub.s32 0, %v1610
        %v1612 = vrot.slane %v1484, %v1611
        %v1613 = vlaneseq
        %v1614 = vshrl.u32 %v1613, 7
        %v1615 = vsub.s32 0, %v1614
        %v1616 = vrot.slane %v1486, %v1615
        %v1617 = vlaneseq
        %v1618 = vshrl.u32 %v1617, 7
        %v1619 = vsub.s32 0, %v1618
        %v1620 = vrot.slane %v1469, %v1619
        %v1621 = vlaneseq
        %v1622 = vshrl.u32 %v1621, 7
        %v1623 = vsub.s32 0, %v1622
        %v1624 = vrot.slane %v1483, %v1623
        %v1625 = vlaneseq
        %v1626 = vshrl.u32 %v1625, 7
        %v1627 = vsub.s32 0, %v1626
        %v1628 = vrot.slane %v1485, %v1627
        %v1629 = vlaneseq
        %v1630 = vshrl.u32 %v1629, 7
        %v1631 = vsub.s32 0, %v1630
        %v1632 = vrot.slane %v1487, %v1631
        %v1633 = vlaneseq
        %v1634 = vshrl.u32 %v1633, 7
        %v1635 = vsub.s32 0, %v1634
        %v1636 = vrot.slane %v1511, %v1635
        %v1637 = vlaneseq
        %v1638 = vshrl.u32 %v1637, 7
        %v1639 = vsub.s32 0, %v1638
        %v1640 = vrot.slane %v1525, %v1639
        %v1641 = vlaneseq
        %v1642 = vshrl.u32 %v1641, 7
        %v1643 = vsub.s32 0, %v1642
        %v1644 = vrot.slane %v1533, %v1643
        %v1645 = vlaneseq
        %v1646 = vshrl.u32 %v1645, 7
        %v1647 = vsub.s32 0, %v1646
        %v1648 = vrot.slane %v1535, %v1647
        %v1649 = vlaneseq
        %v1650 = vshrl.u32 %v1649, 7
        %v1651 = vsub.s32 0, %v1650
        %v1652 = vrot.slane %v1518, %v1651
        %v1653 = vlaneseq
        %v1654 = vshrl.u32 %v1653, 7
        %v1655 = vsub.s32 0, %v1654
        %v1656 = vrot.slane %v1532, %v1655
        %v1657 = vlaneseq
        %v1658 = vshrl.u32 %v1657, 7
        %v1659 = vsub.s32 0, %v1658
        %v1660 = vrot.slane %v1534, %v1659
        %v1661 = vlaneseq
        %v1662 = vshrl.u32 %v1661, 7
        %v1663 = vsub.s32 0, %v1662
        %v1664 = vrot.slane %v1536, %v1663
        %1697 = vrot.lane.b32.xlu0 %v1540, 112
        %v1698 = vpop.permute.xlu0 %1697
        %1699 = vrot.lane.b32.xlu0 %v1544, 112
        %v1700 = vpop.permute.xlu0 %1699
        %1701 = vrot.lane.b32.xlu0 %v1548, 112
        %v1702 = vpop.permute.xlu0 %1701
        %1703 = vrot.lane.b32.xlu0 %v1552, 112
        %v1704 = vpop.permute.xlu0 %1703
        %1705 = vrot.lane.b32.xlu0 %v1556, 112
        %v1706 = vpop.permute.xlu0 %1705
        %1707 = vrot.lane.b32.xlu0 %v1560, 112
        %v1708 = vpop.permute.xlu0 %1707
        %1709 = vrot.lane.b32.xlu0 %v1564, 112
        %v1710 = vpop.permute.xlu0 %1709
        %1711 = vrot.lane.b32.xlu0 %v1568, 112
        %v1712 = vpop.permute.xlu0 %1711
        %1713 = vrot.lane.b32.xlu0 %v1572, 112
        %v1714 = vpop.permute.xlu0 %1713
        %1715 = vrot.lane.b32.xlu0 %v1576, 112
        %v1716 = vpop.permute.xlu0 %1715
        %1717 = vrot.lane.b32.xlu0 %v1580, 112
        %v1718 = vpop.permute.xlu0 %1717
        %1719 = vrot.lane.b32.xlu0 %v1584, 112
        %v1720 = vpop.permute.xlu0 %1719
        %1721 = vrot.lane.b32.xlu0 %v1588, 112
        %v1722 = vpop.permute.xlu0 %1721
        %1723 = vrot.lane.b32.xlu0 %v1592, 112
        %v1724 = vpop.permute.xlu0 %1723
        %1725 = vrot.lane.b32.xlu0 %v1596, 112
        %v1726 = vpop.permute.xlu0 %1725
        %1727 = vrot.lane.b32.xlu0 %v1600, 112
        %v1728 = vpop.permute.xlu0 %1727
        %1729 = vrot.lane.b32.xlu0 %v1604, 112
        %v1730 = vpop.permute.xlu0 %1729
        %1731 = vrot.lane.b32.xlu0 %v1608, 112
        %v1732 = vpop.permute.xlu0 %1731
        %1733 = vrot.lane.b32.xlu0 %v1612, 112
        %v1734 = vpop.permute.xlu0 %1733
        %1735 = vrot.lane.b32.xlu0 %v1616, 112
        %v1736 = vpop.permute.xlu0 %1735
        %1737 = vrot.lane.b32.xlu0 %v1620, 112
        %v1738 = vpop.permute.xlu0 %1737
        %1739 = vrot.lane.b32.xlu0 %v1624, 112
        %v1740 = vpop.permute.xlu0 %1739
        %1741 = vrot.lane.b32.xlu0 %v1628, 112
        %v1742 = vpop.permute.xlu0 %1741
        %1743 = vrot.lane.b32.xlu0 %v1632, 112
        %v1744 = vpop.permute.xlu0 %1743
        %1745 = vrot.lane.b32.xlu0 %v1636, 112
        %v1746 = vpop.permute.xlu0 %1745
        %1747 = vrot.lane.b32.xlu0 %v1640, 112
        %v1748 = vpop.permute.xlu0 %1747
        %1749 = vrot.lane.b32.xlu0 %v1644, 112
        %v1750 = vpop.permute.xlu0 %1749
        %1751 = vrot.lane.b32.xlu0 %v1648, 112
        %v1752 = vpop.permute.xlu0 %1751
        %1753 = vrot.lane.b32.xlu0 %v1652, 112
        %v1754 = vpop.permute.xlu0 %1753
        %1755 = vrot.lane.b32.xlu0 %v1656, 112
        %v1756 = vpop.permute.xlu0 %1755
        %1757 = vrot.lane.b32.xlu0 %v1660, 112
        %v1758 = vpop.permute.xlu0 %1757
        %1759 = vrot.lane.b32.xlu0 %v1664, 112
        %v1760 = vpop.permute.xlu0 %1759
        %v1793 = vmul.f32 %v662, %v1698
        %v1794 = vmul.f32 %v663, %v1698
        %v1795 = vmul.f32 %v664, %v1700
        %v1796 = vmul.f32 %v665, %v1700
        %v1797 = vmul.f32 %v666, %v1702
        %v1798 = vmul.f32 %v667, %v1702
        %v1799 = vmul.f32 %v668, %v1704
        %v1800 = vmul.f32 %v669, %v1704
        %v1801 = vmul.f32 %v670, %v1706
        %v1802 = vmul.f32 %v671, %v1706
        %v1803 = vmul.f32 %v672, %v1708
        %v1804 = vmul.f32 %v673, %v1708
        %v1805 = vmul.f32 %v674, %v1710
        %v1806 = vmul.f32 %v675, %v1710
        %v1807 = vmul.f32 %v676, %v1712
        %v1808 = vmul.f32 %v677, %v1712
        %v1809 = vmul.f32 %v678, %v1714
        %v1810 = vmul.f32 %v679, %v1714
        %v1811 = vmul.f32 %v680, %v1716
        %v1812 = vmul.f32 %v681, %v1716
        %v1813 = vmul.f32 %v682, %v1718
        %v1814 = vmul.f32 %v683, %v1718
        %v1815 = vmul.f32 %v684, %v1720
        %v1816 = vmul.f32 %v685, %v1720
        %v1817 = vmul.f32 %v686, %v1722
        %v1818 = vmul.f32 %v687, %v1722
        %v1819 = vmul.f32 %v688, %v1724
        %v1820 = vmul.f32 %v689, %v1724
        %v1821 = vmul.f32 %v690, %v1726
        %v1822 = vmul.f32 %v691, %v1726
        %v1823 = vmul.f32 %v692, %v1728
        %v1824 = vmul.f32 %v693, %v1728
        %v1825 = vmul.f32 %v694, %v1730
        %v1826 = vmul.f32 %v695, %v1730
        %v1827 = vmul.f32 %v696, %v1732
        %v1828 = vmul.f32 %v697, %v1732
        %v1829 = vmul.f32 %v698, %v1734
        %v1830 = vmul.f32 %v699, %v1734
        %v1831 = vmul.f32 %v700, %v1736
        %v1832 = vmul.f32 %v701, %v1736
        %v1833 = vmul.f32 %v702, %v1738
        %v1834 = vmul.f32 %v703, %v1738
        %v1835 = vmul.f32 %v704, %v1740
        %v1836 = vmul.f32 %v705, %v1740
        %v1837 = vmul.f32 %v706, %v1742
        %v1838 = vmul.f32 %v707, %v1742
        %v1839 = vmul.f32 %v708, %v1744
        %v1840 = vmul.f32 %v709, %v1744
        %v1841 = vmul.f32 %v710, %v1746
        %v1842 = vmul.f32 %v711, %v1746
        %v1843 = vmul.f32 %v712, %v1748
        %v1844 = vmul.f32 %v713, %v1748
        %v1845 = vmul.f32 %v714, %v1750
        %v1846 = vmul.f32 %v715, %v1750
        %v1847 = vmul.f32 %v716, %v1752
        %v1848 = vmul.f32 %v717, %v1752
        %v1849 = vmul.f32 %v718, %v1754
        %v1850 = vmul.f32 %v719, %v1754
        %v1851 = vmul.f32 %v720, %v1756
        %v1852 = vmul.f32 %v721, %v1756
        %v1853 = vmul.f32 %v722, %v1758
        %v1854 = vmul.f32 %v723, %v1758
        %v1855 = vmul.f32 %v724, %v1760
        %v1856 = vmul.f32 %v725, %v1760
        %v1857 = vsel %vm743, %v1793, 0.0
        %1858 = vadd.xlane.f32.xlu0 %v1857
        %v1859 = vpop.xlane.xlu0 %1858
        %v1860 = vsel %vm743, %v1794, 0.0
        %1861 = vadd.xlane.f32.xlu0 %v1860
        %v1862 = vpop.xlane.xlu0 %1861
        %v1863 = vsel %vm743, %v1795, 0.0
        %1864 = vadd.xlane.f32.xlu0 %v1863
        %v1865 = vpop.xlane.xlu0 %1864
        %v1866 = vsel %vm743, %v1796, 0.0
        %1867 = vadd.xlane.f32.xlu0 %v1866
        %v1868 = vpop.xlane.xlu0 %1867
        %v1869 = vsel %vm743, %v1797, 0.0
        %1870 = vadd.xlane.f32.xlu0 %v1869
        %v1871 = vpop.xlane.xlu0 %1870
        %v1872 = vsel %vm743, %v1798, 0.0
        %1873 = vadd.xlane.f32.xlu0 %v1872
        %v1874 = vpop.xlane.xlu0 %1873
        %v1875 = vsel %vm743, %v1799, 0.0
        %1876 = vadd.xlane.f32.xlu0 %v1875
        %v1877 = vpop.xlane.xlu0 %1876
        %v1878 = vsel %vm743, %v1800, 0.0
        %1879 = vadd.xlane.f32.xlu0 %v1878
        %v1880 = vpop.xlane.xlu0 %1879
        %v1881 = vsel %vm743, %v1801, 0.0
        %1882 = vadd.xlane.f32.xlu0 %v1881
        %v1883 = vpop.xlane.xlu0 %1882
        %v1884 = vsel %vm743, %v1802, 0.0
        %1885 = vadd.xlane.f32.xlu0 %v1884
        %v1886 = vpop.xlane.xlu0 %1885
        %v1887 = vsel %vm743, %v1803, 0.0
        %1888 = vadd.xlane.f32.xlu0 %v1887
        %v1889 = vpop.xlane.xlu0 %1888
        %v1890 = vsel %vm743, %v1804, 0.0
        %1891 = vadd.xlane.f32.xlu0 %v1890
        %v1892 = vpop.xlane.xlu0 %1891
        %v1893 = vsel %vm743, %v1805, 0.0
        %1894 = vadd.xlane.f32.xlu0 %v1893
        %v1895 = vpop.xlane.xlu0 %1894
        %v1896 = vsel %vm743, %v1806, 0.0
        %1897 = vadd.xlane.f32.xlu0 %v1896
        %v1898 = vpop.xlane.xlu0 %1897
        %v1899 = vsel %vm743, %v1807, 0.0
        %1900 = vadd.xlane.f32.xlu0 %v1899
        %v1901 = vpop.xlane.xlu0 %1900
        %v1902 = vsel %vm743, %v1808, 0.0
        %1903 = vadd.xlane.f32.xlu0 %v1902
        %v1904 = vpop.xlane.xlu0 %1903
        %v1905 = vsel %vm743, %v1809, 0.0
        %1906 = vadd.xlane.f32.xlu0 %v1905
        %v1907 = vpop.xlane.xlu0 %1906
        %v1908 = vsel %vm743, %v1810, 0.0
        %1909 = vadd.xlane.f32.xlu0 %v1908
        %v1910 = vpop.xlane.xlu0 %1909
        %v1911 = vsel %vm743, %v1811, 0.0
        %1912 = vadd.xlane.f32.xlu0 %v1911
        %v1913 = vpop.xlane.xlu0 %1912
        %v1914 = vsel %vm743, %v1812, 0.0
        %1915 = vadd.xlane.f32.xlu0 %v1914
        %v1916 = vpop.xlane.xlu0 %1915
        %v1917 = vsel %vm743, %v1813, 0.0
        %1918 = vadd.xlane.f32.xlu0 %v1917
        %v1919 = vpop.xlane.xlu0 %1918
        %v1920 = vsel %vm743, %v1814, 0.0
        %1921 = vadd.xlane.f32.xlu0 %v1920
        %v1922 = vpop.xlane.xlu0 %1921
        %v1923 = vsel %vm743, %v1815, 0.0
        %1924 = vadd.xlane.f32.xlu0 %v1923
        %v1925 = vpop.xlane.xlu0 %1924
        %v1926 = vsel %vm743, %v1816, 0.0
        %1927 = vadd.xlane.f32.xlu0 %v1926
        %v1928 = vpop.xlane.xlu0 %1927
        %v1929 = vsel %vm743, %v1817, 0.0
        %1930 = vadd.xlane.f32.xlu0 %v1929
        %v1931 = vpop.xlane.xlu0 %1930
        %v1932 = vsel %vm743, %v1818, 0.0
        %1933 = vadd.xlane.f32.xlu0 %v1932
        %v1934 = vpop.xlane.xlu0 %1933
        %v1935 = vsel %vm743, %v1819, 0.0
        %1936 = vadd.xlane.f32.xlu0 %v1935
        %v1937 = vpop.xlane.xlu0 %1936
        %v1938 = vsel %vm743, %v1820, 0.0
        %1939 = vadd.xlane.f32.xlu0 %v1938
        %v1940 = vpop.xlane.xlu0 %1939
        %v1941 = vsel %vm743, %v1821, 0.0
        %1942 = vadd.xlane.f32.xlu0 %v1941
        %v1943 = vpop.xlane.xlu0 %1942
        %v1944 = vsel %vm743, %v1822, 0.0
        %1945 = vadd.xlane.f32.xlu0 %v1944
        %v1946 = vpop.xlane.xlu0 %1945
        %v1947 = vsel %vm743, %v1823, 0.0
        %1948 = vadd.xlane.f32.xlu0 %v1947
        %v1949 = vpop.xlane.xlu0 %1948
        %v1950 = vsel %vm743, %v1824, 0.0
        %1951 = vadd.xlane.f32.xlu0 %v1950
        %v1952 = vpop.xlane.xlu0 %1951
        %v1953 = vsel %vm743, %v1825, 0.0
        %1954 = vadd.xlane.f32.xlu0 %v1953
        %v1955 = vpop.xlane.xlu0 %1954
        %v1956 = vsel %vm743, %v1826, 0.0
        %1957 = vadd.xlane.f32.xlu0 %v1956
        %v1958 = vpop.xlane.xlu0 %1957
        %v1959 = vsel %vm743, %v1827, 0.0
        %1960 = vadd.xlane.f32.xlu0 %v1959
        %v1961 = vpop.xlane.xlu0 %1960
        %v1962 = vsel %vm743, %v1828, 0.0
        %1963 = vadd.xlane.f32.xlu0 %v1962
        %v1964 = vpop.xlane.xlu0 %1963
        %v1965 = vsel %vm743, %v1829, 0.0
        %1966 = vadd.xlane.f32.xlu0 %v1965
        %v1967 = vpop.xlane.xlu0 %1966
        %v1968 = vsel %vm743, %v1830, 0.0
        %1969 = vadd.xlane.f32.xlu0 %v1968
        %v1970 = vpop.xlane.xlu0 %1969
        %v1971 = vsel %vm743, %v1831, 0.0
        %1972 = vadd.xlane.f32.xlu0 %v1971
        %v1973 = vpop.xlane.xlu0 %1972
        %v1974 = vsel %vm743, %v1832, 0.0
        %1975 = vadd.xlane.f32.xlu0 %v1974
        %v1976 = vpop.xlane.xlu0 %1975
        %v1977 = vsel %vm743, %v1833, 0.0
        %1978 = vadd.xlane.f32.xlu0 %v1977
        %v1979 = vpop.xlane.xlu0 %1978
        %v1980 = vsel %vm743, %v1834, 0.0
        %1981 = vadd.xlane.f32.xlu0 %v1980
        %v1982 = vpop.xlane.xlu0 %1981
        %v1983 = vsel %vm743, %v1835, 0.0
        %1984 = vadd.xlane.f32.xlu0 %v1983
        %v1985 = vpop.xlane.xlu0 %1984
        %v1986 = vsel %vm743, %v1836, 0.0
        %1987 = vadd.xlane.f32.xlu0 %v1986
        %v1988 = vpop.xlane.xlu0 %1987
        %v1989 = vsel %vm743, %v1837, 0.0
        %1990 = vadd.xlane.f32.xlu0 %v1989
        %v1991 = vpop.xlane.xlu0 %1990
        %v1992 = vsel %vm743, %v1838, 0.0
        %1993 = vadd.xlane.f32.xlu0 %v1992
        %v1994 = vpop.xlane.xlu0 %1993
        %v1995 = vsel %vm743, %v1839, 0.0
        %1996 = vadd.xlane.f32.xlu0 %v1995
        %v1997 = vpop.xlane.xlu0 %1996
        %v1998 = vsel %vm743, %v1840, 0.0
        %1999 = vadd.xlane.f32.xlu0 %v1998
        %v2000 = vpop.xlane.xlu0 %1999
        %v2001 = vsel %vm743, %v1841, 0.0
        %2002 = vadd.xlane.f32.xlu0 %v2001
        %v2003 = vpop.xlane.xlu0 %2002
        %v2004 = vsel %vm743, %v1842, 0.0
        %2005 = vadd.xlane.f32.xlu0 %v2004
        %v2006 = vpop.xlane.xlu0 %2005
        %v2007 = vsel %vm743, %v1843, 0.0
        %2008 = vadd.xlane.f32.xlu0 %v2007
        %v2009 = vpop.xlane.xlu0 %2008
        %v2010 = vsel %vm743, %v1844, 0.0
        %2011 = vadd.xlane.f32.xlu0 %v2010
        %v2012 = vpop.xlane.xlu0 %2011
        %v2013 = vsel %vm743, %v1845, 0.0
        %2014 = vadd.xlane.f32.xlu0 %v2013
        %v2015 = vpop.xlane.xlu0 %2014
        %v2016 = vsel %vm743, %v1846, 0.0
        %2017 = vadd.xlane.f32.xlu0 %v2016
        %v2018 = vpop.xlane.xlu0 %2017
        %v2019 = vsel %vm743, %v1847, 0.0
        %2020 = vadd.xlane.f32.xlu0 %v2019
        %v2021 = vpop.xlane.xlu0 %2020
        %v2022 = vsel %vm743, %v1848, 0.0
        %2023 = vadd.xlane.f32.xlu0 %v2022
        %v2024 = vpop.xlane.xlu0 %2023
        %v2025 = vsel %vm743, %v1849, 0.0
        %2026 = vadd.xlane.f32.xlu0 %v2025
        %v2027 = vpop.xlane.xlu0 %2026
        %v2028 = vsel %vm743, %v1850, 0.0
        %2029 = vadd.xlane.f32.xlu0 %v2028
        %v2030 = vpop.xlane.xlu0 %2029
        %v2031 = vsel %vm743, %v1851, 0.0
        %2032 = vadd.xlane.f32.xlu0 %v2031
        %v2033 = vpop.xlane.xlu0 %2032
        %v2034 = vsel %vm743, %v1852, 0.0
        %2035 = vadd.xlane.f32.xlu0 %v2034
        %v2036 = vpop.xlane.xlu0 %2035
        %v2037 = vsel %vm743, %v1853, 0.0
        %2038 = vadd.xlane.f32.xlu0 %v2037
        %v2039 = vpop.xlane.xlu0 %2038
        %v2040 = vsel %vm743, %v1854, 0.0
        %2041 = vadd.xlane.f32.xlu0 %v2040
        %v2042 = vpop.xlane.xlu0 %2041
        %v2043 = vsel %vm743, %v1855, 0.0
        %2044 = vadd.xlane.f32.xlu0 %v2043
        %v2045 = vpop.xlane.xlu0 %2044
        %v2046 = vsel %vm743, %v1856, 0.0
        %2047 = vadd.xlane.f32.xlu0 %v2046
        %v2048 = vpop.xlane.xlu0 %2047
        %v2049 = vlaneseq
        %v2050 = vshrl.u32 %v2049, 7
        %v2051 = vsub.s32 0, %v2050
        %v2052 = vrot.slane %v985, %v2051
        %s2054 = sor.u32 256, 16
        %2055 = vbcast.lane.b32.xlu0 %v2052, %s2054
        %v2056 = vpop.permute.xlu0 %2055
        %s2058 = sor.u32 256, 24
        %2059 = vbcast.lane.b32.xlu0 %v2052, %s2058
        %v2060 = vpop.permute.xlu0 %2059
        %v2061 = vlaneseq
        %v2062 = vshrl.u32 %v2061, 7
        %v2063 = vsub.s32 1, %v2062
        %v2064 = vrot.slane %v985, %v2063
        %s2066 = sor.u32 256, 16
        %2067 = vbcast.lane.b32.xlu0 %v2064, %s2066
        %v2068 = vpop.permute.xlu0 %2067
        %s2070 = sor.u32 256, 24
        %2071 = vbcast.lane.b32.xlu0 %v2064, %s2070
        %v2072 = vpop.permute.xlu0 %2071
        %v2073 = vlaneseq
        %v2074 = vshrl.u32 %v2073, 7
        %v2075 = vsub.s32 2, %v2074
        %v2076 = vrot.slane %v985, %v2075
        %s2078 = sor.u32 256, 16
        %2079 = vbcast.lane.b32.xlu0 %v2076, %s2078
        %v2080 = vpop.permute.xlu0 %2079
        %s2082 = sor.u32 256, 24
        %2083 = vbcast.lane.b32.xlu0 %v2076, %s2082
        %v2084 = vpop.permute.xlu0 %2083
        %v2085 = vlaneseq
        %v2086 = vshrl.u32 %v2085, 7
        %v2087 = vsub.s32 3, %v2086
        %v2088 = vrot.slane %v985, %v2087
        %s2090 = sor.u32 256, 16
        %2091 = vbcast.lane.b32.xlu0 %v2088, %s2090
        %v2092 = vpop.permute.xlu0 %2091
        %s2094 = sor.u32 256, 24
        %2095 = vbcast.lane.b32.xlu0 %v2088, %s2094
        %v2096 = vpop.permute.xlu0 %2095
        %v2097 = vlaneseq
        %v2098 = vshrl.u32 %v2097, 7
        %v2099 = vsub.s32 4, %v2098
        %v2100 = vrot.slane %v985, %v2099
        %s2102 = sor.u32 256, 16
        %2103 = vbcast.lane.b32.xlu0 %v2100, %s2102
        %v2104 = vpop.permute.xlu0 %2103
        %s2106 = sor.u32 256, 24
        %2107 = vbcast.lane.b32.xlu0 %v2100, %s2106
        %v2108 = vpop.permute.xlu0 %2107
        %v2109 = vlaneseq
        %v2110 = vshrl.u32 %v2109, 7
        %v2111 = vsub.s32 5, %v2110
        %v2112 = vrot.slane %v985, %v2111
        %s2114 = sor.u32 256, 16
        %2115 = vbcast.lane.b32.xlu0 %v2112, %s2114
        %v2116 = vpop.permute.xlu0 %2115
        %s2118 = sor.u32 256, 24
        %2119 = vbcast.lane.b32.xlu0 %v2112, %s2118
        %v2120 = vpop.permute.xlu0 %2119
        %v2121 = vlaneseq
        %v2122 = vshrl.u32 %v2121, 7
        %v2123 = vsub.s32 6, %v2122
        %v2124 = vrot.slane %v985, %v2123
        %s2126 = sor.u32 256, 16
        %2127 = vbcast.lane.b32.xlu0 %v2124, %s2126
        %v2128 = vpop.permute.xlu0 %2127
        %s2130 = sor.u32 256, 24
        %2131 = vbcast.lane.b32.xlu0 %v2124, %s2130
        %v2132 = vpop.permute.xlu0 %2131
        %v2133 = vlaneseq
        %v2134 = vshrl.u32 %v2133, 7
        %v2135 = vsub.s32 7, %v2134
        %v2136 = vrot.slane %v985, %v2135
        %s2138 = sor.u32 256, 16
        %2139 = vbcast.lane.b32.xlu0 %v2136, %s2138
        %v2140 = vpop.permute.xlu0 %2139
        %s2142 = sor.u32 256, 24
        %2143 = vbcast.lane.b32.xlu0 %v2136, %s2142
        %v2144 = vpop.permute.xlu0 %2143
        %v2145 = vlaneseq
        %v2146 = vshrl.u32 %v2145, 7
        %v2147 = vsub.s32 0, %v2146
        %v2148 = vrot.slane %v986, %v2147
        %s2150 = sor.u32 256, 16
        %2151 = vbcast.lane.b32.xlu0 %v2148, %s2150
        %v2152 = vpop.permute.xlu0 %2151
        %s2154 = sor.u32 256, 24
        %2155 = vbcast.lane.b32.xlu0 %v2148, %s2154
        %v2156 = vpop.permute.xlu0 %2155
        %v2157 = vlaneseq
        %v2158 = vshrl.u32 %v2157, 7
        %v2159 = vsub.s32 1, %v2158
        %v2160 = vrot.slane %v986, %v2159
        %s2162 = sor.u32 256, 16
        %2163 = vbcast.lane.b32.xlu0 %v2160, %s2162
        %v2164 = vpop.permute.xlu0 %2163
        %s2166 = sor.u32 256, 24
        %2167 = vbcast.lane.b32.xlu0 %v2160, %s2166
        %v2168 = vpop.permute.xlu0 %2167
        %v2169 = vlaneseq
        %v2170 = vshrl.u32 %v2169, 7
        %v2171 = vsub.s32 2, %v2170
        %v2172 = vrot.slane %v986, %v2171
        %s2174 = sor.u32 256, 16
        %2175 = vbcast.lane.b32.xlu0 %v2172, %s2174
        %v2176 = vpop.permute.xlu0 %2175
        %s2178 = sor.u32 256, 24
        %2179 = vbcast.lane.b32.xlu0 %v2172, %s2178
        %v2180 = vpop.permute.xlu0 %2179
        %v2181 = vlaneseq
        %v2182 = vshrl.u32 %v2181, 7
        %v2183 = vsub.s32 3, %v2182
        %v2184 = vrot.slane %v986, %v2183
        %s2186 = sor.u32 256, 16
        %2187 = vbcast.lane.b32.xlu0 %v2184, %s2186
        %v2188 = vpop.permute.xlu0 %2187
        %s2190 = sor.u32 256, 24
        %2191 = vbcast.lane.b32.xlu0 %v2184, %s2190
        %v2192 = vpop.permute.xlu0 %2191
        %v2193 = vlaneseq
        %v2194 = vshrl.u32 %v2193, 7
        %v2195 = vsub.s32 4, %v2194
        %v2196 = vrot.slane %v986, %v2195
        %s2198 = sor.u32 256, 16
        %2199 = vbcast.lane.b32.xlu0 %v2196, %s2198
        %v2200 = vpop.permute.xlu0 %2199
        %s2202 = sor.u32 256, 24
        %2203 = vbcast.lane.b32.xlu0 %v2196, %s2202
        %v2204 = vpop.permute.xlu0 %2203
        %v2205 = vlaneseq
        %v2206 = vshrl.u32 %v2205, 7
        %v2207 = vsub.s32 5, %v2206
        %v2208 = vrot.slane %v986, %v2207
        %s2210 = sor.u32 256, 16
        %2211 = vbcast.lane.b32.xlu0 %v2208, %s2210
        %v2212 = vpop.permute.xlu0 %2211
        %s2214 = sor.u32 256, 24
        %2215 = vbcast.lane.b32.xlu0 %v2208, %s2214
        %v2216 = vpop.permute.xlu0 %2215
        %v2217 = vlaneseq
        %v2218 = vshrl.u32 %v2217, 7
        %v2219 = vsub.s32 6, %v2218
        %v2220 = vrot.slane %v986, %v2219
        %s2222 = sor.u32 256, 16
        %2223 = vbcast.lane.b32.xlu0 %v2220, %s2222
        %v2224 = vpop.permute.xlu0 %2223
        %s2226 = sor.u32 256, 24
        %2227 = vbcast.lane.b32.xlu0 %v2220, %s2226
        %v2228 = vpop.permute.xlu0 %2227
        %v2229 = vlaneseq
        %v2230 = vshrl.u32 %v2229, 7
        %v2231 = vsub.s32 7, %v2230
        %v2232 = vrot.slane %v986, %v2231
        %s2234 = sor.u32 256, 16
        %2235 = vbcast.lane.b32.xlu0 %v2232, %s2234
        %v2236 = vpop.permute.xlu0 %2235
        %s2238 = sor.u32 256, 24
        %2239 = vbcast.lane.b32.xlu0 %v2232, %s2238
        %v2240 = vpop.permute.xlu0 %2239
        %v2241 = vlaneseq
        %v2242 = vshrl.u32 %v2241, 7
        %v2243 = vsub.s32 0, %v2242
        %v2244 = vrot.slane %v987, %v2243
        %s2246 = sor.u32 256, 16
        %2247 = vbcast.lane.b32.xlu0 %v2244, %s2246
        %v2248 = vpop.permute.xlu0 %2247
        %s2250 = sor.u32 256, 24
        %2251 = vbcast.lane.b32.xlu0 %v2244, %s2250
        %v2252 = vpop.permute.xlu0 %2251
        %v2253 = vlaneseq
        %v2254 = vshrl.u32 %v2253, 7
        %v2255 = vsub.s32 1, %v2254
        %v2256 = vrot.slane %v987, %v2255
        %s2258 = sor.u32 256, 16
        %2259 = vbcast.lane.b32.xlu0 %v2256, %s2258
        %v2260 = vpop.permute.xlu0 %2259
        %s2262 = sor.u32 256, 24
        %2263 = vbcast.lane.b32.xlu0 %v2256, %s2262
        %v2264 = vpop.permute.xlu0 %2263
        %v2265 = vlaneseq
        %v2266 = vshrl.u32 %v2265, 7
        %v2267 = vsub.s32 2, %v2266
        %v2268 = vrot.slane %v987, %v2267
        %s2270 = sor.u32 256, 16
        %2271 = vbcast.lane.b32.xlu0 %v2268, %s2270
        %v2272 = vpop.permute.xlu0 %2271
        %s2274 = sor.u32 256, 24
        %2275 = vbcast.lane.b32.xlu0 %v2268, %s2274
        %v2276 = vpop.permute.xlu0 %2275
        %v2277 = vlaneseq
        %v2278 = vshrl.u32 %v2277, 7
        %v2279 = vsub.s32 3, %v2278
        %v2280 = vrot.slane %v987, %v2279
        %s2282 = sor.u32 256, 16
        %2283 = vbcast.lane.b32.xlu0 %v2280, %s2282
        %v2284 = vpop.permute.xlu0 %2283
        %s2286 = sor.u32 256, 24
        %2287 = vbcast.lane.b32.xlu0 %v2280, %s2286
        %v2288 = vpop.permute.xlu0 %2287
        %v2289 = vlaneseq
        %v2290 = vshrl.u32 %v2289, 7
        %v2291 = vsub.s32 4, %v2290
        %v2292 = vrot.slane %v987, %v2291
        %s2294 = sor.u32 256, 16
        %2295 = vbcast.lane.b32.xlu0 %v2292, %s2294
        %v2296 = vpop.permute.xlu0 %2295
        %s2298 = sor.u32 256, 24
        %2299 = vbcast.lane.b32.xlu0 %v2292, %s2298
        %v2300 = vpop.permute.xlu0 %2299
        %v2301 = vlaneseq
        %v2302 = vshrl.u32 %v2301, 7
        %v2303 = vsub.s32 5, %v2302
        %v2304 = vrot.slane %v987, %v2303
        %s2306 = sor.u32 256, 16
        %2307 = vbcast.lane.b32.xlu0 %v2304, %s2306
        %v2308 = vpop.permute.xlu0 %2307
        %s2310 = sor.u32 256, 24
        %2311 = vbcast.lane.b32.xlu0 %v2304, %s2310
        %v2312 = vpop.permute.xlu0 %2311
        %v2313 = vlaneseq
        %v2314 = vshrl.u32 %v2313, 7
        %v2315 = vsub.s32 6, %v2314
        %v2316 = vrot.slane %v987, %v2315
        %s2318 = sor.u32 256, 16
        %2319 = vbcast.lane.b32.xlu0 %v2316, %s2318
        %v2320 = vpop.permute.xlu0 %2319
        %s2322 = sor.u32 256, 24
        %2323 = vbcast.lane.b32.xlu0 %v2316, %s2322
        %v2324 = vpop.permute.xlu0 %2323
        %v2325 = vlaneseq
        %v2326 = vshrl.u32 %v2325, 7
        %v2327 = vsub.s32 7, %v2326
        %v2328 = vrot.slane %v987, %v2327
        %s2330 = sor.u32 256, 16
        %2331 = vbcast.lane.b32.xlu0 %v2328, %s2330
        %v2332 = vpop.permute.xlu0 %2331
        %s2334 = sor.u32 256, 24
        %2335 = vbcast.lane.b32.xlu0 %v2328, %s2334
        %v2336 = vpop.permute.xlu0 %2335
        %v2337 = vlaneseq
        %v2338 = vshrl.u32 %v2337, 7
        %v2339 = vsub.s32 0, %v2338
        %v2340 = vrot.slane %v988, %v2339
        %s2342 = sor.u32 256, 16
        %2343 = vbcast.lane.b32.xlu0 %v2340, %s2342
        %v2344 = vpop.permute.xlu0 %2343
        %s2346 = sor.u32 256, 24
        %2347 = vbcast.lane.b32.xlu0 %v2340, %s2346
        %v2348 = vpop.permute.xlu0 %2347
        %v2349 = vlaneseq
        %v2350 = vshrl.u32 %v2349, 7
        %v2351 = vsub.s32 1, %v2350
        %v2352 = vrot.slane %v988, %v2351
        %s2354 = sor.u32 256, 16
        %2355 = vbcast.lane.b32.xlu0 %v2352, %s2354
        %v2356 = vpop.permute.xlu0 %2355
        %s2358 = sor.u32 256, 24
        %2359 = vbcast.lane.b32.xlu0 %v2352, %s2358
        %v2360 = vpop.permute.xlu0 %2359
        %v2361 = vlaneseq
        %v2362 = vshrl.u32 %v2361, 7
        %v2363 = vsub.s32 2, %v2362
        %v2364 = vrot.slane %v988, %v2363
        %s2366 = sor.u32 256, 16
        %2367 = vbcast.lane.b32.xlu0 %v2364, %s2366
        %v2368 = vpop.permute.xlu0 %2367
        %s2370 = sor.u32 256, 24
        %2371 = vbcast.lane.b32.xlu0 %v2364, %s2370
        %v2372 = vpop.permute.xlu0 %2371
        %v2373 = vlaneseq
        %v2374 = vshrl.u32 %v2373, 7
        %v2375 = vsub.s32 3, %v2374
        %v2376 = vrot.slane %v988, %v2375
        %s2378 = sor.u32 256, 16
        %2379 = vbcast.lane.b32.xlu0 %v2376, %s2378
        %v2380 = vpop.permute.xlu0 %2379
        %s2382 = sor.u32 256, 24
        %2383 = vbcast.lane.b32.xlu0 %v2376, %s2382
        %v2384 = vpop.permute.xlu0 %2383
        %v2385 = vlaneseq
        %v2386 = vshrl.u32 %v2385, 7
        %v2387 = vsub.s32 4, %v2386
        %v2388 = vrot.slane %v988, %v2387
        %s2390 = sor.u32 256, 16
        %2391 = vbcast.lane.b32.xlu0 %v2388, %s2390
        %v2392 = vpop.permute.xlu0 %2391
        %s2394 = sor.u32 256, 24
        %2395 = vbcast.lane.b32.xlu0 %v2388, %s2394
        %v2396 = vpop.permute.xlu0 %2395
        %v2397 = vlaneseq
        %v2398 = vshrl.u32 %v2397, 7
        %v2399 = vsub.s32 5, %v2398
        %v2400 = vrot.slane %v988, %v2399
        %s2402 = sor.u32 256, 16
        %2403 = vbcast.lane.b32.xlu0 %v2400, %s2402
        %v2404 = vpop.permute.xlu0 %2403
        %s2406 = sor.u32 256, 24
        %2407 = vbcast.lane.b32.xlu0 %v2400, %s2406
        %v2408 = vpop.permute.xlu0 %2407
        %v2409 = vlaneseq
        %v2410 = vshrl.u32 %v2409, 7
        %v2411 = vsub.s32 6, %v2410
        %v2412 = vrot.slane %v988, %v2411
        %s2414 = sor.u32 256, 16
        %2415 = vbcast.lane.b32.xlu0 %v2412, %s2414
        %v2416 = vpop.permute.xlu0 %2415
        %s2418 = sor.u32 256, 24
        %2419 = vbcast.lane.b32.xlu0 %v2412, %s2418
        %v2420 = vpop.permute.xlu0 %2419
        %v2421 = vlaneseq
        %v2422 = vshrl.u32 %v2421, 7
        %v2423 = vsub.s32 7, %v2422
        %v2424 = vrot.slane %v988, %v2423
        %s2426 = sor.u32 256, 16
        %2427 = vbcast.lane.b32.xlu0 %v2424, %s2426
        %v2428 = vpop.permute.xlu0 %2427
        %s2430 = sor.u32 256, 24
        %2431 = vbcast.lane.b32.xlu0 %v2424, %s2430
        %v2432 = vpop.permute.xlu0 %2431
        %v2433 = vmul.f32 %v662, %v2056
        %v2434 = vmul.f32 %v663, %v2060
        %v2435 = vmul.f32 %v664, %v2068
        %v2436 = vmul.f32 %v665, %v2072
        %v2437 = vmul.f32 %v666, %v2080
        %v2438 = vmul.f32 %v667, %v2084
        %v2439 = vmul.f32 %v668, %v2092
        %v2440 = vmul.f32 %v669, %v2096
        %v2441 = vmul.f32 %v670, %v2104
        %v2442 = vmul.f32 %v671, %v2108
        %v2443 = vmul.f32 %v672, %v2116
        %v2444 = vmul.f32 %v673, %v2120
        %v2445 = vmul.f32 %v674, %v2128
        %v2446 = vmul.f32 %v675, %v2132
        %v2447 = vmul.f32 %v676, %v2140
        %v2448 = vmul.f32 %v677, %v2144
        %v2449 = vmul.f32 %v678, %v2152
        %v2450 = vmul.f32 %v679, %v2156
        %v2451 = vmul.f32 %v680, %v2164
        %v2452 = vmul.f32 %v681, %v2168
        %v2453 = vmul.f32 %v682, %v2176
        %v2454 = vmul.f32 %v683, %v2180
        %v2455 = vmul.f32 %v684, %v2188
        %v2456 = vmul.f32 %v685, %v2192
        %v2457 = vmul.f32 %v686, %v2200
        %v2458 = vmul.f32 %v687, %v2204
        %v2459 = vmul.f32 %v688, %v2212
        %v2460 = vmul.f32 %v689, %v2216
        %v2461 = vmul.f32 %v690, %v2224
        %v2462 = vmul.f32 %v691, %v2228
        %v2463 = vmul.f32 %v692, %v2236
        %v2464 = vmul.f32 %v693, %v2240
        %v2465 = vmul.f32 %v694, %v2248
        %v2466 = vmul.f32 %v695, %v2252
        %v2467 = vmul.f32 %v696, %v2260
        %v2468 = vmul.f32 %v697, %v2264
        %v2469 = vmul.f32 %v698, %v2272
        %v2470 = vmul.f32 %v699, %v2276
        %v2471 = vmul.f32 %v700, %v2284
        %v2472 = vmul.f32 %v701, %v2288
        %v2473 = vmul.f32 %v702, %v2296
        %v2474 = vmul.f32 %v703, %v2300
        %v2475 = vmul.f32 %v704, %v2308
        %v2476 = vmul.f32 %v705, %v2312
        %v2477 = vmul.f32 %v706, %v2320
        %v2478 = vmul.f32 %v707, %v2324
        %v2479 = vmul.f32 %v708, %v2332
        %v2480 = vmul.f32 %v709, %v2336
        %v2481 = vmul.f32 %v710, %v2344
        %v2482 = vmul.f32 %v711, %v2348
        %v2483 = vmul.f32 %v712, %v2356
        %v2484 = vmul.f32 %v713, %v2360
        %v2485 = vmul.f32 %v714, %v2368
        %v2486 = vmul.f32 %v715, %v2372
        %v2487 = vmul.f32 %v716, %v2380
        %v2488 = vmul.f32 %v717, %v2384
        %v2489 = vmul.f32 %v718, %v2392
        %v2490 = vmul.f32 %v719, %v2396
        %v2491 = vmul.f32 %v720, %v2404
        %v2492 = vmul.f32 %v721, %v2408
        %v2493 = vmul.f32 %v722, %v2416
        %v2494 = vmul.f32 %v723, %v2420
        %v2495 = vmul.f32 %v724, %v2428
        %v2496 = vmul.f32 %v725, %v2432
        %v2497 = vsel %vm743, %v2433, 0.0
        %v2498 = vsel %vm743, %v2434, 0.0
        %v2499 = vadd.f32 %v2497, %v2498
        %v2500 = vrot.slane %v2499, 4
        %v2501 = vadd.f32 %v2499, %v2500
        %v2502 = vrot.slane %v2501, 2
        %v2503 = vadd.f32 %v2501, %v2502
        %v2504 = vrot.slane %v2503, 1
        %v2505 = vadd.f32 %v2503, %v2504
        %v2506 = vsel %vm743, %v2435, 0.0
        %v2507 = vsel %vm743, %v2436, 0.0
        %v2508 = vadd.f32 %v2506, %v2507
        %v2509 = vrot.slane %v2508, 4
        %v2510 = vadd.f32 %v2508, %v2509
        %v2511 = vrot.slane %v2510, 2
        %v2512 = vadd.f32 %v2510, %v2511
        %v2513 = vrot.slane %v2512, 1
        %v2514 = vadd.f32 %v2512, %v2513
        %v2515 = vsel %vm743, %v2437, 0.0
        %v2516 = vsel %vm743, %v2438, 0.0
        %v2517 = vadd.f32 %v2515, %v2516
        %v2518 = vrot.slane %v2517, 4
        %v2519 = vadd.f32 %v2517, %v2518
        %v2520 = vrot.slane %v2519, 2
        %v2521 = vadd.f32 %v2519, %v2520
        %v2522 = vrot.slane %v2521, 1
        %v2523 = vadd.f32 %v2521, %v2522
        %v2524 = vsel %vm743, %v2439, 0.0
        %v2525 = vsel %vm743, %v2440, 0.0
        %v2526 = vadd.f32 %v2524, %v2525
        %v2527 = vrot.slane %v2526, 4
        %v2528 = vadd.f32 %v2526, %v2527
        %v2529 = vrot.slane %v2528, 2
        %v2530 = vadd.f32 %v2528, %v2529
        %v2531 = vrot.slane %v2530, 1
        %v2532 = vadd.f32 %v2530, %v2531
        %v2533 = vsel %vm743, %v2441, 0.0
        %v2534 = vsel %vm743, %v2442, 0.0
        %v2535 = vadd.f32 %v2533, %v2534
        %v2536 = vrot.slane %v2535, 4
        %v2537 = vadd.f32 %v2535, %v2536
        %v2538 = vrot.slane %v2537, 2
        %v2539 = vadd.f32 %v2537, %v2538
        %v2540 = vrot.slane %v2539, 1
        %v2541 = vadd.f32 %v2539, %v2540
        %v2542 = vsel %vm743, %v2443, 0.0
        %v2543 = vsel %vm743, %v2444, 0.0
        %v2544 = vadd.f32 %v2542, %v2543
        %v2545 = vrot.slane %v2544, 4
        %v2546 = vadd.f32 %v2544, %v2545
        %v2547 = vrot.slane %v2546, 2
        %v2548 = vadd.f32 %v2546, %v2547
        %v2549 = vrot.slane %v2548, 1
        %v2550 = vadd.f32 %v2548, %v2549
        %v2551 = vsel %vm743, %v2445, 0.0
        %v2552 = vsel %vm743, %v2446, 0.0
        %v2553 = vadd.f32 %v2551, %v2552
        %v2554 = vrot.slane %v2553, 4
        %v2555 = vadd.f32 %v2553, %v2554
        %v2556 = vrot.slane %v2555, 2
        %v2557 = vadd.f32 %v2555, %v2556
        %v2558 = vrot.slane %v2557, 1
        %v2559 = vadd.f32 %v2557, %v2558
        %v2560 = vsel %vm743, %v2447, 0.0
        %v2561 = vsel %vm743, %v2448, 0.0
        %v2562 = vadd.f32 %v2560, %v2561
        %v2563 = vrot.slane %v2562, 4
        %v2564 = vadd.f32 %v2562, %v2563
        %v2565 = vrot.slane %v2564, 2
        %v2566 = vadd.f32 %v2564, %v2565
        %v2567 = vrot.slane %v2566, 1
        %v2568 = vadd.f32 %v2566, %v2567
        %v2569 = vsel %vm743, %v2449, 0.0
        %v2570 = vsel %vm743, %v2450, 0.0
        %v2571 = vadd.f32 %v2569, %v2570
        %v2572 = vrot.slane %v2571, 4
        %v2573 = vadd.f32 %v2571, %v2572
        %v2574 = vrot.slane %v2573, 2
        %v2575 = vadd.f32 %v2573, %v2574
        %v2576 = vrot.slane %v2575, 1
        %v2577 = vadd.f32 %v2575, %v2576
        %v2578 = vsel %vm743, %v2451, 0.0
        %v2579 = vsel %vm743, %v2452, 0.0
        %v2580 = vadd.f32 %v2578, %v2579
        %v2581 = vrot.slane %v2580, 4
        %v2582 = vadd.f32 %v2580, %v2581
        %v2583 = vrot.slane %v2582, 2
        %v2584 = vadd.f32 %v2582, %v2583
        %v2585 = vrot.slane %v2584, 1
        %v2586 = vadd.f32 %v2584, %v2585
        %v2587 = vsel %vm743, %v2453, 0.0
        %v2588 = vsel %vm743, %v2454, 0.0
        %v2589 = vadd.f32 %v2587, %v2588
        %v2590 = vrot.slane %v2589, 4
        %v2591 = vadd.f32 %v2589, %v2590
        %v2592 = vrot.slane %v2591, 2
        %v2593 = vadd.f32 %v2591, %v2592
        %v2594 = vrot.slane %v2593, 1
        %v2595 = vadd.f32 %v2593, %v2594
        %v2596 = vsel %vm743, %v2455, 0.0
        %v2597 = vsel %vm743, %v2456, 0.0
        %v2598 = vadd.f32 %v2596, %v2597
        %v2599 = vrot.slane %v2598, 4
        %v2600 = vadd.f32 %v2598, %v2599
        %v2601 = vrot.slane %v2600, 2
        %v2602 = vadd.f32 %v2600, %v2601
        %v2603 = vrot.slane %v2602, 1
        %v2604 = vadd.f32 %v2602, %v2603
        %v2605 = vsel %vm743, %v2457, 0.0
        %v2606 = vsel %vm743, %v2458, 0.0
        %v2607 = vadd.f32 %v2605, %v2606
        %v2608 = vrot.slane %v2607, 4
        %v2609 = vadd.f32 %v2607, %v2608
        %v2610 = vrot.slane %v2609, 2
        %v2611 = vadd.f32 %v2609, %v2610
        %v2612 = vrot.slane %v2611, 1
        %v2613 = vadd.f32 %v2611, %v2612
        %v2614 = vsel %vm743, %v2459, 0.0
        %v2615 = vsel %vm743, %v2460, 0.0
        %v2616 = vadd.f32 %v2614, %v2615
        %v2617 = vrot.slane %v2616, 4
        %v2618 = vadd.f32 %v2616, %v2617
        %v2619 = vrot.slane %v2618, 2
        %v2620 = vadd.f32 %v2618, %v2619
        %v2621 = vrot.slane %v2620, 1
        %v2622 = vadd.f32 %v2620, %v2621
        %v2623 = vsel %vm743, %v2461, 0.0
        %v2624 = vsel %vm743, %v2462, 0.0
        %v2625 = vadd.f32 %v2623, %v2624
        %v2626 = vrot.slane %v2625, 4
        %v2627 = vadd.f32 %v2625, %v2626
        %v2628 = vrot.slane %v2627, 2
        %v2629 = vadd.f32 %v2627, %v2628
        %v2630 = vrot.slane %v2629, 1
        %v2631 = vadd.f32 %v2629, %v2630
        %v2632 = vsel %vm743, %v2463, 0.0
        %v2633 = vsel %vm743, %v2464, 0.0
        %v2634 = vadd.f32 %v2632, %v2633
        %v2635 = vrot.slane %v2634, 4
        %v2636 = vadd.f32 %v2634, %v2635
        %v2637 = vrot.slane %v2636, 2
        %v2638 = vadd.f32 %v2636, %v2637
        %v2639 = vrot.slane %v2638, 1
        %v2640 = vadd.f32 %v2638, %v2639
        %v2641 = vsel %vm743, %v2465, 0.0
        %v2642 = vsel %vm743, %v2466, 0.0
        %v2643 = vadd.f32 %v2641, %v2642
        %v2644 = vrot.slane %v2643, 4
        %v2645 = vadd.f32 %v2643, %v2644
        %v2646 = vrot.slane %v2645, 2
        %v2647 = vadd.f32 %v2645, %v2646
        %v2648 = vrot.slane %v2647, 1
        %v2649 = vadd.f32 %v2647, %v2648
        %v2650 = vsel %vm743, %v2467, 0.0
        %v2651 = vsel %vm743, %v2468, 0.0
        %v2652 = vadd.f32 %v2650, %v2651
        %v2653 = vrot.slane %v2652, 4
        %v2654 = vadd.f32 %v2652, %v2653
        %v2655 = vrot.slane %v2654, 2
        %v2656 = vadd.f32 %v2654, %v2655
        %v2657 = vrot.slane %v2656, 1
        %v2658 = vadd.f32 %v2656, %v2657
        %v2659 = vsel %vm743, %v2469, 0.0
        %v2660 = vsel %vm743, %v2470, 0.0
        %v2661 = vadd.f32 %v2659, %v2660
        %v2662 = vrot.slane %v2661, 4
        %v2663 = vadd.f32 %v2661, %v2662
        %v2664 = vrot.slane %v2663, 2
        %v2665 = vadd.f32 %v2663, %v2664
        %v2666 = vrot.slane %v2665, 1
        %v2667 = vadd.f32 %v2665, %v2666
        %v2668 = vsel %vm743, %v2471, 0.0
        %v2669 = vsel %vm743, %v2472, 0.0
        %v2670 = vadd.f32 %v2668, %v2669
        %v2671 = vrot.slane %v2670, 4
        %v2672 = vadd.f32 %v2670, %v2671
        %v2673 = vrot.slane %v2672, 2
        %v2674 = vadd.f32 %v2672, %v2673
        %v2675 = vrot.slane %v2674, 1
        %v2676 = vadd.f32 %v2674, %v2675
        %v2677 = vsel %vm743, %v2473, 0.0
        %v2678 = vsel %vm743, %v2474, 0.0
        %v2679 = vadd.f32 %v2677, %v2678
        %v2680 = vrot.slane %v2679, 4
        %v2681 = vadd.f32 %v2679, %v2680
        %v2682 = vrot.slane %v2681, 2
        %v2683 = vadd.f32 %v2681, %v2682
        %v2684 = vrot.slane %v2683, 1
        %v2685 = vadd.f32 %v2683, %v2684
        %v2686 = vsel %vm743, %v2475, 0.0
        %v2687 = vsel %vm743, %v2476, 0.0
        %v2688 = vadd.f32 %v2686, %v2687
        %v2689 = vrot.slane %v2688, 4
        %v2690 = vadd.f32 %v2688, %v2689
        %v2691 = vrot.slane %v2690, 2
        %v2692 = vadd.f32 %v2690, %v2691
        %v2693 = vrot.slane %v2692, 1
        %v2694 = vadd.f32 %v2692, %v2693
        %v2695 = vsel %vm743, %v2477, 0.0
        %v2696 = vsel %vm743, %v2478, 0.0
        %v2697 = vadd.f32 %v2695, %v2696
        %v2698 = vrot.slane %v2697, 4
        %v2699 = vadd.f32 %v2697, %v2698
        %v2700 = vrot.slane %v2699, 2
        %v2701 = vadd.f32 %v2699, %v2700
        %v2702 = vrot.slane %v2701, 1
        %v2703 = vadd.f32 %v2701, %v2702
        %v2704 = vsel %vm743, %v2479, 0.0
        %v2705 = vsel %vm743, %v2480, 0.0
        %v2706 = vadd.f32 %v2704, %v2705
        %v2707 = vrot.slane %v2706, 4
        %v2708 = vadd.f32 %v2706, %v2707
        %v2709 = vrot.slane %v2708, 2
        %v2710 = vadd.f32 %v2708, %v2709
        %v2711 = vrot.slane %v2710, 1
        %v2712 = vadd.f32 %v2710, %v2711
        %v2713 = vsel %vm743, %v2481, 0.0
        %v2714 = vsel %vm743, %v2482, 0.0
        %v2715 = vadd.f32 %v2713, %v2714
        %v2716 = vrot.slane %v2715, 4
        %v2717 = vadd.f32 %v2715, %v2716
        %v2718 = vrot.slane %v2717, 2
        %v2719 = vadd.f32 %v2717, %v2718
        %v2720 = vrot.slane %v2719, 1
        %v2721 = vadd.f32 %v2719, %v2720
        %v2722 = vsel %vm743, %v2483, 0.0
        %v2723 = vsel %vm743, %v2484, 0.0
        %v2724 = vadd.f32 %v2722, %v2723
        %v2725 = vrot.slane %v2724, 4
        %v2726 = vadd.f32 %v2724, %v2725
        %v2727 = vrot.slane %v2726, 2
        %v2728 = vadd.f32 %v2726, %v2727
        %v2729 = vrot.slane %v2728, 1
        %v2730 = vadd.f32 %v2728, %v2729
        %v2731 = vsel %vm743, %v2485, 0.0
        %v2732 = vsel %vm743, %v2486, 0.0
        %v2733 = vadd.f32 %v2731, %v2732
        %v2734 = vrot.slane %v2733, 4
        %v2735 = vadd.f32 %v2733, %v2734
        %v2736 = vrot.slane %v2735, 2
        %v2737 = vadd.f32 %v2735, %v2736
        %v2738 = vrot.slane %v2737, 1
        %v2739 = vadd.f32 %v2737, %v2738
        %v2740 = vsel %vm743, %v2487, 0.0
        %v2741 = vsel %vm743, %v2488, 0.0
        %v2742 = vadd.f32 %v2740, %v2741
        %v2743 = vrot.slane %v2742, 4
        %v2744 = vadd.f32 %v2742, %v2743
        %v2745 = vrot.slane %v2744, 2
        %v2746 = vadd.f32 %v2744, %v2745
        %v2747 = vrot.slane %v2746, 1
        %v2748 = vadd.f32 %v2746, %v2747
        %v2749 = vsel %vm743, %v2489, 0.0
        %v2750 = vsel %vm743, %v2490, 0.0
        %v2751 = vadd.f32 %v2749, %v2750
        %v2752 = vrot.slane %v2751, 4
        %v2753 = vadd.f32 %v2751, %v2752
        %v2754 = vrot.slane %v2753, 2
        %v2755 = vadd.f32 %v2753, %v2754
        %v2756 = vrot.slane %v2755, 1
        %v2757 = vadd.f32 %v2755, %v2756
        %v2758 = vsel %vm743, %v2491, 0.0
        %v2759 = vsel %vm743, %v2492, 0.0
        %v2760 = vadd.f32 %v2758, %v2759
        %v2761 = vrot.slane %v2760, 4
        %v2762 = vadd.f32 %v2760, %v2761
        %v2763 = vrot.slane %v2762, 2
        %v2764 = vadd.f32 %v2762, %v2763
        %v2765 = vrot.slane %v2764, 1
        %v2766 = vadd.f32 %v2764, %v2765
        %v2767 = vsel %vm743, %v2493, 0.0
        %v2768 = vsel %vm743, %v2494, 0.0
        %v2769 = vadd.f32 %v2767, %v2768
        %v2770 = vrot.slane %v2769, 4
        %v2771 = vadd.f32 %v2769, %v2770
        %v2772 = vrot.slane %v2771, 2
        %v2773 = vadd.f32 %v2771, %v2772
        %v2774 = vrot.slane %v2773, 1
        %v2775 = vadd.f32 %v2773, %v2774
        %v2776 = vsel %vm743, %v2495, 0.0
        %v2777 = vsel %vm743, %v2496, 0.0
        %v2778 = vadd.f32 %v2776, %v2777
        %v2779 = vrot.slane %v2778, 4
        %v2780 = vadd.f32 %v2778, %v2779
        %v2781 = vrot.slane %v2780, 2
        %v2782 = vadd.f32 %v2780, %v2781
        %v2783 = vrot.slane %v2782, 1
        %v2784 = vadd.f32 %v2782, %v2783
        %v2849 = vlaneseq
        %v2850 = vand.u32 %v2849, 127
        %v2851 = vadd.s32 %v2850, 4294967280
        %v2852 = vlaneseq
        %v2853 = vshrl.u32 %v2852, 7
        %v2854 = vsub.s32 %v2851, %v2853
        %v2855 = vrot.slane %v1859, %v2854
        %v2856 = vadd.s32 %v2850, 4294967272
        %v2857 = vlaneseq
        %v2858 = vshrl.u32 %v2857, 7
        %v2859 = vsub.s32 %v2856, %v2858
        %v2860 = vrot.slane %v1862, %v2859
        %vm2861 = vcmask 261312
        %v2862 = vsel %vm2861, %v2860, %v2855
        %v2863 = vlaneseq
        %v2864 = vshrl.u32 %v2863, 7
        %v2865 = vsub.s32 %v2851, %v2864
        %v2866 = vrot.slane %v1865, %v2865
        %v2867 = vlaneseq
        %v2868 = vshrl.u32 %v2867, 7
        %v2869 = vsub.s32 %v2856, %v2868
        %v2870 = vrot.slane %v1868, %v2869
        %v2871 = vsel %vm2861, %v2870, %v2866
        %v2872 = vlaneseq
        %v2873 = vshrl.u32 %v2872, 7
        %v2874 = vsub.s32 %v2851, %v2873
        %v2875 = vrot.slane %v1871, %v2874
        %v2876 = vlaneseq
        %v2877 = vshrl.u32 %v2876, 7
        %v2878 = vsub.s32 %v2856, %v2877
        %v2879 = vrot.slane %v1874, %v2878
        %v2880 = vsel %vm2861, %v2879, %v2875
        %v2881 = vlaneseq
        %v2882 = vshrl.u32 %v2881, 7
        %v2883 = vsub.s32 %v2851, %v2882
        %v2884 = vrot.slane %v1877, %v2883
        %v2885 = vlaneseq
        %v2886 = vshrl.u32 %v2885, 7
        %v2887 = vsub.s32 %v2856, %v2886
        %v2888 = vrot.slane %v1880, %v2887
        %v2889 = vsel %vm2861, %v2888, %v2884
        %v2890 = vlaneseq
        %v2891 = vshrl.u32 %v2890, 7
        %v2892 = vsub.s32 %v2851, %v2891
        %v2893 = vrot.slane %v1883, %v2892
        %v2894 = vlaneseq
        %v2895 = vshrl.u32 %v2894, 7
        %v2896 = vsub.s32 %v2856, %v2895
        %v2897 = vrot.slane %v1886, %v2896
        %v2898 = vsel %vm2861, %v2897, %v2893
        %v2899 = vlaneseq
        %v2900 = vshrl.u32 %v2899, 7
        %v2901 = vsub.s32 %v2851, %v2900
        %v2902 = vrot.slane %v1889, %v2901
        %v2903 = vlaneseq
        %v2904 = vshrl.u32 %v2903, 7
        %v2905 = vsub.s32 %v2856, %v2904
        %v2906 = vrot.slane %v1892, %v2905
        %v2907 = vsel %vm2861, %v2906, %v2902
        %v2908 = vlaneseq
        %v2909 = vshrl.u32 %v2908, 7
        %v2910 = vsub.s32 %v2851, %v2909
        %v2911 = vrot.slane %v1895, %v2910
        %v2912 = vlaneseq
        %v2913 = vshrl.u32 %v2912, 7
        %v2914 = vsub.s32 %v2856, %v2913
        %v2915 = vrot.slane %v1898, %v2914
        %v2916 = vsel %vm2861, %v2915, %v2911
        %v2917 = vlaneseq
        %v2918 = vshrl.u32 %v2917, 7
        %v2919 = vsub.s32 %v2851, %v2918
        %v2920 = vrot.slane %v1901, %v2919
        %v2921 = vlaneseq
        %v2922 = vshrl.u32 %v2921, 7
        %v2923 = vsub.s32 %v2856, %v2922
        %v2924 = vrot.slane %v1904, %v2923
        %v2925 = vsel %vm2861, %v2924, %v2920
        %v2926 = vlaneseq
        %v2927 = vshrl.u32 %v2926, 7
        %v2928 = vsub.s32 %v2851, %v2927
        %v2929 = vrot.slane %v1907, %v2928
        %v2930 = vlaneseq
        %v2931 = vshrl.u32 %v2930, 7
        %v2932 = vsub.s32 %v2856, %v2931
        %v2933 = vrot.slane %v1910, %v2932
        %v2934 = vsel %vm2861, %v2933, %v2929
        %v2935 = vlaneseq
        %v2936 = vshrl.u32 %v2935, 7
        %v2937 = vsub.s32 %v2851, %v2936
        %v2938 = vrot.slane %v1913, %v2937
        %v2939 = vlaneseq
        %v2940 = vshrl.u32 %v2939, 7
        %v2941 = vsub.s32 %v2856, %v2940
        %v2942 = vrot.slane %v1916, %v2941
        %v2943 = vsel %vm2861, %v2942, %v2938
        %v2944 = vlaneseq
        %v2945 = vshrl.u32 %v2944, 7
        %v2946 = vsub.s32 %v2851, %v2945
        %v2947 = vrot.slane %v1919, %v2946
        %v2948 = vlaneseq
        %v2949 = vshrl.u32 %v2948, 7
        %v2950 = vsub.s32 %v2856, %v2949
        %v2951 = vrot.slane %v1922, %v2950
        %v2952 = vsel %vm2861, %v2951, %v2947
        %v2953 = vlaneseq
        %v2954 = vshrl.u32 %v2953, 7
        %v2955 = vsub.s32 %v2851, %v2954
        %v2956 = vrot.slane %v1925, %v2955
        %v2957 = vlaneseq
        %v2958 = vshrl.u32 %v2957, 7
        %v2959 = vsub.s32 %v2856, %v2958
        %v2960 = vrot.slane %v1928, %v2959
        %v2961 = vsel %vm2861, %v2960, %v2956
        %v2962 = vlaneseq
        %v2963 = vshrl.u32 %v2962, 7
        %v2964 = vsub.s32 %v2851, %v2963
        %v2965 = vrot.slane %v1931, %v2964
        %v2966 = vlaneseq
        %v2967 = vshrl.u32 %v2966, 7
        %v2968 = vsub.s32 %v2856, %v2967
        %v2969 = vrot.slane %v1934, %v2968
        %v2970 = vsel %vm2861, %v2969, %v2965
        %v2971 = vlaneseq
        %v2972 = vshrl.u32 %v2971, 7
        %v2973 = vsub.s32 %v2851, %v2972
        %v2974 = vrot.slane %v1937, %v2973
        %v2975 = vlaneseq
        %v2976 = vshrl.u32 %v2975, 7
        %v2977 = vsub.s32 %v2856, %v2976
        %v2978 = vrot.slane %v1940, %v2977
        %v2979 = vsel %vm2861, %v2978, %v2974
        %v2980 = vlaneseq
        %v2981 = vshrl.u32 %v2980, 7
        %v2982 = vsub.s32 %v2851, %v2981
        %v2983 = vrot.slane %v1943, %v2982
        %v2984 = vlaneseq
        %v2985 = vshrl.u32 %v2984, 7
        %v2986 = vsub.s32 %v2856, %v2985
        %v2987 = vrot.slane %v1946, %v2986
        %v2988 = vsel %vm2861, %v2987, %v2983
        %v2989 = vlaneseq
        %v2990 = vshrl.u32 %v2989, 7
        %v2991 = vsub.s32 %v2851, %v2990
        %v2992 = vrot.slane %v1949, %v2991
        %v2993 = vlaneseq
        %v2994 = vshrl.u32 %v2993, 7
        %v2995 = vsub.s32 %v2856, %v2994
        %v2996 = vrot.slane %v1952, %v2995
        %v2997 = vsel %vm2861, %v2996, %v2992
        %v2998 = vlaneseq
        %v2999 = vshrl.u32 %v2998, 7
        %v3000 = vsub.s32 %v2851, %v2999
        %v3001 = vrot.slane %v1955, %v3000
        %v3002 = vlaneseq
        %v3003 = vshrl.u32 %v3002, 7
        %v3004 = vsub.s32 %v2856, %v3003
        %v3005 = vrot.slane %v1958, %v3004
        %v3006 = vsel %vm2861, %v3005, %v3001
        %v3007 = vlaneseq
        %v3008 = vshrl.u32 %v3007, 7
        %v3009 = vsub.s32 %v2851, %v3008
        %v3010 = vrot.slane %v1961, %v3009
        %v3011 = vlaneseq
        %v3012 = vshrl.u32 %v3011, 7
        %v3013 = vsub.s32 %v2856, %v3012
        %v3014 = vrot.slane %v1964, %v3013
        %v3015 = vsel %vm2861, %v3014, %v3010
        %v3016 = vlaneseq
        %v3017 = vshrl.u32 %v3016, 7
        %v3018 = vsub.s32 %v2851, %v3017
        %v3019 = vrot.slane %v1967, %v3018
        %v3020 = vlaneseq
        %v3021 = vshrl.u32 %v3020, 7
        %v3022 = vsub.s32 %v2856, %v3021
        %v3023 = vrot.slane %v1970, %v3022
        %v3024 = vsel %vm2861, %v3023, %v3019
        %v3025 = vlaneseq
        %v3026 = vshrl.u32 %v3025, 7
        %v3027 = vsub.s32 %v2851, %v3026
        %v3028 = vrot.slane %v1973, %v3027
        %v3029 = vlaneseq
        %v3030 = vshrl.u32 %v3029, 7
        %v3031 = vsub.s32 %v2856, %v3030
        %v3032 = vrot.slane %v1976, %v3031
        %v3033 = vsel %vm2861, %v3032, %v3028
        %v3034 = vlaneseq
        %v3035 = vshrl.u32 %v3034, 7
        %v3036 = vsub.s32 %v2851, %v3035
        %v3037 = vrot.slane %v1979, %v3036
        %v3038 = vlaneseq
        %v3039 = vshrl.u32 %v3038, 7
        %v3040 = vsub.s32 %v2856, %v3039
        %v3041 = vrot.slane %v1982, %v3040
        %v3042 = vsel %vm2861, %v3041, %v3037
        %v3043 = vlaneseq
        %v3044 = vshrl.u32 %v3043, 7
        %v3045 = vsub.s32 %v2851, %v3044
        %v3046 = vrot.slane %v1985, %v3045
        %v3047 = vlaneseq
        %v3048 = vshrl.u32 %v3047, 7
        %v3049 = vsub.s32 %v2856, %v3048
        %v3050 = vrot.slane %v1988, %v3049
        %v3051 = vsel %vm2861, %v3050, %v3046
        %v3052 = vlaneseq
        %v3053 = vshrl.u32 %v3052, 7
        %v3054 = vsub.s32 %v2851, %v3053
        %v3055 = vrot.slane %v1991, %v3054
        %v3056 = vlaneseq
        %v3057 = vshrl.u32 %v3056, 7
        %v3058 = vsub.s32 %v2856, %v3057
        %v3059 = vrot.slane %v1994, %v3058
        %v3060 = vsel %vm2861, %v3059, %v3055
        %v3061 = vlaneseq
        %v3062 = vshrl.u32 %v3061, 7
        %v3063 = vsub.s32 %v2851, %v3062
        %v3064 = vrot.slane %v1997, %v3063
        %v3065 = vlaneseq
        %v3066 = vshrl.u32 %v3065, 7
        %v3067 = vsub.s32 %v2856, %v3066
        %v3068 = vrot.slane %v2000, %v3067
        %v3069 = vsel %vm2861, %v3068, %v3064
        %v3070 = vlaneseq
        %v3071 = vshrl.u32 %v3070, 7
        %v3072 = vsub.s32 %v2851, %v3071
        %v3073 = vrot.slane %v2003, %v3072
        %v3074 = vlaneseq
        %v3075 = vshrl.u32 %v3074, 7
        %v3076 = vsub.s32 %v2856, %v3075
        %v3077 = vrot.slane %v2006, %v3076
        %v3078 = vsel %vm2861, %v3077, %v3073
        %v3079 = vlaneseq
        %v3080 = vshrl.u32 %v3079, 7
        %v3081 = vsub.s32 %v2851, %v3080
        %v3082 = vrot.slane %v2009, %v3081
        %v3083 = vlaneseq
        %v3084 = vshrl.u32 %v3083, 7
        %v3085 = vsub.s32 %v2856, %v3084
        %v3086 = vrot.slane %v2012, %v3085
        %v3087 = vsel %vm2861, %v3086, %v3082
        %v3088 = vlaneseq
        %v3089 = vshrl.u32 %v3088, 7
        %v3090 = vsub.s32 %v2851, %v3089
        %v3091 = vrot.slane %v2015, %v3090
        %v3092 = vlaneseq
        %v3093 = vshrl.u32 %v3092, 7
        %v3094 = vsub.s32 %v2856, %v3093
        %v3095 = vrot.slane %v2018, %v3094
        %v3096 = vsel %vm2861, %v3095, %v3091
        %v3097 = vlaneseq
        %v3098 = vshrl.u32 %v3097, 7
        %v3099 = vsub.s32 %v2851, %v3098
        %v3100 = vrot.slane %v2021, %v3099
        %v3101 = vlaneseq
        %v3102 = vshrl.u32 %v3101, 7
        %v3103 = vsub.s32 %v2856, %v3102
        %v3104 = vrot.slane %v2024, %v3103
        %v3105 = vsel %vm2861, %v3104, %v3100
        %v3106 = vlaneseq
        %v3107 = vshrl.u32 %v3106, 7
        %v3108 = vsub.s32 %v2851, %v3107
        %v3109 = vrot.slane %v2027, %v3108
        %v3110 = vlaneseq
        %v3111 = vshrl.u32 %v3110, 7
        %v3112 = vsub.s32 %v2856, %v3111
        %v3113 = vrot.slane %v2030, %v3112
        %v3114 = vsel %vm2861, %v3113, %v3109
        %v3115 = vlaneseq
        %v3116 = vshrl.u32 %v3115, 7
        %v3117 = vsub.s32 %v2851, %v3116
        %v3118 = vrot.slane %v2033, %v3117
        %v3119 = vlaneseq
        %v3120 = vshrl.u32 %v3119, 7
        %v3121 = vsub.s32 %v2856, %v3120
        %v3122 = vrot.slane %v2036, %v3121
        %v3123 = vsel %vm2861, %v3122, %v3118
        %v3124 = vlaneseq
        %v3125 = vshrl.u32 %v3124, 7
        %v3126 = vsub.s32 %v2851, %v3125
        %v3127 = vrot.slane %v2039, %v3126
        %v3128 = vlaneseq
        %v3129 = vshrl.u32 %v3128, 7
        %v3130 = vsub.s32 %v2856, %v3129
        %v3131 = vrot.slane %v2042, %v3130
        %v3132 = vsel %vm2861, %v3131, %v3127
        %v3133 = vlaneseq
        %v3134 = vshrl.u32 %v3133, 7
        %v3135 = vsub.s32 %v2851, %v3134
        %v3136 = vrot.slane %v2045, %v3135
        %v3137 = vlaneseq
        %v3138 = vshrl.u32 %v3137, 7
        %v3139 = vsub.s32 %v2856, %v3138
        %v3140 = vrot.slane %v2048, %v3139
        %v3141 = vsel %vm2861, %v3140, %v3136
        %vm3142 = vcmask 1041409
        %v3143 = vsel %vm3142, %v2871, %v2862
        %vm3144 = vcmask 1042434
        %v3145 = vsel %vm3144, %v2880, %v3143
        %vm3146 = vcmask 1043459
        %v3147 = vsel %vm3146, %v2889, %v3145
        %vm3148 = vcmask 1044484
        %v3149 = vsel %vm3148, %v2898, %v3147
        %vm3150 = vcmask 1045509
        %v3151 = vsel %vm3150, %v2907, %v3149
        %vm3152 = vcmask 1046534
        %v3153 = vsel %vm3152, %v2916, %v3151
        %vm3154 = vcmask 1047559
        %v3155 = vsel %vm3154, %v2925, %v3153
        %v3156 = vsel %vm3142, %v2943, %v2934
        %v3157 = vsel %vm3144, %v2952, %v3156
        %v3158 = vsel %vm3146, %v2961, %v3157
        %v3159 = vsel %vm3148, %v2970, %v3158
        %v3160 = vsel %vm3150, %v2979, %v3159
        %v3161 = vsel %vm3152, %v2988, %v3160
        %v3162 = vsel %vm3154, %v2997, %v3161
        %v3163 = vsel %vm3142, %v3015, %v3006
        %v3164 = vsel %vm3144, %v3024, %v3163
        %v3165 = vsel %vm3146, %v3033, %v3164
        %v3166 = vsel %vm3148, %v3042, %v3165
        %v3167 = vsel %vm3150, %v3051, %v3166
        %v3168 = vsel %vm3152, %v3060, %v3167
        %v3169 = vsel %vm3154, %v3069, %v3168
        %v3170 = vsel %vm3142, %v3087, %v3078
        %v3171 = vsel %vm3144, %v3096, %v3170
        %v3172 = vsel %vm3146, %v3105, %v3171
        %v3173 = vsel %vm3148, %v3114, %v3172
        %v3174 = vsel %vm3150, %v3123, %v3173
        %v3175 = vsel %vm3152, %v3132, %v3174
        %v3176 = vsel %vm3154, %v3141, %v3175
        %v3181 = vmul.f32 %v985, %v3155
        %v3182 = vmul.f32 %v986, %v3162
        %v3183 = vmul.f32 %v987, %v3169
        %v3184 = vmul.f32 %v988, %v3176
        %3189 = vrot.lane.b32.xlu0 %v3181, 112
        %v3190 = vpop.permute.xlu0 %3189
        %3191 = vrot.lane.b32.xlu0 %v3182, 112
        %v3192 = vpop.permute.xlu0 %3191
        %3193 = vrot.lane.b32.xlu0 %v3183, 112
        %v3194 = vpop.permute.xlu0 %3193
        %3195 = vrot.lane.b32.xlu0 %v3184, 112
        %v3196 = vpop.permute.xlu0 %3195
        %v3201 = vsel %vm743, %v3190, 0.0
        %3202 = vadd.xlane.f32.xlu0 %v3201
        %v3203 = vpop.xlane.xlu0 %3202
        %v3204 = vsel %vm743, %v3192, 0.0
        %3205 = vadd.xlane.f32.xlu0 %v3204
        %v3206 = vpop.xlane.xlu0 %3205
        %v3207 = vsel %vm743, %v3194, 0.0
        %3208 = vadd.xlane.f32.xlu0 %v3207
        %v3209 = vpop.xlane.xlu0 %3208
        %v3210 = vsel %vm743, %v3196, 0.0
        %3211 = vadd.xlane.f32.xlu0 %v3210
        %v3212 = vpop.xlane.xlu0 %3211
        %v3213 = vlaneseq
        %v3214 = vshrl.u32 %v3213, 7
        %v3215 = vadd.s32 %v3214, 8
        %vm3216 = vcmp.eq.s32.totalorder %v3214, %v2850
        %vm3217 = vcmp.eq.s32.totalorder %v3215, %v2850
        %v3218 = vsel %vm3216, 1, 0
        %v3219 = vsel %vm3217, 1, 0
        %v3220 = vcvt.s32.f32 %v3218
        %v3221 = vcvt.s32.f32 %v3219
        %3223 = vbcast.lane.b32.xlu0 %v2052, 256
        %v3224 = vpop.permute.xlu0 %3223
        %s3226 = sor.u32 256, 8
        %3227 = vbcast.lane.b32.xlu0 %v2052, %s3226
        %v3228 = vpop.permute.xlu0 %3227
        %3230 = vbcast.lane.b32.xlu0 %v2064, 256
        %v3231 = vpop.permute.xlu0 %3230
        %s3233 = sor.u32 256, 8
        %3234 = vbcast.lane.b32.xlu0 %v2064, %s3233
        %v3235 = vpop.permute.xlu0 %3234
        %3237 = vbcast.lane.b32.xlu0 %v2076, 256
        %v3238 = vpop.permute.xlu0 %3237
        %s3240 = sor.u32 256, 8
        %3241 = vbcast.lane.b32.xlu0 %v2076, %s3240
        %v3242 = vpop.permute.xlu0 %3241
        %3244 = vbcast.lane.b32.xlu0 %v2088, 256
        %v3245 = vpop.permute.xlu0 %3244
        %s3247 = sor.u32 256, 8
        %3248 = vbcast.lane.b32.xlu0 %v2088, %s3247
        %v3249 = vpop.permute.xlu0 %3248
        %3251 = vbcast.lane.b32.xlu0 %v2100, 256
        %v3252 = vpop.permute.xlu0 %3251
        %s3254 = sor.u32 256, 8
        %3255 = vbcast.lane.b32.xlu0 %v2100, %s3254
        %v3256 = vpop.permute.xlu0 %3255
        %3258 = vbcast.lane.b32.xlu0 %v2112, 256
        %v3259 = vpop.permute.xlu0 %3258
        %s3261 = sor.u32 256, 8
        %3262 = vbcast.lane.b32.xlu0 %v2112, %s3261
        %v3263 = vpop.permute.xlu0 %3262
        %3265 = vbcast.lane.b32.xlu0 %v2124, 256
        %v3266 = vpop.permute.xlu0 %3265
        %s3268 = sor.u32 256, 8
        %3269 = vbcast.lane.b32.xlu0 %v2124, %s3268
        %v3270 = vpop.permute.xlu0 %3269
        %3272 = vbcast.lane.b32.xlu0 %v2136, 256
        %v3273 = vpop.permute.xlu0 %3272
        %s3275 = sor.u32 256, 8
        %3276 = vbcast.lane.b32.xlu0 %v2136, %s3275
        %v3277 = vpop.permute.xlu0 %3276
        %3279 = vbcast.lane.b32.xlu0 %v2148, 256
        %v3280 = vpop.permute.xlu0 %3279
        %s3282 = sor.u32 256, 8
        %3283 = vbcast.lane.b32.xlu0 %v2148, %s3282
        %v3284 = vpop.permute.xlu0 %3283
        %3286 = vbcast.lane.b32.xlu0 %v2160, 256
        %v3287 = vpop.permute.xlu0 %3286
        %s3289 = sor.u32 256, 8
        %3290 = vbcast.lane.b32.xlu0 %v2160, %s3289
        %v3291 = vpop.permute.xlu0 %3290
        %3293 = vbcast.lane.b32.xlu0 %v2172, 256
        %v3294 = vpop.permute.xlu0 %3293
        %s3296 = sor.u32 256, 8
        %3297 = vbcast.lane.b32.xlu0 %v2172, %s3296
        %v3298 = vpop.permute.xlu0 %3297
        %3300 = vbcast.lane.b32.xlu0 %v2184, 256
        %v3301 = vpop.permute.xlu0 %3300
        %s3303 = sor.u32 256, 8
        %3304 = vbcast.lane.b32.xlu0 %v2184, %s3303
        %v3305 = vpop.permute.xlu0 %3304
        %3307 = vbcast.lane.b32.xlu0 %v2196, 256
        %v3308 = vpop.permute.xlu0 %3307
        %s3310 = sor.u32 256, 8
        %3311 = vbcast.lane.b32.xlu0 %v2196, %s3310
        %v3312 = vpop.permute.xlu0 %3311
        %3314 = vbcast.lane.b32.xlu0 %v2208, 256
        %v3315 = vpop.permute.xlu0 %3314
        %s3317 = sor.u32 256, 8
        %3318 = vbcast.lane.b32.xlu0 %v2208, %s3317
        %v3319 = vpop.permute.xlu0 %3318
        %3321 = vbcast.lane.b32.xlu0 %v2220, 256
        %v3322 = vpop.permute.xlu0 %3321
        %s3324 = sor.u32 256, 8
        %3325 = vbcast.lane.b32.xlu0 %v2220, %s3324
        %v3326 = vpop.permute.xlu0 %3325
        %3328 = vbcast.lane.b32.xlu0 %v2232, 256
        %v3329 = vpop.permute.xlu0 %3328
        %s3331 = sor.u32 256, 8
        %3332 = vbcast.lane.b32.xlu0 %v2232, %s3331
        %v3333 = vpop.permute.xlu0 %3332
        %3335 = vbcast.lane.b32.xlu0 %v2244, 256
        %v3336 = vpop.permute.xlu0 %3335
        %s3338 = sor.u32 256, 8
        %3339 = vbcast.lane.b32.xlu0 %v2244, %s3338
        %v3340 = vpop.permute.xlu0 %3339
        %3342 = vbcast.lane.b32.xlu0 %v2256, 256
        %v3343 = vpop.permute.xlu0 %3342
        %s3345 = sor.u32 256, 8
        %3346 = vbcast.lane.b32.xlu0 %v2256, %s3345
        %v3347 = vpop.permute.xlu0 %3346
        %3349 = vbcast.lane.b32.xlu0 %v2268, 256
        %v3350 = vpop.permute.xlu0 %3349
        %s3352 = sor.u32 256, 8
        %3353 = vbcast.lane.b32.xlu0 %v2268, %s3352
        %v3354 = vpop.permute.xlu0 %3353
        %3356 = vbcast.lane.b32.xlu0 %v2280, 256
        %v3357 = vpop.permute.xlu0 %3356
        %s3359 = sor.u32 256, 8
        %3360 = vbcast.lane.b32.xlu0 %v2280, %s3359
        %v3361 = vpop.permute.xlu0 %3360
        %3363 = vbcast.lane.b32.xlu0 %v2292, 256
        %v3364 = vpop.permute.xlu0 %3363
        %s3366 = sor.u32 256, 8
        %3367 = vbcast.lane.b32.xlu0 %v2292, %s3366
        %v3368 = vpop.permute.xlu0 %3367
        %3370 = vbcast.lane.b32.xlu0 %v2304, 256
        %v3371 = vpop.permute.xlu0 %3370
        %s3373 = sor.u32 256, 8
        %3374 = vbcast.lane.b32.xlu0 %v2304, %s3373
        %v3375 = vpop.permute.xlu0 %3374
        %3377 = vbcast.lane.b32.xlu0 %v2316, 256
        %v3378 = vpop.permute.xlu0 %3377
        %s3380 = sor.u32 256, 8
        %3381 = vbcast.lane.b32.xlu0 %v2316, %s3380
        %v3382 = vpop.permute.xlu0 %3381
        %3384 = vbcast.lane.b32.xlu0 %v2328, 256
        %v3385 = vpop.permute.xlu0 %3384
        %s3387 = sor.u32 256, 8
        %3388 = vbcast.lane.b32.xlu0 %v2328, %s3387
        %v3389 = vpop.permute.xlu0 %3388
        %3391 = vbcast.lane.b32.xlu0 %v2340, 256
        %v3392 = vpop.permute.xlu0 %3391
        %s3394 = sor.u32 256, 8
        %3395 = vbcast.lane.b32.xlu0 %v2340, %s3394
        %v3396 = vpop.permute.xlu0 %3395
        %3398 = vbcast.lane.b32.xlu0 %v2352, 256
        %v3399 = vpop.permute.xlu0 %3398
        %s3401 = sor.u32 256, 8
        %3402 = vbcast.lane.b32.xlu0 %v2352, %s3401
        %v3403 = vpop.permute.xlu0 %3402
        %3405 = vbcast.lane.b32.xlu0 %v2364, 256
        %v3406 = vpop.permute.xlu0 %3405
        %s3408 = sor.u32 256, 8
        %3409 = vbcast.lane.b32.xlu0 %v2364, %s3408
        %v3410 = vpop.permute.xlu0 %3409
        %3412 = vbcast.lane.b32.xlu0 %v2376, 256
        %v3413 = vpop.permute.xlu0 %3412
        %s3415 = sor.u32 256, 8
        %3416 = vbcast.lane.b32.xlu0 %v2376, %s3415
        %v3417 = vpop.permute.xlu0 %3416
        %3419 = vbcast.lane.b32.xlu0 %v2388, 256
        %v3420 = vpop.permute.xlu0 %3419
        %s3422 = sor.u32 256, 8
        %3423 = vbcast.lane.b32.xlu0 %v2388, %s3422
        %v3424 = vpop.permute.xlu0 %3423
        %3426 = vbcast.lane.b32.xlu0 %v2400, 256
        %v3427 = vpop.permute.xlu0 %3426
        %s3429 = sor.u32 256, 8
        %3430 = vbcast.lane.b32.xlu0 %v2400, %s3429
        %v3431 = vpop.permute.xlu0 %3430
        %3433 = vbcast.lane.b32.xlu0 %v2412, 256
        %v3434 = vpop.permute.xlu0 %3433
        %s3436 = sor.u32 256, 8
        %3437 = vbcast.lane.b32.xlu0 %v2412, %s3436
        %v3438 = vpop.permute.xlu0 %3437
        %3440 = vbcast.lane.b32.xlu0 %v2424, 256
        %v3441 = vpop.permute.xlu0 %3440
        %s3443 = sor.u32 256, 8
        %3444 = vbcast.lane.b32.xlu0 %v2424, %s3443
        %v3445 = vpop.permute.xlu0 %3444
        %v3446 = vmul.f32 %v3224, %v2505
        %v3447 = vmul.f32 %v3228, %v2505
        %v3448 = vmul.f32 %v3231, %v2514
        %v3449 = vmul.f32 %v3235, %v2514
        %v3450 = vmul.f32 %v3238, %v2523
        %v3451 = vmul.f32 %v3242, %v2523
        %v3452 = vmul.f32 %v3245, %v2532
        %v3453 = vmul.f32 %v3249, %v2532
        %v3454 = vmul.f32 %v3252, %v2541
        %v3455 = vmul.f32 %v3256, %v2541
        %v3456 = vmul.f32 %v3259, %v2550
        %v3457 = vmul.f32 %v3263, %v2550
        %v3458 = vmul.f32 %v3266, %v2559
        %v3459 = vmul.f32 %v3270, %v2559
        %v3460 = vmul.f32 %v3273, %v2568
        %v3461 = vmul.f32 %v3277, %v2568
        %v3462 = vmul.f32 %v3280, %v2577
        %v3463 = vmul.f32 %v3284, %v2577
        %v3464 = vmul.f32 %v3287, %v2586
        %v3465 = vmul.f32 %v3291, %v2586
        %v3466 = vmul.f32 %v3294, %v2595
        %v3467 = vmul.f32 %v3298, %v2595
        %v3468 = vmul.f32 %v3301, %v2604
        %v3469 = vmul.f32 %v3305, %v2604
        %v3470 = vmul.f32 %v3308, %v2613
        %v3471 = vmul.f32 %v3312, %v2613
        %v3472 = vmul.f32 %v3315, %v2622
        %v3473 = vmul.f32 %v3319, %v2622
        %v3474 = vmul.f32 %v3322, %v2631
        %v3475 = vmul.f32 %v3326, %v2631
        %v3476 = vmul.f32 %v3329, %v2640
        %v3477 = vmul.f32 %v3333, %v2640
        %v3478 = vmul.f32 %v3336, %v2649
        %v3479 = vmul.f32 %v3340, %v2649
        %v3480 = vmul.f32 %v3343, %v2658
        %v3481 = vmul.f32 %v3347, %v2658
        %v3482 = vmul.f32 %v3350, %v2667
        %v3483 = vmul.f32 %v3354, %v2667
        %v3484 = vmul.f32 %v3357, %v2676
        %v3485 = vmul.f32 %v3361, %v2676
        %v3486 = vmul.f32 %v3364, %v2685
        %v3487 = vmul.f32 %v3368, %v2685
        %v3488 = vmul.f32 %v3371, %v2694
        %v3489 = vmul.f32 %v3375, %v2694
        %v3490 = vmul.f32 %v3378, %v2703
        %v3491 = vmul.f32 %v3382, %v2703
        %v3492 = vmul.f32 %v3385, %v2712
        %v3493 = vmul.f32 %v3389, %v2712
        %v3494 = vmul.f32 %v3392, %v2721
        %v3495 = vmul.f32 %v3396, %v2721
        %v3496 = vmul.f32 %v3399, %v2730
        %v3497 = vmul.f32 %v3403, %v2730
        %v3498 = vmul.f32 %v3406, %v2739
        %v3499 = vmul.f32 %v3410, %v2739
        %v3500 = vmul.f32 %v3413, %v2748
        %v3501 = vmul.f32 %v3417, %v2748
        %v3502 = vmul.f32 %v3420, %v2757
        %v3503 = vmul.f32 %v3424, %v2757
        %v3504 = vmul.f32 %v3427, %v2766
        %v3505 = vmul.f32 %v3431, %v2766
        %v3506 = vmul.f32 %v3434, %v2775
        %v3507 = vmul.f32 %v3438, %v2775
        %v3508 = vmul.f32 %v3441, %v2784
        %v3509 = vmul.f32 %v3445, %v2784
        %v3510 = vadd.f32 %v662, %v3446
        %v3511 = vadd.f32 %v663, %v3447
        %v3512 = vadd.f32 %v664, %v3448
        %v3513 = vadd.f32 %v665, %v3449
        %v3514 = vadd.f32 %v666, %v3450
        %v3515 = vadd.f32 %v667, %v3451
        %v3516 = vadd.f32 %v668, %v3452
        %v3517 = vadd.f32 %v669, %v3453
        %v3518 = vadd.f32 %v670, %v3454
        %v3519 = vadd.f32 %v671, %v3455
        %v3520 = vadd.f32 %v672, %v3456
        %v3521 = vadd.f32 %v673, %v3457
        %v3522 = vadd.f32 %v674, %v3458
        %v3523 = vadd.f32 %v675, %v3459
        %v3524 = vadd.f32 %v676, %v3460
        %v3525 = vadd.f32 %v677, %v3461
        %v3526 = vadd.f32 %v678, %v3462
        %v3527 = vadd.f32 %v679, %v3463
        %v3528 = vadd.f32 %v680, %v3464
        %v3529 = vadd.f32 %v681, %v3465
        %v3530 = vadd.f32 %v682, %v3466
        %v3531 = vadd.f32 %v683, %v3467
        %v3532 = vadd.f32 %v684, %v3468
        %v3533 = vadd.f32 %v685, %v3469
        %v3534 = vadd.f32 %v686, %v3470
        %v3535 = vadd.f32 %v687, %v3471
        %v3536 = vadd.f32 %v688, %v3472
        %v3537 = vadd.f32 %v689, %v3473
        %v3538 = vadd.f32 %v690, %v3474
        %v3539 = vadd.f32 %v691, %v3475
        %v3540 = vadd.f32 %v692, %v3476
        %v3541 = vadd.f32 %v693, %v3477
        %v3542 = vadd.f32 %v694, %v3478
        %v3543 = vadd.f32 %v695, %v3479
        %v3544 = vadd.f32 %v696, %v3480
        %v3545 = vadd.f32 %v697, %v3481
        %v3546 = vadd.f32 %v698, %v3482
        %v3547 = vadd.f32 %v699, %v3483
        %v3548 = vadd.f32 %v700, %v3484
        %v3549 = vadd.f32 %v701, %v3485
        %v3550 = vadd.f32 %v702, %v3486
        %v3551 = vadd.f32 %v703, %v3487
        %v3552 = vadd.f32 %v704, %v3488
        %v3553 = vadd.f32 %v705, %v3489
        %v3554 = vadd.f32 %v706, %v3490
        %v3555 = vadd.f32 %v707, %v3491
        %v3556 = vadd.f32 %v708, %v3492
        %v3557 = vadd.f32 %v709, %v3493
        %v3558 = vadd.f32 %v710, %v3494
        %v3559 = vadd.f32 %v711, %v3495
        %v3560 = vadd.f32 %v712, %v3496
        %v3561 = vadd.f32 %v713, %v3497
        %v3562 = vadd.f32 %v714, %v3498
        %v3563 = vadd.f32 %v715, %v3499
        %v3564 = vadd.f32 %v716, %v3500
        %v3565 = vadd.f32 %v717, %v3501
        %v3566 = vadd.f32 %v718, %v3502
        %v3567 = vadd.f32 %v719, %v3503
        %v3568 = vadd.f32 %v720, %v3504
        %v3569 = vadd.f32 %v721, %v3505
        %v3570 = vadd.f32 %v722, %v3506
        %v3571 = vadd.f32 %v723, %v3507
        %v3572 = vadd.f32 %v724, %v3508
        %v3573 = vadd.f32 %v725, %v3509
        %v3574 = vmul.f32 %v1859, %v1540
        %v3575 = vmul.f32 %v1862, %v1540
        %v3576 = vmul.f32 %v1865, %v1544
        %v3577 = vmul.f32 %v1868, %v1544
        %v3578 = vmul.f32 %v1871, %v1548
        %v3579 = vmul.f32 %v1874, %v1548
        %v3580 = vmul.f32 %v1877, %v1552
        %v3581 = vmul.f32 %v1880, %v1552
        %v3582 = vmul.f32 %v1883, %v1556
        %v3583 = vmul.f32 %v1886, %v1556
        %v3584 = vmul.f32 %v1889, %v1560
        %v3585 = vmul.f32 %v1892, %v1560
        %v3586 = vmul.f32 %v1895, %v1564
        %v3587 = vmul.f32 %v1898, %v1564
        %v3588 = vmul.f32 %v1901, %v1568
        %v3589 = vmul.f32 %v1904, %v1568
        %v3590 = vmul.f32 %v1907, %v1572
        %v3591 = vmul.f32 %v1910, %v1572
        %v3592 = vmul.f32 %v1913, %v1576
        %v3593 = vmul.f32 %v1916, %v1576
        %v3594 = vmul.f32 %v1919, %v1580
        %v3595 = vmul.f32 %v1922, %v1580
        %v3596 = vmul.f32 %v1925, %v1584
        %v3597 = vmul.f32 %v1928, %v1584
        %v3598 = vmul.f32 %v1931, %v1588
        %v3599 = vmul.f32 %v1934, %v1588
        %v3600 = vmul.f32 %v1937, %v1592
        %v3601 = vmul.f32 %v1940, %v1592
        %v3602 = vmul.f32 %v1943, %v1596
        %v3603 = vmul.f32 %v1946, %v1596
        %v3604 = vmul.f32 %v1949, %v1600
        %v3605 = vmul.f32 %v1952, %v1600
        %v3606 = vmul.f32 %v1955, %v1604
        %v3607 = vmul.f32 %v1958, %v1604
        %v3608 = vmul.f32 %v1961, %v1608
        %v3609 = vmul.f32 %v1964, %v1608
        %v3610 = vmul.f32 %v1967, %v1612
        %v3611 = vmul.f32 %v1970, %v1612
        %v3612 = vmul.f32 %v1973, %v1616
        %v3613 = vmul.f32 %v1976, %v1616
        %v3614 = vmul.f32 %v1979, %v1620
        %v3615 = vmul.f32 %v1982, %v1620
        %v3616 = vmul.f32 %v1985, %v1624
        %v3617 = vmul.f32 %v1988, %v1624
        %v3618 = vmul.f32 %v1991, %v1628
        %v3619 = vmul.f32 %v1994, %v1628
        %v3620 = vmul.f32 %v1997, %v1632
        %v3621 = vmul.f32 %v2000, %v1632
        %v3622 = vmul.f32 %v2003, %v1636
        %v3623 = vmul.f32 %v2006, %v1636
        %v3624 = vmul.f32 %v2009, %v1640
        %v3625 = vmul.f32 %v2012, %v1640
        %v3626 = vmul.f32 %v2015, %v1644
        %v3627 = vmul.f32 %v2018, %v1644
        %v3628 = vmul.f32 %v2021, %v1648
        %v3629 = vmul.f32 %v2024, %v1648
        %v3630 = vmul.f32 %v2027, %v1652
        %v3631 = vmul.f32 %v2030, %v1652
        %v3632 = vmul.f32 %v2033, %v1656
        %v3633 = vmul.f32 %v2036, %v1656
        %v3634 = vmul.f32 %v2039, %v1660
        %v3635 = vmul.f32 %v2042, %v1660
        %v3636 = vmul.f32 %v2045, %v1664
        %v3637 = vmul.f32 %v2048, %v1664
        %v3638 = vadd.f32 %v3510, %v3574
        %v3639 = vadd.f32 %v3511, %v3575
        %v3640 = vadd.f32 %v3512, %v3576
        %v3641 = vadd.f32 %v3513, %v3577
        %v3642 = vadd.f32 %v3514, %v3578
        %v3643 = vadd.f32 %v3515, %v3579
        %v3644 = vadd.f32 %v3516, %v3580
        %v3645 = vadd.f32 %v3517, %v3581
        %v3646 = vadd.f32 %v3518, %v3582
        %v3647 = vadd.f32 %v3519, %v3583
        %v3648 = vadd.f32 %v3520, %v3584
        %v3649 = vadd.f32 %v3521, %v3585
        %v3650 = vadd.f32 %v3522, %v3586
        %v3651 = vadd.f32 %v3523, %v3587
        %v3652 = vadd.f32 %v3524, %v3588
        %v3653 = vadd.f32 %v3525, %v3589
        %v3654 = vadd.f32 %v3526, %v3590
        %v3655 = vadd.f32 %v3527, %v3591
        %v3656 = vadd.f32 %v3528, %v3592
        %v3657 = vadd.f32 %v3529, %v3593
        %v3658 = vadd.f32 %v3530, %v3594
        %v3659 = vadd.f32 %v3531, %v3595
        %v3660 = vadd.f32 %v3532, %v3596
        %v3661 = vadd.f32 %v3533, %v3597
        %v3662 = vadd.f32 %v3534, %v3598
        %v3663 = vadd.f32 %v3535, %v3599
        %v3664 = vadd.f32 %v3536, %v3600
        %v3665 = vadd.f32 %v3537, %v3601
        %v3666 = vadd.f32 %v3538, %v3602
        %v3667 = vadd.f32 %v3539, %v3603
        %v3668 = vadd.f32 %v3540, %v3604
        %v3669 = vadd.f32 %v3541, %v3605
        %v3670 = vadd.f32 %v3542, %v3606
        %v3671 = vadd.f32 %v3543, %v3607
        %v3672 = vadd.f32 %v3544, %v3608
        %v3673 = vadd.f32 %v3545, %v3609
        %v3674 = vadd.f32 %v3546, %v3610
        %v3675 = vadd.f32 %v3547, %v3611
        %v3676 = vadd.f32 %v3548, %v3612
        %v3677 = vadd.f32 %v3549, %v3613
        %v3678 = vadd.f32 %v3550, %v3614
        %v3679 = vadd.f32 %v3551, %v3615
        %v3680 = vadd.f32 %v3552, %v3616
        %v3681 = vadd.f32 %v3553, %v3617
        %v3682 = vadd.f32 %v3554, %v3618
        %v3683 = vadd.f32 %v3555, %v3619
        %v3684 = vadd.f32 %v3556, %v3620
        %v3685 = vadd.f32 %v3557, %v3621
        %v3686 = vadd.f32 %v3558, %v3622
        %v3687 = vadd.f32 %v3559, %v3623
        %v3688 = vadd.f32 %v3560, %v3624
        %v3689 = vadd.f32 %v3561, %v3625
        %v3690 = vadd.f32 %v3562, %v3626
        %v3691 = vadd.f32 %v3563, %v3627
        %v3692 = vadd.f32 %v3564, %v3628
        %v3693 = vadd.f32 %v3565, %v3629
        %v3694 = vadd.f32 %v3566, %v3630
        %v3695 = vadd.f32 %v3567, %v3631
        %v3696 = vadd.f32 %v3568, %v3632
        %v3697 = vadd.f32 %v3569, %v3633
        %v3698 = vadd.f32 %v3570, %v3634
        %v3699 = vadd.f32 %v3571, %v3635
        %v3700 = vadd.f32 %v3572, %v3636
        %v3701 = vadd.f32 %v3573, %v3637
        %v3706 = vlaneseq
        %v3707 = vshrl.u32 %v3706, 7
        %v3708 = vsub.s32 0, %v3707
        %v3709 = vrot.slane %v3203, %v3708
        %v3710 = vlaneseq
        %v3711 = vshrl.u32 %v3710, 7
        %v3712 = vsub.s32 1, %v3711
        %v3713 = vrot.slane %v3203, %v3712
        %v3714 = vlaneseq
        %v3715 = vshrl.u32 %v3714, 7
        %v3716 = vsub.s32 2, %v3715
        %v3717 = vrot.slane %v3203, %v3716
        %v3718 = vlaneseq
        %v3719 = vshrl.u32 %v3718, 7
        %v3720 = vsub.s32 3, %v3719
        %v3721 = vrot.slane %v3203, %v3720
        %v3722 = vlaneseq
        %v3723 = vshrl.u32 %v3722, 7
        %v3724 = vsub.s32 4, %v3723
        %v3725 = vrot.slane %v3203, %v3724
        %v3726 = vlaneseq
        %v3727 = vshrl.u32 %v3726, 7
        %v3728 = vsub.s32 5, %v3727
        %v3729 = vrot.slane %v3203, %v3728
        %v3730 = vlaneseq
        %v3731 = vshrl.u32 %v3730, 7
        %v3732 = vsub.s32 6, %v3731
        %v3733 = vrot.slane %v3203, %v3732
        %v3734 = vlaneseq
        %v3735 = vshrl.u32 %v3734, 7
        %v3736 = vsub.s32 7, %v3735
        %v3737 = vrot.slane %v3203, %v3736
        %v3738 = vlaneseq
        %v3739 = vshrl.u32 %v3738, 7
        %v3740 = vsub.s32 0, %v3739
        %v3741 = vrot.slane %v3206, %v3740
        %v3742 = vlaneseq
        %v3743 = vshrl.u32 %v3742, 7
        %v3744 = vsub.s32 1, %v3743
        %v3745 = vrot.slane %v3206, %v3744
        %v3746 = vlaneseq
        %v3747 = vshrl.u32 %v3746, 7
        %v3748 = vsub.s32 2, %v3747
        %v3749 = vrot.slane %v3206, %v3748
        %v3750 = vlaneseq
        %v3751 = vshrl.u32 %v3750, 7
        %v3752 = vsub.s32 3, %v3751
        %v3753 = vrot.slane %v3206, %v3752
        %v3754 = vlaneseq
        %v3755 = vshrl.u32 %v3754, 7
        %v3756 = vsub.s32 4, %v3755
        %v3757 = vrot.slane %v3206, %v3756
        %v3758 = vlaneseq
        %v3759 = vshrl.u32 %v3758, 7
        %v3760 = vsub.s32 5, %v3759
        %v3761 = vrot.slane %v3206, %v3760
        %v3762 = vlaneseq
        %v3763 = vshrl.u32 %v3762, 7
        %v3764 = vsub.s32 6, %v3763
        %v3765 = vrot.slane %v3206, %v3764
        %v3766 = vlaneseq
        %v3767 = vshrl.u32 %v3766, 7
        %v3768 = vsub.s32 7, %v3767
        %v3769 = vrot.slane %v3206, %v3768
        %v3770 = vlaneseq
        %v3771 = vshrl.u32 %v3770, 7
        %v3772 = vsub.s32 0, %v3771
        %v3773 = vrot.slane %v3209, %v3772
        %v3774 = vlaneseq
        %v3775 = vshrl.u32 %v3774, 7
        %v3776 = vsub.s32 1, %v3775
        %v3777 = vrot.slane %v3209, %v3776
        %v3778 = vlaneseq
        %v3779 = vshrl.u32 %v3778, 7
        %v3780 = vsub.s32 2, %v3779
        %v3781 = vrot.slane %v3209, %v3780
        %v3782 = vlaneseq
        %v3783 = vshrl.u32 %v3782, 7
        %v3784 = vsub.s32 3, %v3783
        %v3785 = vrot.slane %v3209, %v3784
        %v3786 = vlaneseq
        %v3787 = vshrl.u32 %v3786, 7
        %v3788 = vsub.s32 4, %v3787
        %v3789 = vrot.slane %v3209, %v3788
        %v3790 = vlaneseq
        %v3791 = vshrl.u32 %v3790, 7
        %v3792 = vsub.s32 5, %v3791
        %v3793 = vrot.slane %v3209, %v3792
        %v3794 = vlaneseq
        %v3795 = vshrl.u32 %v3794, 7
        %v3796 = vsub.s32 6, %v3795
        %v3797 = vrot.slane %v3209, %v3796
        %v3798 = vlaneseq
        %v3799 = vshrl.u32 %v3798, 7
        %v3800 = vsub.s32 7, %v3799
        %v3801 = vrot.slane %v3209, %v3800
        %v3802 = vlaneseq
        %v3803 = vshrl.u32 %v3802, 7
        %v3804 = vsub.s32 0, %v3803
        %v3805 = vrot.slane %v3212, %v3804
        %v3806 = vlaneseq
        %v3807 = vshrl.u32 %v3806, 7
        %v3808 = vsub.s32 1, %v3807
        %v3809 = vrot.slane %v3212, %v3808
        %v3810 = vlaneseq
        %v3811 = vshrl.u32 %v3810, 7
        %v3812 = vsub.s32 2, %v3811
        %v3813 = vrot.slane %v3212, %v3812
        %v3814 = vlaneseq
        %v3815 = vshrl.u32 %v3814, 7
        %v3816 = vsub.s32 3, %v3815
        %v3817 = vrot.slane %v3212, %v3816
        %v3818 = vlaneseq
        %v3819 = vshrl.u32 %v3818, 7
        %v3820 = vsub.s32 4, %v3819
        %v3821 = vrot.slane %v3212, %v3820
        %v3822 = vlaneseq
        %v3823 = vshrl.u32 %v3822, 7
        %v3824 = vsub.s32 5, %v3823
        %v3825 = vrot.slane %v3212, %v3824
        %v3826 = vlaneseq
        %v3827 = vshrl.u32 %v3826, 7
        %v3828 = vsub.s32 6, %v3827
        %v3829 = vrot.slane %v3212, %v3828
        %v3830 = vlaneseq
        %v3831 = vshrl.u32 %v3830, 7
        %v3832 = vsub.s32 7, %v3831
        %v3833 = vrot.slane %v3212, %v3832
        %v3866 = vmul.f32 %v3709, %v3224
        %v3867 = vmul.f32 %v3709, %v3228
        %v3868 = vmul.f32 %v3713, %v3231
        %v3869 = vmul.f32 %v3713, %v3235
        %v3870 = vmul.f32 %v3717, %v3238
        %v3871 = vmul.f32 %v3717, %v3242
        %v3872 = vmul.f32 %v3721, %v3245
        %v3873 = vmul.f32 %v3721, %v3249
        %v3874 = vmul.f32 %v3725, %v3252
        %v3875 = vmul.f32 %v3725, %v3256
        %v3876 = vmul.f32 %v3729, %v3259
        %v3877 = vmul.f32 %v3729, %v3263
        %v3878 = vmul.f32 %v3733, %v3266
        %v3879 = vmul.f32 %v3733, %v3270
        %v3880 = vmul.f32 %v3737, %v3273
        %v3881 = vmul.f32 %v3737, %v3277
        %v3882 = vmul.f32 %v3741, %v3280
        %v3883 = vmul.f32 %v3741, %v3284
        %v3884 = vmul.f32 %v3745, %v3287
        %v3885 = vmul.f32 %v3745, %v3291
        %v3886 = vmul.f32 %v3749, %v3294
        %v3887 = vmul.f32 %v3749, %v3298
        %v3888 = vmul.f32 %v3753, %v3301
        %v3889 = vmul.f32 %v3753, %v3305
        %v3890 = vmul.f32 %v3757, %v3308
        %v3891 = vmul.f32 %v3757, %v3312
        %v3892 = vmul.f32 %v3761, %v3315
        %v3893 = vmul.f32 %v3761, %v3319
        %v3894 = vmul.f32 %v3765, %v3322
        %v3895 = vmul.f32 %v3765, %v3326
        %v3896 = vmul.f32 %v3769, %v3329
        %v3897 = vmul.f32 %v3769, %v3333
        %v3898 = vmul.f32 %v3773, %v3336
        %v3899 = vmul.f32 %v3773, %v3340
        %v3900 = vmul.f32 %v3777, %v3343
        %v3901 = vmul.f32 %v3777, %v3347
        %v3902 = vmul.f32 %v3781, %v3350
        %v3903 = vmul.f32 %v3781, %v3354
        %v3904 = vmul.f32 %v3785, %v3357
        %v3905 = vmul.f32 %v3785, %v3361
        %v3906 = vmul.f32 %v3789, %v3364
        %v3907 = vmul.f32 %v3789, %v3368
        %v3908 = vmul.f32 %v3793, %v3371
        %v3909 = vmul.f32 %v3793, %v3375
        %v3910 = vmul.f32 %v3797, %v3378
        %v3911 = vmul.f32 %v3797, %v3382
        %v3912 = vmul.f32 %v3801, %v3385
        %v3913 = vmul.f32 %v3801, %v3389
        %v3914 = vmul.f32 %v3805, %v3392
        %v3915 = vmul.f32 %v3805, %v3396
        %v3916 = vmul.f32 %v3809, %v3399
        %v3917 = vmul.f32 %v3809, %v3403
        %v3918 = vmul.f32 %v3813, %v3406
        %v3919 = vmul.f32 %v3813, %v3410
        %v3920 = vmul.f32 %v3817, %v3413
        %v3921 = vmul.f32 %v3817, %v3417
        %v3922 = vmul.f32 %v3821, %v3420
        %v3923 = vmul.f32 %v3821, %v3424
        %v3924 = vmul.f32 %v3825, %v3427
        %v3925 = vmul.f32 %v3825, %v3431
        %v3926 = vmul.f32 %v3829, %v3434
        %v3927 = vmul.f32 %v3829, %v3438
        %v3928 = vmul.f32 %v3833, %v3441
        %v3929 = vmul.f32 %v3833, %v3445
        %v3930 = vmul.f32 %v3866, %v1540
        %v3931 = vmul.f32 %v3867, %v1540
        %v3932 = vmul.f32 %v3868, %v1544
        %v3933 = vmul.f32 %v3869, %v1544
        %v3934 = vmul.f32 %v3870, %v1548
        %v3935 = vmul.f32 %v3871, %v1548
        %v3936 = vmul.f32 %v3872, %v1552
        %v3937 = vmul.f32 %v3873, %v1552
        %v3938 = vmul.f32 %v3874, %v1556
        %v3939 = vmul.f32 %v3875, %v1556
        %v3940 = vmul.f32 %v3876, %v1560
        %v3941 = vmul.f32 %v3877, %v1560
        %v3942 = vmul.f32 %v3878, %v1564
        %v3943 = vmul.f32 %v3879, %v1564
        %v3944 = vmul.f32 %v3880, %v1568
        %v3945 = vmul.f32 %v3881, %v1568
        %v3946 = vmul.f32 %v3882, %v1572
        %v3947 = vmul.f32 %v3883, %v1572
        %v3948 = vmul.f32 %v3884, %v1576
        %v3949 = vmul.f32 %v3885, %v1576
        %v3950 = vmul.f32 %v3886, %v1580
        %v3951 = vmul.f32 %v3887, %v1580
        %v3952 = vmul.f32 %v3888, %v1584
        %v3953 = vmul.f32 %v3889, %v1584
        %v3954 = vmul.f32 %v3890, %v1588
        %v3955 = vmul.f32 %v3891, %v1588
        %v3956 = vmul.f32 %v3892, %v1592
        %v3957 = vmul.f32 %v3893, %v1592
        %v3958 = vmul.f32 %v3894, %v1596
        %v3959 = vmul.f32 %v3895, %v1596
        %v3960 = vmul.f32 %v3896, %v1600
        %v3961 = vmul.f32 %v3897, %v1600
        %v3962 = vmul.f32 %v3898, %v1604
        %v3963 = vmul.f32 %v3899, %v1604
        %v3964 = vmul.f32 %v3900, %v1608
        %v3965 = vmul.f32 %v3901, %v1608
        %v3966 = vmul.f32 %v3902, %v1612
        %v3967 = vmul.f32 %v3903, %v1612
        %v3968 = vmul.f32 %v3904, %v1616
        %v3969 = vmul.f32 %v3905, %v1616
        %v3970 = vmul.f32 %v3906, %v1620
        %v3971 = vmul.f32 %v3907, %v1620
        %v3972 = vmul.f32 %v3908, %v1624
        %v3973 = vmul.f32 %v3909, %v1624
        %v3974 = vmul.f32 %v3910, %v1628
        %v3975 = vmul.f32 %v3911, %v1628
        %v3976 = vmul.f32 %v3912, %v1632
        %v3977 = vmul.f32 %v3913, %v1632
        %v3978 = vmul.f32 %v3914, %v1636
        %v3979 = vmul.f32 %v3915, %v1636
        %v3980 = vmul.f32 %v3916, %v1640
        %v3981 = vmul.f32 %v3917, %v1640
        %v3982 = vmul.f32 %v3918, %v1644
        %v3983 = vmul.f32 %v3919, %v1644
        %v3984 = vmul.f32 %v3920, %v1648
        %v3985 = vmul.f32 %v3921, %v1648
        %v3986 = vmul.f32 %v3922, %v1652
        %v3987 = vmul.f32 %v3923, %v1652
        %v3988 = vmul.f32 %v3924, %v1656
        %v3989 = vmul.f32 %v3925, %v1656
        %v3990 = vmul.f32 %v3926, %v1660
        %v3991 = vmul.f32 %v3927, %v1660
        %v3992 = vmul.f32 %v3928, %v1664
        %v3993 = vmul.f32 %v3929, %v1664
        %v3994 = vadd.f32 %v3638, %v3930
        %v3995 = vadd.f32 %v3639, %v3931
        %v3996 = vadd.f32 %v3640, %v3932
        %v3997 = vadd.f32 %v3641, %v3933
        %v3998 = vadd.f32 %v3642, %v3934
        %v3999 = vadd.f32 %v3643, %v3935
        %v4000 = vadd.f32 %v3644, %v3936
        %v4001 = vadd.f32 %v3645, %v3937
        %v4002 = vadd.f32 %v3646, %v3938
        %v4003 = vadd.f32 %v3647, %v3939
        %v4004 = vadd.f32 %v3648, %v3940
        %v4005 = vadd.f32 %v3649, %v3941
        %v4006 = vadd.f32 %v3650, %v3942
        %v4007 = vadd.f32 %v3651, %v3943
        %v4008 = vadd.f32 %v3652, %v3944
        %v4009 = vadd.f32 %v3653, %v3945
        %v4010 = vadd.f32 %v3654, %v3946
        %v4011 = vadd.f32 %v3655, %v3947
        %v4012 = vadd.f32 %v3656, %v3948
        %v4013 = vadd.f32 %v3657, %v3949
        %v4014 = vadd.f32 %v3658, %v3950
        %v4015 = vadd.f32 %v3659, %v3951
        %v4016 = vadd.f32 %v3660, %v3952
        %v4017 = vadd.f32 %v3661, %v3953
        %v4018 = vadd.f32 %v3662, %v3954
        %v4019 = vadd.f32 %v3663, %v3955
        %v4020 = vadd.f32 %v3664, %v3956
        %v4021 = vadd.f32 %v3665, %v3957
        %v4022 = vadd.f32 %v3666, %v3958
        %v4023 = vadd.f32 %v3667, %v3959
        %v4024 = vadd.f32 %v3668, %v3960
        %v4025 = vadd.f32 %v3669, %v3961
        %v4026 = vadd.f32 %v3670, %v3962
        %v4027 = vadd.f32 %v3671, %v3963
        %v4028 = vadd.f32 %v3672, %v3964
        %v4029 = vadd.f32 %v3673, %v3965
        %v4030 = vadd.f32 %v3674, %v3966
        %v4031 = vadd.f32 %v3675, %v3967
        %v4032 = vadd.f32 %v3676, %v3968
        %v4033 = vadd.f32 %v3677, %v3969
        %v4034 = vadd.f32 %v3678, %v3970
        %v4035 = vadd.f32 %v3679, %v3971
        %v4036 = vadd.f32 %v3680, %v3972
        %v4037 = vadd.f32 %v3681, %v3973
        %v4038 = vadd.f32 %v3682, %v3974
        %v4039 = vadd.f32 %v3683, %v3975
        %v4040 = vadd.f32 %v3684, %v3976
        %v4041 = vadd.f32 %v3685, %v3977
        %v4042 = vadd.f32 %v3686, %v3978
        %v4043 = vadd.f32 %v3687, %v3979
        %v4044 = vadd.f32 %v3688, %v3980
        %v4045 = vadd.f32 %v3689, %v3981
        %v4046 = vadd.f32 %v3690, %v3982
        %v4047 = vadd.f32 %v3691, %v3983
        %v4048 = vadd.f32 %v3692, %v3984
        %v4049 = vadd.f32 %v3693, %v3985
        %v4050 = vadd.f32 %v3694, %v3986
        %v4051 = vadd.f32 %v3695, %v3987
        %v4052 = vadd.f32 %v3696, %v3988
        %v4053 = vadd.f32 %v3697, %v3989
        %v4054 = vadd.f32 %v3698, %v3990
        %v4055 = vadd.f32 %v3699, %v3991
        %v4056 = vadd.f32 %v3700, %v3992
        %v4057 = vadd.f32 %v3701, %v3993
        %v4058 = vlaneseq
        %v4059 = vshrl.u32 %v4058, 7
        %v4060 = vsub.s32 0, %v4059
        %v4061 = vrot.slane %v1049, %v4060
        %s4063 = sor.u32 256, 48
        %4064 = vbcast.lane.b32.xlu0 %v4061, %s4063
        %v4065 = vpop.permute.xlu0 %4064
        %s4067 = sor.u32 256, 56
        %4068 = vbcast.lane.b32.xlu0 %v4061, %s4067
        %v4069 = vpop.permute.xlu0 %4068
        %v4070 = vlaneseq
        %v4071 = vshrl.u32 %v4070, 7
        %v4072 = vsub.s32 1, %v4071
        %v4073 = vrot.slane %v1049, %v4072
        %s4075 = sor.u32 256, 48
        %4076 = vbcast.lane.b32.xlu0 %v4073, %s4075
        %v4077 = vpop.permute.xlu0 %4076
        %s4079 = sor.u32 256, 56
        %4080 = vbcast.lane.b32.xlu0 %v4073, %s4079
        %v4081 = vpop.permute.xlu0 %4080
        %v4082 = vlaneseq
        %v4083 = vshrl.u32 %v4082, 7
        %v4084 = vsub.s32 2, %v4083
        %v4085 = vrot.slane %v1049, %v4084
        %s4087 = sor.u32 256, 48
        %4088 = vbcast.lane.b32.xlu0 %v4085, %s4087
        %v4089 = vpop.permute.xlu0 %4088
        %s4091 = sor.u32 256, 56
        %4092 = vbcast.lane.b32.xlu0 %v4085, %s4091
        %v4093 = vpop.permute.xlu0 %4092
        %v4094 = vlaneseq
        %v4095 = vshrl.u32 %v4094, 7
        %v4096 = vsub.s32 3, %v4095
        %v4097 = vrot.slane %v1049, %v4096
        %s4099 = sor.u32 256, 48
        %4100 = vbcast.lane.b32.xlu0 %v4097, %s4099
        %v4101 = vpop.permute.xlu0 %4100
        %s4103 = sor.u32 256, 56
        %4104 = vbcast.lane.b32.xlu0 %v4097, %s4103
        %v4105 = vpop.permute.xlu0 %4104
        %v4106 = vlaneseq
        %v4107 = vshrl.u32 %v4106, 7
        %v4108 = vsub.s32 4, %v4107
        %v4109 = vrot.slane %v1049, %v4108
        %s4111 = sor.u32 256, 48
        %4112 = vbcast.lane.b32.xlu0 %v4109, %s4111
        %v4113 = vpop.permute.xlu0 %4112
        %s4115 = sor.u32 256, 56
        %4116 = vbcast.lane.b32.xlu0 %v4109, %s4115
        %v4117 = vpop.permute.xlu0 %4116
        %v4118 = vlaneseq
        %v4119 = vshrl.u32 %v4118, 7
        %v4120 = vsub.s32 5, %v4119
        %v4121 = vrot.slane %v1049, %v4120
        %s4123 = sor.u32 256, 48
        %4124 = vbcast.lane.b32.xlu0 %v4121, %s4123
        %v4125 = vpop.permute.xlu0 %4124
        %s4127 = sor.u32 256, 56
        %4128 = vbcast.lane.b32.xlu0 %v4121, %s4127
        %v4129 = vpop.permute.xlu0 %4128
        %v4130 = vlaneseq
        %v4131 = vshrl.u32 %v4130, 7
        %v4132 = vsub.s32 6, %v4131
        %v4133 = vrot.slane %v1049, %v4132
        %s4135 = sor.u32 256, 48
        %4136 = vbcast.lane.b32.xlu0 %v4133, %s4135
        %v4137 = vpop.permute.xlu0 %4136
        %s4139 = sor.u32 256, 56
        %4140 = vbcast.lane.b32.xlu0 %v4133, %s4139
        %v4141 = vpop.permute.xlu0 %4140
        %v4142 = vlaneseq
        %v4143 = vshrl.u32 %v4142, 7
        %v4144 = vsub.s32 7, %v4143
        %v4145 = vrot.slane %v1049, %v4144
        %s4147 = sor.u32 256, 48
        %4148 = vbcast.lane.b32.xlu0 %v4145, %s4147
        %v4149 = vpop.permute.xlu0 %4148
        %s4151 = sor.u32 256, 56
        %4152 = vbcast.lane.b32.xlu0 %v4145, %s4151
        %v4153 = vpop.permute.xlu0 %4152
        %v4154 = vlaneseq
        %v4155 = vshrl.u32 %v4154, 7
        %v4156 = vsub.s32 0, %v4155
        %v4157 = vrot.slane %v1050, %v4156
        %s4159 = sor.u32 256, 48
        %4160 = vbcast.lane.b32.xlu0 %v4157, %s4159
        %v4161 = vpop.permute.xlu0 %4160
        %s4163 = sor.u32 256, 56
        %4164 = vbcast.lane.b32.xlu0 %v4157, %s4163
        %v4165 = vpop.permute.xlu0 %4164
        %v4166 = vlaneseq
        %v4167 = vshrl.u32 %v4166, 7
        %v4168 = vsub.s32 1, %v4167
        %v4169 = vrot.slane %v1050, %v4168
        %s4171 = sor.u32 256, 48
        %4172 = vbcast.lane.b32.xlu0 %v4169, %s4171
        %v4173 = vpop.permute.xlu0 %4172
        %s4175 = sor.u32 256, 56
        %4176 = vbcast.lane.b32.xlu0 %v4169, %s4175
        %v4177 = vpop.permute.xlu0 %4176
        %v4178 = vlaneseq
        %v4179 = vshrl.u32 %v4178, 7
        %v4180 = vsub.s32 2, %v4179
        %v4181 = vrot.slane %v1050, %v4180
        %s4183 = sor.u32 256, 48
        %4184 = vbcast.lane.b32.xlu0 %v4181, %s4183
        %v4185 = vpop.permute.xlu0 %4184
        %s4187 = sor.u32 256, 56
        %4188 = vbcast.lane.b32.xlu0 %v4181, %s4187
        %v4189 = vpop.permute.xlu0 %4188
        %v4190 = vlaneseq
        %v4191 = vshrl.u32 %v4190, 7
        %v4192 = vsub.s32 3, %v4191
        %v4193 = vrot.slane %v1050, %v4192
        %s4195 = sor.u32 256, 48
        %4196 = vbcast.lane.b32.xlu0 %v4193, %s4195
        %v4197 = vpop.permute.xlu0 %4196
        %s4199 = sor.u32 256, 56
        %4200 = vbcast.lane.b32.xlu0 %v4193, %s4199
        %v4201 = vpop.permute.xlu0 %4200
        %v4202 = vlaneseq
        %v4203 = vshrl.u32 %v4202, 7
        %v4204 = vsub.s32 4, %v4203
        %v4205 = vrot.slane %v1050, %v4204
        %s4207 = sor.u32 256, 48
        %4208 = vbcast.lane.b32.xlu0 %v4205, %s4207
        %v4209 = vpop.permute.xlu0 %4208
        %s4211 = sor.u32 256, 56
        %4212 = vbcast.lane.b32.xlu0 %v4205, %s4211
        %v4213 = vpop.permute.xlu0 %4212
        %v4214 = vlaneseq
        %v4215 = vshrl.u32 %v4214, 7
        %v4216 = vsub.s32 5, %v4215
        %v4217 = vrot.slane %v1050, %v4216
        %s4219 = sor.u32 256, 48
        %4220 = vbcast.lane.b32.xlu0 %v4217, %s4219
        %v4221 = vpop.permute.xlu0 %4220
        %s4223 = sor.u32 256, 56
        %4224 = vbcast.lane.b32.xlu0 %v4217, %s4223
        %v4225 = vpop.permute.xlu0 %4224
        %v4226 = vlaneseq
        %v4227 = vshrl.u32 %v4226, 7
        %v4228 = vsub.s32 6, %v4227
        %v4229 = vrot.slane %v1050, %v4228
        %s4231 = sor.u32 256, 48
        %4232 = vbcast.lane.b32.xlu0 %v4229, %s4231
        %v4233 = vpop.permute.xlu0 %4232
        %s4235 = sor.u32 256, 56
        %4236 = vbcast.lane.b32.xlu0 %v4229, %s4235
        %v4237 = vpop.permute.xlu0 %4236
        %v4238 = vlaneseq
        %v4239 = vshrl.u32 %v4238, 7
        %v4240 = vsub.s32 7, %v4239
        %v4241 = vrot.slane %v1050, %v4240
        %s4243 = sor.u32 256, 48
        %4244 = vbcast.lane.b32.xlu0 %v4241, %s4243
        %v4245 = vpop.permute.xlu0 %4244
        %s4247 = sor.u32 256, 56
        %4248 = vbcast.lane.b32.xlu0 %v4241, %s4247
        %v4249 = vpop.permute.xlu0 %4248
        %v4250 = vlaneseq
        %v4251 = vshrl.u32 %v4250, 7
        %v4252 = vsub.s32 0, %v4251
        %v4253 = vrot.slane %v1051, %v4252
        %s4255 = sor.u32 256, 48
        %4256 = vbcast.lane.b32.xlu0 %v4253, %s4255
        %v4257 = vpop.permute.xlu0 %4256
        %s4259 = sor.u32 256, 56
        %4260 = vbcast.lane.b32.xlu0 %v4253, %s4259
        %v4261 = vpop.permute.xlu0 %4260
        %v4262 = vlaneseq
        %v4263 = vshrl.u32 %v4262, 7
        %v4264 = vsub.s32 1, %v4263
        %v4265 = vrot.slane %v1051, %v4264
        %s4267 = sor.u32 256, 48
        %4268 = vbcast.lane.b32.xlu0 %v4265, %s4267
        %v4269 = vpop.permute.xlu0 %4268
        %s4271 = sor.u32 256, 56
        %4272 = vbcast.lane.b32.xlu0 %v4265, %s4271
        %v4273 = vpop.permute.xlu0 %4272
        %v4274 = vlaneseq
        %v4275 = vshrl.u32 %v4274, 7
        %v4276 = vsub.s32 2, %v4275
        %v4277 = vrot.slane %v1051, %v4276
        %s4279 = sor.u32 256, 48
        %4280 = vbcast.lane.b32.xlu0 %v4277, %s4279
        %v4281 = vpop.permute.xlu0 %4280
        %s4283 = sor.u32 256, 56
        %4284 = vbcast.lane.b32.xlu0 %v4277, %s4283
        %v4285 = vpop.permute.xlu0 %4284
        %v4286 = vlaneseq
        %v4287 = vshrl.u32 %v4286, 7
        %v4288 = vsub.s32 3, %v4287
        %v4289 = vrot.slane %v1051, %v4288
        %s4291 = sor.u32 256, 48
        %4292 = vbcast.lane.b32.xlu0 %v4289, %s4291
        %v4293 = vpop.permute.xlu0 %4292
        %s4295 = sor.u32 256, 56
        %4296 = vbcast.lane.b32.xlu0 %v4289, %s4295
        %v4297 = vpop.permute.xlu0 %4296
        %v4298 = vlaneseq
        %v4299 = vshrl.u32 %v4298, 7
        %v4300 = vsub.s32 4, %v4299
        %v4301 = vrot.slane %v1051, %v4300
        %s4303 = sor.u32 256, 48
        %4304 = vbcast.lane.b32.xlu0 %v4301, %s4303
        %v4305 = vpop.permute.xlu0 %4304
        %s4307 = sor.u32 256, 56
        %4308 = vbcast.lane.b32.xlu0 %v4301, %s4307
        %v4309 = vpop.permute.xlu0 %4308
        %v4310 = vlaneseq
        %v4311 = vshrl.u32 %v4310, 7
        %v4312 = vsub.s32 5, %v4311
        %v4313 = vrot.slane %v1051, %v4312
        %s4315 = sor.u32 256, 48
        %4316 = vbcast.lane.b32.xlu0 %v4313, %s4315
        %v4317 = vpop.permute.xlu0 %4316
        %s4319 = sor.u32 256, 56
        %4320 = vbcast.lane.b32.xlu0 %v4313, %s4319
        %v4321 = vpop.permute.xlu0 %4320
        %v4322 = vlaneseq
        %v4323 = vshrl.u32 %v4322, 7
        %v4324 = vsub.s32 6, %v4323
        %v4325 = vrot.slane %v1051, %v4324
        %s4327 = sor.u32 256, 48
        %4328 = vbcast.lane.b32.xlu0 %v4325, %s4327
        %v4329 = vpop.permute.xlu0 %4328
        %s4331 = sor.u32 256, 56
        %4332 = vbcast.lane.b32.xlu0 %v4325, %s4331
        %v4333 = vpop.permute.xlu0 %4332
        %v4334 = vlaneseq
        %v4335 = vshrl.u32 %v4334, 7
        %v4336 = vsub.s32 7, %v4335
        %v4337 = vrot.slane %v1051, %v4336
        %s4339 = sor.u32 256, 48
        %4340 = vbcast.lane.b32.xlu0 %v4337, %s4339
        %v4341 = vpop.permute.xlu0 %4340
        %s4343 = sor.u32 256, 56
        %4344 = vbcast.lane.b32.xlu0 %v4337, %s4343
        %v4345 = vpop.permute.xlu0 %4344
        %v4346 = vlaneseq
        %v4347 = vshrl.u32 %v4346, 7
        %v4348 = vsub.s32 0, %v4347
        %v4349 = vrot.slane %v1052, %v4348
        %s4351 = sor.u32 256, 48
        %4352 = vbcast.lane.b32.xlu0 %v4349, %s4351
        %v4353 = vpop.permute.xlu0 %4352
        %s4355 = sor.u32 256, 56
        %4356 = vbcast.lane.b32.xlu0 %v4349, %s4355
        %v4357 = vpop.permute.xlu0 %4356
        %v4358 = vlaneseq
        %v4359 = vshrl.u32 %v4358, 7
        %v4360 = vsub.s32 1, %v4359
        %v4361 = vrot.slane %v1052, %v4360
        %s4363 = sor.u32 256, 48
        %4364 = vbcast.lane.b32.xlu0 %v4361, %s4363
        %v4365 = vpop.permute.xlu0 %4364
        %s4367 = sor.u32 256, 56
        %4368 = vbcast.lane.b32.xlu0 %v4361, %s4367
        %v4369 = vpop.permute.xlu0 %4368
        %v4370 = vlaneseq
        %v4371 = vshrl.u32 %v4370, 7
        %v4372 = vsub.s32 2, %v4371
        %v4373 = vrot.slane %v1052, %v4372
        %s4375 = sor.u32 256, 48
        %4376 = vbcast.lane.b32.xlu0 %v4373, %s4375
        %v4377 = vpop.permute.xlu0 %4376
        %s4379 = sor.u32 256, 56
        %4380 = vbcast.lane.b32.xlu0 %v4373, %s4379
        %v4381 = vpop.permute.xlu0 %4380
        %v4382 = vlaneseq
        %v4383 = vshrl.u32 %v4382, 7
        %v4384 = vsub.s32 3, %v4383
        %v4385 = vrot.slane %v1052, %v4384
        %s4387 = sor.u32 256, 48
        %4388 = vbcast.lane.b32.xlu0 %v4385, %s4387
        %v4389 = vpop.permute.xlu0 %4388
        %s4391 = sor.u32 256, 56
        %4392 = vbcast.lane.b32.xlu0 %v4385, %s4391
        %v4393 = vpop.permute.xlu0 %4392
        %v4394 = vlaneseq
        %v4395 = vshrl.u32 %v4394, 7
        %v4396 = vsub.s32 4, %v4395
        %v4397 = vrot.slane %v1052, %v4396
        %s4399 = sor.u32 256, 48
        %4400 = vbcast.lane.b32.xlu0 %v4397, %s4399
        %v4401 = vpop.permute.xlu0 %4400
        %s4403 = sor.u32 256, 56
        %4404 = vbcast.lane.b32.xlu0 %v4397, %s4403
        %v4405 = vpop.permute.xlu0 %4404
        %v4406 = vlaneseq
        %v4407 = vshrl.u32 %v4406, 7
        %v4408 = vsub.s32 5, %v4407
        %v4409 = vrot.slane %v1052, %v4408
        %s4411 = sor.u32 256, 48
        %4412 = vbcast.lane.b32.xlu0 %v4409, %s4411
        %v4413 = vpop.permute.xlu0 %4412
        %s4415 = sor.u32 256, 56
        %4416 = vbcast.lane.b32.xlu0 %v4409, %s4415
        %v4417 = vpop.permute.xlu0 %4416
        %v4418 = vlaneseq
        %v4419 = vshrl.u32 %v4418, 7
        %v4420 = vsub.s32 6, %v4419
        %v4421 = vrot.slane %v1052, %v4420
        %s4423 = sor.u32 256, 48
        %4424 = vbcast.lane.b32.xlu0 %v4421, %s4423
        %v4425 = vpop.permute.xlu0 %4424
        %s4427 = sor.u32 256, 56
        %4428 = vbcast.lane.b32.xlu0 %v4421, %s4427
        %v4429 = vpop.permute.xlu0 %4428
        %v4430 = vlaneseq
        %v4431 = vshrl.u32 %v4430, 7
        %v4432 = vsub.s32 7, %v4431
        %v4433 = vrot.slane %v1052, %v4432
        %s4435 = sor.u32 256, 48
        %4436 = vbcast.lane.b32.xlu0 %v4433, %s4435
        %v4437 = vpop.permute.xlu0 %4436
        %s4439 = sor.u32 256, 56
        %4440 = vbcast.lane.b32.xlu0 %v4433, %s4439
        %v4441 = vpop.permute.xlu0 %4440
        %v4442 = vmul.f32 %v4065, %v3220
        %v4443 = vmul.f32 %v4069, %v3221
        %v4444 = vmul.f32 %v4077, %v3220
        %v4445 = vmul.f32 %v4081, %v3221
        %v4446 = vmul.f32 %v4089, %v3220
        %v4447 = vmul.f32 %v4093, %v3221
        %v4448 = vmul.f32 %v4101, %v3220
        %v4449 = vmul.f32 %v4105, %v3221
        %v4450 = vmul.f32 %v4113, %v3220
        %v4451 = vmul.f32 %v4117, %v3221
        %v4452 = vmul.f32 %v4125, %v3220
        %v4453 = vmul.f32 %v4129, %v3221
        %v4454 = vmul.f32 %v4137, %v3220
        %v4455 = vmul.f32 %v4141, %v3221
        %v4456 = vmul.f32 %v4149, %v3220
        %v4457 = vmul.f32 %v4153, %v3221
        %v4458 = vmul.f32 %v4161, %v3220
        %v4459 = vmul.f32 %v4165, %v3221
        %v4460 = vmul.f32 %v4173, %v3220
        %v4461 = vmul.f32 %v4177, %v3221
        %v4462 = vmul.f32 %v4185, %v3220
        %v4463 = vmul.f32 %v4189, %v3221
        %v4464 = vmul.f32 %v4197, %v3220
        %v4465 = vmul.f32 %v4201, %v3221
        %v4466 = vmul.f32 %v4209, %v3220
        %v4467 = vmul.f32 %v4213, %v3221
        %v4468 = vmul.f32 %v4221, %v3220
        %v4469 = vmul.f32 %v4225, %v3221
        %v4470 = vmul.f32 %v4233, %v3220
        %v4471 = vmul.f32 %v4237, %v3221
        %v4472 = vmul.f32 %v4245, %v3220
        %v4473 = vmul.f32 %v4249, %v3221
        %v4474 = vmul.f32 %v4257, %v3220
        %v4475 = vmul.f32 %v4261, %v3221
        %v4476 = vmul.f32 %v4269, %v3220
        %v4477 = vmul.f32 %v4273, %v3221
        %v4478 = vmul.f32 %v4281, %v3220
        %v4479 = vmul.f32 %v4285, %v3221
        %v4480 = vmul.f32 %v4293, %v3220
        %v4481 = vmul.f32 %v4297, %v3221
        %v4482 = vmul.f32 %v4305, %v3220
        %v4483 = vmul.f32 %v4309, %v3221
        %v4484 = vmul.f32 %v4317, %v3220
        %v4485 = vmul.f32 %v4321, %v3221
        %v4486 = vmul.f32 %v4329, %v3220
        %v4487 = vmul.f32 %v4333, %v3221
        %v4488 = vmul.f32 %v4341, %v3220
        %v4489 = vmul.f32 %v4345, %v3221
        %v4490 = vmul.f32 %v4353, %v3220
        %v4491 = vmul.f32 %v4357, %v3221
        %v4492 = vmul.f32 %v4365, %v3220
        %v4493 = vmul.f32 %v4369, %v3221
        %v4494 = vmul.f32 %v4377, %v3220
        %v4495 = vmul.f32 %v4381, %v3221
        %v4496 = vmul.f32 %v4389, %v3220
        %v4497 = vmul.f32 %v4393, %v3221
        %v4498 = vmul.f32 %v4401, %v3220
        %v4499 = vmul.f32 %v4405, %v3221
        %v4500 = vmul.f32 %v4413, %v3220
        %v4501 = vmul.f32 %v4417, %v3221
        %v4502 = vmul.f32 %v4425, %v3220
        %v4503 = vmul.f32 %v4429, %v3221
        %v4504 = vmul.f32 %v4437, %v3220
        %v4505 = vmul.f32 %v4441, %v3221
        %v4506 = vadd.f32 %v3994, %v4442
        %v4507 = vadd.f32 %v3995, %v4443
        %v4508 = vadd.f32 %v3996, %v4444
        %v4509 = vadd.f32 %v3997, %v4445
        %v4510 = vadd.f32 %v3998, %v4446
        %v4511 = vadd.f32 %v3999, %v4447
        %v4512 = vadd.f32 %v4000, %v4448
        %v4513 = vadd.f32 %v4001, %v4449
        %v4514 = vadd.f32 %v4002, %v4450
        %v4515 = vadd.f32 %v4003, %v4451
        %v4516 = vadd.f32 %v4004, %v4452
        %v4517 = vadd.f32 %v4005, %v4453
        %v4518 = vadd.f32 %v4006, %v4454
        %v4519 = vadd.f32 %v4007, %v4455
        %v4520 = vadd.f32 %v4008, %v4456
        %v4521 = vadd.f32 %v4009, %v4457
        %v4522 = vadd.f32 %v4010, %v4458
        %v4523 = vadd.f32 %v4011, %v4459
        %v4524 = vadd.f32 %v4012, %v4460
        %v4525 = vadd.f32 %v4013, %v4461
        %v4526 = vadd.f32 %v4014, %v4462
        %v4527 = vadd.f32 %v4015, %v4463
        %v4528 = vadd.f32 %v4016, %v4464
        %v4529 = vadd.f32 %v4017, %v4465
        %v4530 = vadd.f32 %v4018, %v4466
        %v4531 = vadd.f32 %v4019, %v4467
        %v4532 = vadd.f32 %v4020, %v4468
        %v4533 = vadd.f32 %v4021, %v4469
        %v4534 = vadd.f32 %v4022, %v4470
        %v4535 = vadd.f32 %v4023, %v4471
        %v4536 = vadd.f32 %v4024, %v4472
        %v4537 = vadd.f32 %v4025, %v4473
        %v4538 = vadd.f32 %v4026, %v4474
        %v4539 = vadd.f32 %v4027, %v4475
        %v4540 = vadd.f32 %v4028, %v4476
        %v4541 = vadd.f32 %v4029, %v4477
        %v4542 = vadd.f32 %v4030, %v4478
        %v4543 = vadd.f32 %v4031, %v4479
        %v4544 = vadd.f32 %v4032, %v4480
        %v4545 = vadd.f32 %v4033, %v4481
        %v4546 = vadd.f32 %v4034, %v4482
        %v4547 = vadd.f32 %v4035, %v4483
        %v4548 = vadd.f32 %v4036, %v4484
        %v4549 = vadd.f32 %v4037, %v4485
        %v4550 = vadd.f32 %v4038, %v4486
        %v4551 = vadd.f32 %v4039, %v4487
        %v4552 = vadd.f32 %v4040, %v4488
        %v4553 = vadd.f32 %v4041, %v4489
        %v4554 = vadd.f32 %v4042, %v4490
        %v4555 = vadd.f32 %v4043, %v4491
        %v4556 = vadd.f32 %v4044, %v4492
        %v4557 = vadd.f32 %v4045, %v4493
        %v4558 = vadd.f32 %v4046, %v4494
        %v4559 = vadd.f32 %v4047, %v4495
        %v4560 = vadd.f32 %v4048, %v4496
        %v4561 = vadd.f32 %v4049, %v4497
        %v4562 = vadd.f32 %v4050, %v4498
        %v4563 = vadd.f32 %v4051, %v4499
        %v4564 = vadd.f32 %v4052, %v4500
        %v4565 = vadd.f32 %v4053, %v4501
        %v4566 = vadd.f32 %v4054, %v4502
        %v4567 = vadd.f32 %v4055, %v4503
        %v4568 = vadd.f32 %v4056, %v4504
        %v4569 = vadd.f32 %v4057, %v4505
        %v4570 = vmul.f32 %v3224, %v1540
        %v4571 = vmul.f32 %v3228, %v1540
        %v4572 = vmul.f32 %v3231, %v1544
        %v4573 = vmul.f32 %v3235, %v1544
        %v4574 = vmul.f32 %v3238, %v1548
        %v4575 = vmul.f32 %v3242, %v1548
        %v4576 = vmul.f32 %v3245, %v1552
        %v4577 = vmul.f32 %v3249, %v1552
        %v4578 = vmul.f32 %v3252, %v1556
        %v4579 = vmul.f32 %v3256, %v1556
        %v4580 = vmul.f32 %v3259, %v1560
        %v4581 = vmul.f32 %v3263, %v1560
        %v4582 = vmul.f32 %v3266, %v1564
        %v4583 = vmul.f32 %v3270, %v1564
        %v4584 = vmul.f32 %v3273, %v1568
        %v4585 = vmul.f32 %v3277, %v1568
        %v4586 = vmul.f32 %v3280, %v1572
        %v4587 = vmul.f32 %v3284, %v1572
        %v4588 = vmul.f32 %v3287, %v1576
        %v4589 = vmul.f32 %v3291, %v1576
        %v4590 = vmul.f32 %v3294, %v1580
        %v4591 = vmul.f32 %v3298, %v1580
        %v4592 = vmul.f32 %v3301, %v1584
        %v4593 = vmul.f32 %v3305, %v1584
        %v4594 = vmul.f32 %v3308, %v1588
        %v4595 = vmul.f32 %v3312, %v1588
        %v4596 = vmul.f32 %v3315, %v1592
        %v4597 = vmul.f32 %v3319, %v1592
        %v4598 = vmul.f32 %v3322, %v1596
        %v4599 = vmul.f32 %v3326, %v1596
        %v4600 = vmul.f32 %v3329, %v1600
        %v4601 = vmul.f32 %v3333, %v1600
        %v4602 = vmul.f32 %v3336, %v1604
        %v4603 = vmul.f32 %v3340, %v1604
        %v4604 = vmul.f32 %v3343, %v1608
        %v4605 = vmul.f32 %v3347, %v1608
        %v4606 = vmul.f32 %v3350, %v1612
        %v4607 = vmul.f32 %v3354, %v1612
        %v4608 = vmul.f32 %v3357, %v1616
        %v4609 = vmul.f32 %v3361, %v1616
        %v4610 = vmul.f32 %v3364, %v1620
        %v4611 = vmul.f32 %v3368, %v1620
        %v4612 = vmul.f32 %v3371, %v1624
        %v4613 = vmul.f32 %v3375, %v1624
        %v4614 = vmul.f32 %v3378, %v1628
        %v4615 = vmul.f32 %v3382, %v1628
        %v4616 = vmul.f32 %v3385, %v1632
        %v4617 = vmul.f32 %v3389, %v1632
        %v4618 = vmul.f32 %v3392, %v1636
        %v4619 = vmul.f32 %v3396, %v1636
        %v4620 = vmul.f32 %v3399, %v1640
        %v4621 = vmul.f32 %v3403, %v1640
        %v4622 = vmul.f32 %v3406, %v1644
        %v4623 = vmul.f32 %v3410, %v1644
        %v4624 = vmul.f32 %v3413, %v1648
        %v4625 = vmul.f32 %v3417, %v1648
        %v4626 = vmul.f32 %v3420, %v1652
        %v4627 = vmul.f32 %v3424, %v1652
        %v4628 = vmul.f32 %v3427, %v1656
        %v4629 = vmul.f32 %v3431, %v1656
        %v4630 = vmul.f32 %v3434, %v1660
        %v4631 = vmul.f32 %v3438, %v1660
        %v4632 = vmul.f32 %v3441, %v1664
        %v4633 = vmul.f32 %v3445, %v1664
        %4698 = vrot.lane.b32.xlu0 %v4570, 112
        %v4699 = vpop.permute.xlu0 %4698
        %4700 = vrot.lane.b32.xlu0 %v4571, 112
        %v4701 = vpop.permute.xlu0 %4700
        %4702 = vrot.lane.b32.xlu0 %v4572, 112
        %v4703 = vpop.permute.xlu0 %4702
        %4704 = vrot.lane.b32.xlu0 %v4573, 112
        %v4705 = vpop.permute.xlu0 %4704
        %4706 = vrot.lane.b32.xlu0 %v4574, 112
        %v4707 = vpop.permute.xlu0 %4706
        %4708 = vrot.lane.b32.xlu0 %v4575, 112
        %v4709 = vpop.permute.xlu0 %4708
        %4710 = vrot.lane.b32.xlu0 %v4576, 112
        %v4711 = vpop.permute.xlu0 %4710
        %4712 = vrot.lane.b32.xlu0 %v4577, 112
        %v4713 = vpop.permute.xlu0 %4712
        %4714 = vrot.lane.b32.xlu0 %v4578, 112
        %v4715 = vpop.permute.xlu0 %4714
        %4716 = vrot.lane.b32.xlu0 %v4579, 112
        %v4717 = vpop.permute.xlu0 %4716
        %4718 = vrot.lane.b32.xlu0 %v4580, 112
        %v4719 = vpop.permute.xlu0 %4718
        %4720 = vrot.lane.b32.xlu0 %v4581, 112
        %v4721 = vpop.permute.xlu0 %4720
        %4722 = vrot.lane.b32.xlu0 %v4582, 112
        %v4723 = vpop.permute.xlu0 %4722
        %4724 = vrot.lane.b32.xlu0 %v4583, 112
        %v4725 = vpop.permute.xlu0 %4724
        %4726 = vrot.lane.b32.xlu0 %v4584, 112
        %v4727 = vpop.permute.xlu0 %4726
        %4728 = vrot.lane.b32.xlu0 %v4585, 112
        %v4729 = vpop.permute.xlu0 %4728
        %4730 = vrot.lane.b32.xlu0 %v4586, 112
        %v4731 = vpop.permute.xlu0 %4730
        %4732 = vrot.lane.b32.xlu0 %v4587, 112
        %v4733 = vpop.permute.xlu0 %4732
        %4734 = vrot.lane.b32.xlu0 %v4588, 112
        %v4735 = vpop.permute.xlu0 %4734
        %4736 = vrot.lane.b32.xlu0 %v4589, 112
        %v4737 = vpop.permute.xlu0 %4736
        %4738 = vrot.lane.b32.xlu0 %v4590, 112
        %v4739 = vpop.permute.xlu0 %4738
        %4740 = vrot.lane.b32.xlu0 %v4591, 112
        %v4741 = vpop.permute.xlu0 %4740
        %4742 = vrot.lane.b32.xlu0 %v4592, 112
        %v4743 = vpop.permute.xlu0 %4742
        %4744 = vrot.lane.b32.xlu0 %v4593, 112
        %v4745 = vpop.permute.xlu0 %4744
        %4746 = vrot.lane.b32.xlu0 %v4594, 112
        %v4747 = vpop.permute.xlu0 %4746
        %4748 = vrot.lane.b32.xlu0 %v4595, 112
        %v4749 = vpop.permute.xlu0 %4748
        %4750 = vrot.lane.b32.xlu0 %v4596, 112
        %v4751 = vpop.permute.xlu0 %4750
        %4752 = vrot.lane.b32.xlu0 %v4597, 112
        %v4753 = vpop.permute.xlu0 %4752
        %4754 = vrot.lane.b32.xlu0 %v4598, 112
        %v4755 = vpop.permute.xlu0 %4754
        %4756 = vrot.lane.b32.xlu0 %v4599, 112
        %v4757 = vpop.permute.xlu0 %4756
        %4758 = vrot.lane.b32.xlu0 %v4600, 112
        %v4759 = vpop.permute.xlu0 %4758
        %4760 = vrot.lane.b32.xlu0 %v4601, 112
        %v4761 = vpop.permute.xlu0 %4760
        %4762 = vrot.lane.b32.xlu0 %v4602, 112
        %v4763 = vpop.permute.xlu0 %4762
        %4764 = vrot.lane.b32.xlu0 %v4603, 112
        %v4765 = vpop.permute.xlu0 %4764
        %4766 = vrot.lane.b32.xlu0 %v4604, 112
        %v4767 = vpop.permute.xlu0 %4766
        %4768 = vrot.lane.b32.xlu0 %v4605, 112
        %v4769 = vpop.permute.xlu0 %4768
        %4770 = vrot.lane.b32.xlu0 %v4606, 112
        %v4771 = vpop.permute.xlu0 %4770
        %4772 = vrot.lane.b32.xlu0 %v4607, 112
        %v4773 = vpop.permute.xlu0 %4772
        %4774 = vrot.lane.b32.xlu0 %v4608, 112
        %v4775 = vpop.permute.xlu0 %4774
        %4776 = vrot.lane.b32.xlu0 %v4609, 112
        %v4777 = vpop.permute.xlu0 %4776
        %4778 = vrot.lane.b32.xlu0 %v4610, 112
        %v4779 = vpop.permute.xlu0 %4778
        %4780 = vrot.lane.b32.xlu0 %v4611, 112
        %v4781 = vpop.permute.xlu0 %4780
        %4782 = vrot.lane.b32.xlu0 %v4612, 112
        %v4783 = vpop.permute.xlu0 %4782
        %4784 = vrot.lane.b32.xlu0 %v4613, 112
        %v4785 = vpop.permute.xlu0 %4784
        %4786 = vrot.lane.b32.xlu0 %v4614, 112
        %v4787 = vpop.permute.xlu0 %4786
        %4788 = vrot.lane.b32.xlu0 %v4615, 112
        %v4789 = vpop.permute.xlu0 %4788
        %4790 = vrot.lane.b32.xlu0 %v4616, 112
        %v4791 = vpop.permute.xlu0 %4790
        %4792 = vrot.lane.b32.xlu0 %v4617, 112
        %v4793 = vpop.permute.xlu0 %4792
        %4794 = vrot.lane.b32.xlu0 %v4618, 112
        %v4795 = vpop.permute.xlu0 %4794
        %4796 = vrot.lane.b32.xlu0 %v4619, 112
        %v4797 = vpop.permute.xlu0 %4796
        %4798 = vrot.lane.b32.xlu0 %v4620, 112
        %v4799 = vpop.permute.xlu0 %4798
        %4800 = vrot.lane.b32.xlu0 %v4621, 112
        %v4801 = vpop.permute.xlu0 %4800
        %4802 = vrot.lane.b32.xlu0 %v4622, 112
        %v4803 = vpop.permute.xlu0 %4802
        %4804 = vrot.lane.b32.xlu0 %v4623, 112
        %v4805 = vpop.permute.xlu0 %4804
        %4806 = vrot.lane.b32.xlu0 %v4624, 112
        %v4807 = vpop.permute.xlu0 %4806
        %4808 = vrot.lane.b32.xlu0 %v4625, 112
        %v4809 = vpop.permute.xlu0 %4808
        %4810 = vrot.lane.b32.xlu0 %v4626, 112
        %v4811 = vpop.permute.xlu0 %4810
        %4812 = vrot.lane.b32.xlu0 %v4627, 112
        %v4813 = vpop.permute.xlu0 %4812
        %4814 = vrot.lane.b32.xlu0 %v4628, 112
        %v4815 = vpop.permute.xlu0 %4814
        %4816 = vrot.lane.b32.xlu0 %v4629, 112
        %v4817 = vpop.permute.xlu0 %4816
        %4818 = vrot.lane.b32.xlu0 %v4630, 112
        %v4819 = vpop.permute.xlu0 %4818
        %4820 = vrot.lane.b32.xlu0 %v4631, 112
        %v4821 = vpop.permute.xlu0 %4820
        %4822 = vrot.lane.b32.xlu0 %v4632, 112
        %v4823 = vpop.permute.xlu0 %4822
        %4824 = vrot.lane.b32.xlu0 %v4633, 112
        %v4825 = vpop.permute.xlu0 %4824
        %v4890 = vadd.f32 %v3220, %v4699
        %v4891 = vadd.f32 %v3221, %v4701
        %v4892 = vadd.f32 %v3220, %v4703
        %v4893 = vadd.f32 %v3221, %v4705
        %v4894 = vadd.f32 %v3220, %v4707
        %v4895 = vadd.f32 %v3221, %v4709
        %v4896 = vadd.f32 %v3220, %v4711
        %v4897 = vadd.f32 %v3221, %v4713
        %v4898 = vadd.f32 %v3220, %v4715
        %v4899 = vadd.f32 %v3221, %v4717
        %v4900 = vadd.f32 %v3220, %v4719
        %v4901 = vadd.f32 %v3221, %v4721
        %v4902 = vadd.f32 %v3220, %v4723
        %v4903 = vadd.f32 %v3221, %v4725
        %v4904 = vadd.f32 %v3220, %v4727
        %v4905 = vadd.f32 %v3221, %v4729
        %v4906 = vadd.f32 %v3220, %v4731
        %v4907 = vadd.f32 %v3221, %v4733
        %v4908 = vadd.f32 %v3220, %v4735
        %v4909 = vadd.f32 %v3221, %v4737
        %v4910 = vadd.f32 %v3220, %v4739
        %v4911 = vadd.f32 %v3221, %v4741
        %v4912 = vadd.f32 %v3220, %v4743
        %v4913 = vadd.f32 %v3221, %v4745
        %v4914 = vadd.f32 %v3220, %v4747
        %v4915 = vadd.f32 %v3221, %v4749
        %v4916 = vadd.f32 %v3220, %v4751
        %v4917 = vadd.f32 %v3221, %v4753
        %v4918 = vadd.f32 %v3220, %v4755
        %v4919 = vadd.f32 %v3221, %v4757
        %v4920 = vadd.f32 %v3220, %v4759
        %v4921 = vadd.f32 %v3221, %v4761
        %v4922 = vadd.f32 %v3220, %v4763
        %v4923 = vadd.f32 %v3221, %v4765
        %v4924 = vadd.f32 %v3220, %v4767
        %v4925 = vadd.f32 %v3221, %v4769
        %v4926 = vadd.f32 %v3220, %v4771
        %v4927 = vadd.f32 %v3221, %v4773
        %v4928 = vadd.f32 %v3220, %v4775
        %v4929 = vadd.f32 %v3221, %v4777
        %v4930 = vadd.f32 %v3220, %v4779
        %v4931 = vadd.f32 %v3221, %v4781
        %v4932 = vadd.f32 %v3220, %v4783
        %v4933 = vadd.f32 %v3221, %v4785
        %v4934 = vadd.f32 %v3220, %v4787
        %v4935 = vadd.f32 %v3221, %v4789
        %v4936 = vadd.f32 %v3220, %v4791
        %v4937 = vadd.f32 %v3221, %v4793
        %v4938 = vadd.f32 %v3220, %v4795
        %v4939 = vadd.f32 %v3221, %v4797
        %v4940 = vadd.f32 %v3220, %v4799
        %v4941 = vadd.f32 %v3221, %v4801
        %v4942 = vadd.f32 %v3220, %v4803
        %v4943 = vadd.f32 %v3221, %v4805
        %v4944 = vadd.f32 %v3220, %v4807
        %v4945 = vadd.f32 %v3221, %v4809
        %v4946 = vadd.f32 %v3220, %v4811
        %v4947 = vadd.f32 %v3221, %v4813
        %v4948 = vadd.f32 %v3220, %v4815
        %v4949 = vadd.f32 %v3221, %v4817
        %v4950 = vadd.f32 %v3220, %v4819
        %v4951 = vadd.f32 %v3221, %v4821
        %v4952 = vadd.f32 %v3220, %v4823
        %v4953 = vadd.f32 %v3221, %v4825
        %4954 = vst.msk [vmem:[%s626] sm:$0xff] %vm743, %v1333
        %4955 = vst.msk [vmem:[%s626 + $0x8] sm:$0xff] %vm743, %v1334
        %4956 = vst.msk [vmem:[%s626 + $0x10] sm:$0xff] %vm743, %v1335
        %4957 = vst.msk [vmem:[%s626 + $0x18] sm:$0xff] %vm743, %v1336
        %4958 = vst.msk [vmem:[%s633] sm:$0xff] %vm743, %v4506
        %4959 = vst.msk [vmem:[%s633 + $0x8] sm:$0xff] %vm743, %v4507
        %4960 = vst.msk [vmem:[%s633 + $0x10] sm:$0xff] %vm743, %v4508
        %4961 = vst.msk [vmem:[%s633 + $0x18] sm:$0xff] %vm743, %v4509
        %4962 = vst.msk [vmem:[%s633 + $0x20] sm:$0xff] %vm743, %v4510
        %4963 = vst.msk [vmem:[%s633 + $0x28] sm:$0xff] %vm743, %v4511
        %4964 = vst.msk [vmem:[%s633 + $0x30] sm:$0xff] %vm743, %v4512
        %4965 = vst.msk [vmem:[%s633 + $0x38] sm:$0xff] %vm743, %v4513
        %4966 = vst.msk [vmem:[%s633 + $0x40] sm:$0xff] %vm743, %v4514
        %4967 = vst.msk [vmem:[%s633 + $0x48] sm:$0xff] %vm743, %v4515
        %4968 = vst.msk [vmem:[%s633 + $0x50] sm:$0xff] %vm743, %v4516
        %4969 = vst.msk [vmem:[%s633 + $0x58] sm:$0xff] %vm743, %v4517
        %4970 = vst.msk [vmem:[%s633 + $0x60] sm:$0xff] %vm743, %v4518
        %4971 = vst.msk [vmem:[%s633 + $0x68] sm:$0xff] %vm743, %v4519
        %4972 = vst.msk [vmem:[%s633 + $0x70] sm:$0xff] %vm743, %v4520
        %4973 = vst.msk [vmem:[%s633 + $0x78] sm:$0xff] %vm743, %v4521
        %4974 = vst.msk [vmem:[%s633 + $0x80] sm:$0xff] %vm743, %v4522
        %4975 = vst.msk [vmem:[%s633 + $0x88] sm:$0xff] %vm743, %v4523
        %4976 = vst.msk [vmem:[%s633 + $0x90] sm:$0xff] %vm743, %v4524
        %4977 = vst.msk [vmem:[%s633 + $0x98] sm:$0xff] %vm743, %v4525
        %4978 = vst.msk [vmem:[%s633 + $0xa0] sm:$0xff] %vm743, %v4526
        %4979 = vst.msk [vmem:[%s633 + $0xa8] sm:$0xff] %vm743, %v4527
        %4980 = vst.msk [vmem:[%s633 + $0xb0] sm:$0xff] %vm743, %v4528
        %4981 = vst.msk [vmem:[%s633 + $0xb8] sm:$0xff] %vm743, %v4529
        %4982 = vst.msk [vmem:[%s633 + $0xc0] sm:$0xff] %vm743, %v4530
        %4983 = vst.msk [vmem:[%s633 + $0xc8] sm:$0xff] %vm743, %v4531
        %4984 = vst.msk [vmem:[%s633 + $0xd0] sm:$0xff] %vm743, %v4532
        %4985 = vst.msk [vmem:[%s633 + $0xd8] sm:$0xff] %vm743, %v4533
        %4986 = vst.msk [vmem:[%s633 + $0xe0] sm:$0xff] %vm743, %v4534
        %4987 = vst.msk [vmem:[%s633 + $0xe8] sm:$0xff] %vm743, %v4535
        %4988 = vst.msk [vmem:[%s633 + $0xf0] sm:$0xff] %vm743, %v4536
        %4989 = vst.msk [vmem:[%s633 + $0xf8] sm:$0xff] %vm743, %v4537
        %4990 = vst.msk [vmem:[%s633 + $0x100] sm:$0xff] %vm743, %v4538
        %4991 = vst.msk [vmem:[%s633 + $0x108] sm:$0xff] %vm743, %v4539
        %4992 = vst.msk [vmem:[%s633 + $0x110] sm:$0xff] %vm743, %v4540
        %4993 = vst.msk [vmem:[%s633 + $0x118] sm:$0xff] %vm743, %v4541
        %4994 = vst.msk [vmem:[%s633 + $0x120] sm:$0xff] %vm743, %v4542
        %4995 = vst.msk [vmem:[%s633 + $0x128] sm:$0xff] %vm743, %v4543
        %4996 = vst.msk [vmem:[%s633 + $0x130] sm:$0xff] %vm743, %v4544
        %4997 = vst.msk [vmem:[%s633 + $0x138] sm:$0xff] %vm743, %v4545
        %4998 = vst.msk [vmem:[%s633 + $0x140] sm:$0xff] %vm743, %v4546
        %4999 = vst.msk [vmem:[%s633 + $0x148] sm:$0xff] %vm743, %v4547
        %5000 = vst.msk [vmem:[%s633 + $0x150] sm:$0xff] %vm743, %v4548
        %5001 = vst.msk [vmem:[%s633 + $0x158] sm:$0xff] %vm743, %v4549
        %5002 = vst.msk [vmem:[%s633 + $0x160] sm:$0xff] %vm743, %v4550
        %5003 = vst.msk [vmem:[%s633 + $0x168] sm:$0xff] %vm743, %v4551
        %5004 = vst.msk [vmem:[%s633 + $0x170] sm:$0xff] %vm743, %v4552
        %5005 = vst.msk [vmem:[%s633 + $0x178] sm:$0xff] %vm743, %v4553
        %5006 = vst.msk [vmem:[%s633 + $0x180] sm:$0xff] %vm743, %v4554
        %5007 = vst.msk [vmem:[%s633 + $0x188] sm:$0xff] %vm743, %v4555
        %5008 = vst.msk [vmem:[%s633 + $0x190] sm:$0xff] %vm743, %v4556
        %5009 = vst.msk [vmem:[%s633 + $0x198] sm:$0xff] %vm743, %v4557
        %5010 = vst.msk [vmem:[%s633 + $0x1a0] sm:$0xff] %vm743, %v4558
        %5011 = vst.msk [vmem:[%s633 + $0x1a8] sm:$0xff] %vm743, %v4559
        %5012 = vst.msk [vmem:[%s633 + $0x1b0] sm:$0xff] %vm743, %v4560
        %5013 = vst.msk [vmem:[%s633 + $0x1b8] sm:$0xff] %vm743, %v4561
        %5014 = vst.msk [vmem:[%s633 + $0x1c0] sm:$0xff] %vm743, %v4562
        %5015 = vst.msk [vmem:[%s633 + $0x1c8] sm:$0xff] %vm743, %v4563
        %5016 = vst.msk [vmem:[%s633 + $0x1d0] sm:$0xff] %vm743, %v4564
        %5017 = vst.msk [vmem:[%s633 + $0x1d8] sm:$0xff] %vm743, %v4565
        %5018 = vst.msk [vmem:[%s633 + $0x1e0] sm:$0xff] %vm743, %v4566
        %5019 = vst.msk [vmem:[%s633 + $0x1e8] sm:$0xff] %vm743, %v4567
        %5020 = vst.msk [vmem:[%s633 + $0x1f0] sm:$0xff] %vm743, %v4568
        %5021 = vst.msk [vmem:[%s633 + $0x1f8] sm:$0xff] %vm743, %v4569
        %5022 = vst.msk [vmem:[%s640] sm:$0xff] %vm743, %v4890
        %5023 = vst.msk [vmem:[%s640 + $0x8] sm:$0xff] %vm743, %v4891
        %5024 = vst.msk [vmem:[%s640 + $0x10] sm:$0xff] %vm743, %v4892
        %5025 = vst.msk [vmem:[%s640 + $0x18] sm:$0xff] %vm743, %v4893
        %5026 = vst.msk [vmem:[%s640 + $0x20] sm:$0xff] %vm743, %v4894
        %5027 = vst.msk [vmem:[%s640 + $0x28] sm:$0xff] %vm743, %v4895
        %5028 = vst.msk [vmem:[%s640 + $0x30] sm:$0xff] %vm743, %v4896
        %5029 = vst.msk [vmem:[%s640 + $0x38] sm:$0xff] %vm743, %v4897
        %5030 = vst.msk [vmem:[%s640 + $0x40] sm:$0xff] %vm743, %v4898
        %5031 = vst.msk [vmem:[%s640 + $0x48] sm:$0xff] %vm743, %v4899
        %5032 = vst.msk [vmem:[%s640 + $0x50] sm:$0xff] %vm743, %v4900
        %5033 = vst.msk [vmem:[%s640 + $0x58] sm:$0xff] %vm743, %v4901
        %5034 = vst.msk [vmem:[%s640 + $0x60] sm:$0xff] %vm743, %v4902
        %5035 = vst.msk [vmem:[%s640 + $0x68] sm:$0xff] %vm743, %v4903
        %5036 = vst.msk [vmem:[%s640 + $0x70] sm:$0xff] %vm743, %v4904
        %5037 = vst.msk [vmem:[%s640 + $0x78] sm:$0xff] %vm743, %v4905
        %5038 = vst.msk [vmem:[%s640 + $0x80] sm:$0xff] %vm743, %v4906
        %5039 = vst.msk [vmem:[%s640 + $0x88] sm:$0xff] %vm743, %v4907
        %5040 = vst.msk [vmem:[%s640 + $0x90] sm:$0xff] %vm743, %v4908
        %5041 = vst.msk [vmem:[%s640 + $0x98] sm:$0xff] %vm743, %v4909
        %5042 = vst.msk [vmem:[%s640 + $0xa0] sm:$0xff] %vm743, %v4910
        %5043 = vst.msk [vmem:[%s640 + $0xa8] sm:$0xff] %vm743, %v4911
        %5044 = vst.msk [vmem:[%s640 + $0xb0] sm:$0xff] %vm743, %v4912
        %5045 = vst.msk [vmem:[%s640 + $0xb8] sm:$0xff] %vm743, %v4913
        %5046 = vst.msk [vmem:[%s640 + $0xc0] sm:$0xff] %vm743, %v4914
        %5047 = vst.msk [vmem:[%s640 + $0xc8] sm:$0xff] %vm743, %v4915
        %5048 = vst.msk [vmem:[%s640 + $0xd0] sm:$0xff] %vm743, %v4916
        %5049 = vst.msk [vmem:[%s640 + $0xd8] sm:$0xff] %vm743, %v4917
        %5050 = vst.msk [vmem:[%s640 + $0xe0] sm:$0xff] %vm743, %v4918
        %5051 = vst.msk [vmem:[%s640 + $0xe8] sm:$0xff] %vm743, %v4919
        %5052 = vst.msk [vmem:[%s640 + $0xf0] sm:$0xff] %vm743, %v4920
        %5053 = vst.msk [vmem:[%s640 + $0xf8] sm:$0xff] %vm743, %v4921
        %5054 = vst.msk [vmem:[%s640 + $0x100] sm:$0xff] %vm743, %v4922
        %5055 = vst.msk [vmem:[%s640 + $0x108] sm:$0xff] %vm743, %v4923
        %5056 = vst.msk [vmem:[%s640 + $0x110] sm:$0xff] %vm743, %v4924
        %5057 = vst.msk [vmem:[%s640 + $0x118] sm:$0xff] %vm743, %v4925
        %5058 = vst.msk [vmem:[%s640 + $0x120] sm:$0xff] %vm743, %v4926
        %5059 = vst.msk [vmem:[%s640 + $0x128] sm:$0xff] %vm743, %v4927
        %5060 = vst.msk [vmem:[%s640 + $0x130] sm:$0xff] %vm743, %v4928
        %5061 = vst.msk [vmem:[%s640 + $0x138] sm:$0xff] %vm743, %v4929
        %5062 = vst.msk [vmem:[%s640 + $0x140] sm:$0xff] %vm743, %v4930
        %5063 = vst.msk [vmem:[%s640 + $0x148] sm:$0xff] %vm743, %v4931
        %5064 = vst.msk [vmem:[%s640 + $0x150] sm:$0xff] %vm743, %v4932
        %5065 = vst.msk [vmem:[%s640 + $0x158] sm:$0xff] %vm743, %v4933
        %5066 = vst.msk [vmem:[%s640 + $0x160] sm:$0xff] %vm743, %v4934
        %5067 = vst.msk [vmem:[%s640 + $0x168] sm:$0xff] %vm743, %v4935
        %5068 = vst.msk [vmem:[%s640 + $0x170] sm:$0xff] %vm743, %v4936
        %5069 = vst.msk [vmem:[%s640 + $0x178] sm:$0xff] %vm743, %v4937
        %5070 = vst.msk [vmem:[%s640 + $0x180] sm:$0xff] %vm743, %v4938
        %5071 = vst.msk [vmem:[%s640 + $0x188] sm:$0xff] %vm743, %v4939
        %5072 = vst.msk [vmem:[%s640 + $0x190] sm:$0xff] %vm743, %v4940
        %5073 = vst.msk [vmem:[%s640 + $0x198] sm:$0xff] %vm743, %v4941
        %5074 = vst.msk [vmem:[%s640 + $0x1a0] sm:$0xff] %vm743, %v4942
        %5075 = vst.msk [vmem:[%s640 + $0x1a8] sm:$0xff] %vm743, %v4943
        %5076 = vst.msk [vmem:[%s640 + $0x1b0] sm:$0xff] %vm743, %v4944
        %5077 = vst.msk [vmem:[%s640 + $0x1b8] sm:$0xff] %vm743, %v4945
        %5078 = vst.msk [vmem:[%s640 + $0x1c0] sm:$0xff] %vm743, %v4946
        %5079 = vst.msk [vmem:[%s640 + $0x1c8] sm:$0xff] %vm743, %v4947
        %5080 = vst.msk [vmem:[%s640 + $0x1d0] sm:$0xff] %vm743, %v4948
        %5081 = vst.msk [vmem:[%s640 + $0x1d8] sm:$0xff] %vm743, %v4949
        %5082 = vst.msk [vmem:[%s640 + $0x1e0] sm:$0xff] %vm743, %v4950
        %5083 = vst.msk [vmem:[%s640 + $0x1e8] sm:$0xff] %vm743, %v4951
        %5084 = vst.msk [vmem:[%s640 + $0x1f0] sm:$0xff] %vm743, %v4952
        %5085 = vst.msk [vmem:[%s640 + $0x1f8] sm:$0xff] %vm743, %v4953
        %5086 = vst [vmem:[%s589] sm:$0xff] %v967
        %5087 = vst [vmem:[%s589 + $0x8] sm:$0xff] %v971
        %5088 = vst [vmem:[%s589 + $0x10] sm:$0xff] %v977
        %5089 = vst [vmem:[%s589 + $0x18] sm:$0xff] %v981
        %5090 = vst.msk [vmem:[%s647] sm:$0xff] %vm743, %v1322
        %5091 = vst.msk [vmem:[%s647 + $0x8] sm:$0xff] %vm743, %v1324
        %5092 = vst.msk [vmem:[%s647 + $0x10] sm:$0xff] %vm743, %v1326
        %5093 = vst.msk [vmem:[%s647 + $0x18] sm:$0xff] %vm743, %v1328
        %s5094 = smul.u32 4, %s31
        %p5095 = scmp.lt.s32.totalorder %s5094, 7
        %s5096 = scalar_select %p5095, %s5094, 7
        %s5097 = smul.addr %s5096, 8
        %s5098 = scalar_lea.vmem %s12, %s5097
        %s5099 = smul.u32 32, %s31
        %p5100 = scmp.lt.s32.totalorder %s5099, 63
        %s5101 = scalar_select %p5100, %s5099, 63
        %s5102 = smul.addr %s5101, 2
        %s5103 = smul.addr %s5102, 8
        %s5104 = scalar_lea.vmem %s13, %s5103
        %s5105 = smul.u32 32, %s31
        %p5106 = scmp.lt.s32.totalorder %s5105, 63
        %s5107 = scalar_select %p5106, %s5105, 63
        %s5108 = smul.addr %s5107, 2
        %s5109 = smul.addr %s5108, 8
        %s5110 = scalar_lea.vmem %s14, %s5109
        %s5111 = sand.u32 %s389, 1
        %s5112 = scalar_lea.sflag [#allocation3], %s5111
        %s5113 = sand.u32 %s389, 1
        %s5114 = smul.addr %s5113, 32
        %s5115 = scalar_lea.vmem [#allocation2], %s5114
        %s5116 = smul.u32 4, %s31
        %p5117 = scmp.lt.s32.totalorder %s5116, 7
        %s5118 = scalar_select %p5117, %s5116, 7
        %s5119 = smul.addr %s5118, 8
        %s5120 = scalar_lea.vmem %s16, %s5119
        // Predicated region
        $region69: #{tpu_custom_call.1} parent=67 // pred_check
          %p5121 = pneg %p321
        $region70: #{tpu_custom_call.1} parent=67 // pred_check_branch
          %5123 = sbr.rel (%p5121) target = $region72
        $region71: #{tpu_custom_call.1} parent=67 // pred_region
          %s5124 = smul.u32 4, %s31
        $region72: #{tpu_custom_call.1} parent=67 // pred_fallthru
          _
        // Predicated region
        $region73: #{tpu_custom_call.1} parent=67 // pred_check
          %p5125 = pneg %p347
        $region74: #{tpu_custom_call.1} parent=67 // pred_check_branch
          %5127 = sbr.rel (%p5125) target = $region76
        $region75: #{tpu_custom_call.1} parent=67 // pred_region
          %s5128 = smul.u32 32, %s31
        $region76: #{tpu_custom_call.1} parent=67 // pred_fallthru
          _
        // Predicated region
        $region77: #{tpu_custom_call.1} parent=67 // pred_check
          %p5129 = pneg %p373
        $region78: #{tpu_custom_call.1} parent=67 // pred_check_branch
          %5131 = sbr.rel (%p5129) target = $region80
        $region79: #{tpu_custom_call.1} parent=67 // pred_region
          %s5132 = smul.u32 32, %s31
        $region80: #{tpu_custom_call.1} parent=67 // pred_fallthru
          _
        // Predicated region
        $region81: #{tpu_custom_call.1} parent=67 // pred_check
          %p5133 = pneg %p399
        $region82: #{tpu_custom_call.1} parent=67 // pred_check_branch
          %5135 = sbr.rel (%p5133) target = $region84
        $region83: #{tpu_custom_call.1} parent=67 // pred_region
          %s5136 = smul.u32 4, %s31
          %s5138 = ssub.s32 512, 512
          %5139 = vsyncadd %s5112, %s5138
          %s5140 = smul.addr %s5136, 128
          %s5141 = scalar_lea.hbm %s15, %s5140
          %s5142 = sshll.u32 %s5115, 4
          %s5143 = int_to_ptr.vmem [resolvable:$true] %s5142
          %5148 = dma.vmem_to_hbm [thread:$0]  %s5143, 512, %s5141, %s5112, 128, 128, 8
        $region84: #{tpu_custom_call.1} parent=67 // pred_fallthru
          _
        // Predicated region
        $region85: #{tpu_custom_call.1} parent=67 // pred_check
          %p5149 = pneg %p425
        $region86: #{tpu_custom_call.1} parent=67 // pred_check_branch
          %5151 = sbr.rel (%p5149) target = $region88
        $region87: #{tpu_custom_call.1} parent=67 // pred_region
          %s5152 = smul.u32 4, %s31
        $region88: #{tpu_custom_call.1} parent=67 // pred_fallthru
          _
      $region68: #{tpu_custom_call.1} parent=5 // pred_fallthru
        _
      %p5153 = scmp.le.s32.totalorder 2, %s26
      // Predicated region
      $region89: #{tpu_custom_call.1} parent=5 // pred_check
        %p5154 = pneg %p5153
      $region90: #{tpu_custom_call.1} parent=5 // pred_check_branch
        %5156 = sbr.rel (%p5154) target = $region92
      $region91: #{tpu_custom_call.1} parent=5 // pred_region
        %s5157 = ssub.s32 %s26, 2
        // Predicated region
        $region93: #{tpu_custom_call.1} parent=91 // pred_check
          %p5158 = pneg %p327
        $region94: #{tpu_custom_call.1} parent=91 // pred_check_branch
          %5160 = sbr.rel (%p5158) target = $region96
        $region95: #{tpu_custom_call.1} parent=91 // pred_region
          %s5161 = smul.u32 4, %s32
          %p5162 = scmp.lt.s32.totalorder %s5161, 7
          %s5163 = scalar_select %p5162, %s5161, 7
          %s5164 = smul.addr %s5163, 8
          %s5165 = scalar_lea.vmem %s12, %s5164
        $region96: #{tpu_custom_call.1} parent=91 // pred_fallthru
          _
        // Predicated region
        $region97: #{tpu_custom_call.1} parent=91 // pred_check
          %p5166 = pneg %p353
        $region98: #{tpu_custom_call.1} parent=91 // pred_check_branch
          %5168 = sbr.rel (%p5166) target = $region100
        $region99: #{tpu_custom_call.1} parent=91 // pred_region
          %s5169 = smul.u32 32, %s32
          %p5170 = scmp.lt.s32.totalorder %s5169, 63
          %s5171 = scalar_select %p5170, %s5169, 63
          %s5172 = smul.addr %s5171, 2
          %s5173 = smul.addr %s5172, 8
          %s5174 = scalar_lea.vmem %s13, %s5173
        $region100: #{tpu_custom_call.1} parent=91 // pred_fallthru
          _
        // Predicated region
        $region101: #{tpu_custom_call.1} parent=91 // pred_check
          %p5175 = pneg %p379
        $region102: #{tpu_custom_call.1} parent=91 // pred_check_branch
          %5177 = sbr.rel (%p5175) target = $region104
        $region103: #{tpu_custom_call.1} parent=91 // pred_region
          %s5178 = smul.u32 32, %s32
          %p5179 = scmp.lt.s32.totalorder %s5178, 63
          %s5180 = scalar_select %p5179, %s5178, 63
          %s5181 = smul.addr %s5180, 2
          %s5182 = smul.addr %s5181, 8
          %s5183 = scalar_lea.vmem %s14, %s5182
        $region104: #{tpu_custom_call.1} parent=91 // pred_fallthru
          _
        // Predicated region
        $region105: #{tpu_custom_call.1} parent=91 // pred_check
          %p5184 = pneg %p405
        $region106: #{tpu_custom_call.1} parent=91 // pred_check_branch
          %5186 = sbr.rel (%p5184) target = $region108
        $region107: #{tpu_custom_call.1} parent=91 // pred_region
          %s5187 = sand.u32 %s390, 1
          %s5188 = scalar_lea.sflag [#allocation3], %s5187
          %s5189 = sand.u32 %s390, 1
          %s5190 = smul.addr %s5189, 32
          %s5191 = scalar_lea.vmem [#allocation2], %s5190
          %5192 = dma.done %s5188, 512
        $region108: #{tpu_custom_call.1} parent=91 // pred_fallthru
          _
        // Predicated region
        $region109: #{tpu_custom_call.1} parent=91 // pred_check
          %p5193 = pneg %p431
        $region110: #{tpu_custom_call.1} parent=91 // pred_check_branch
          %5195 = sbr.rel (%p5193) target = $region112
        $region111: #{tpu_custom_call.1} parent=91 // pred_region
          %s5196 = smul.u32 4, %s32
          %p5197 = scmp.lt.s32.totalorder %s5196, 7
          %s5198 = scalar_select %p5197, %s5196, 7
          %s5199 = smul.addr %s5198, 8
          %s5200 = scalar_lea.vmem %s16, %s5199
        $region112: #{tpu_custom_call.1} parent=91 // pred_fallthru
          _
      $region92: #{tpu_custom_call.1} parent=5 // pred_fallthru
        _
    $region6: #{tpu_custom_call.1} parent=1 // loop_footer
      %s30 = sadd.s32 1, %s26
    $region7: #{tpu_custom_call.1} parent=1 // loop_footer_branch
      %25 = sbr.rel target = $region3
    $region8: #{tpu_custom_call.1} parent=1 // loop_exit
      _
    %5201 = vsyncpa [#allocation3], 1
    %s5202 = scalar_lea.sflag [#allocation3], 1
    %5203 = vsyncpa %s5202, 1

</llo_original>
